<compile_context>
chip_gen: v6e
topology: v6e:2x2x1
jax: 0.10.0
libtpu: 0.0.40
codegen_flags: <defaults>
</compile_context>

<pallas_src>
import functools

import jax
import jax.numpy as jnp
from jax.experimental import pallas as pl
from jax.experimental.pallas import tpu as pltpu

EPS = 1e-5
# Leave headroom vs v7x's 64 MiB physical VMEM; far more than these tiles need.
VMEM_LIMIT_BYTES = 48 * 1024 * 1024


def _conv3x3_stats_kernel(*refs, H, W, Cin, apply_input_affine_relu):
    """3x3 'same' conv (bias-free) on one batch element + fused BN-stat epilogue.

    Optionally applies the previous stage's fused BatchNorm+ReLU (a per-channel
    affine followed by max(.,0)) to the raw input first, so conv1 and conv2
    share one kernel body.

    refs when apply_input_affine_relu=False (conv1):
      x_ref     (1, H, W, Cin)   raw NHWC input block
      w_ref     (9*Cin, Cout)    conv weights reshaped for a single K=9*Cin matmul
      y_ref     (1, H*W, Cout)   raw conv output (pre-BN)
      stats_ref (1, 2, Cout)     per-sample [sum, sum-of-squares] over H*W
      xpad_ref  (H+2, W+2, Cin)  VMEM scratch with a 1-px zero halo
    refs when apply_input_affine_relu=True (conv2): scale_ref/shift_ref (1, Cin)
      are inserted after x_ref, and x_ref is (1, H*W, Cin) (previous raw conv out).
    """
    if apply_input_affine_relu:
        x_ref, scale_ref, shift_ref, w_ref, y_ref, stats_ref, xpad_ref = refs
        # Fused BN1 + ReLU of the previous conv's raw output.
        x = jnp.maximum(x_ref[0] * scale_ref[...] + shift_ref[...], 0.0)
        x = x.reshape(H, W, Cin)
    else:
        x_ref, w_ref, y_ref, stats_ref, xpad_ref = refs
        x = x_ref[0]                                    # (H, W, Cin)

    Cout = w_ref.shape[-1]
    Hp, Wp = H + 2, W + 2

    # Zero only the 1-pixel halo (4 thin strips), not the whole padded buffer,
    # then drop the activation into the interior.
    xpad_ref[0:1, :, :] = jnp.zeros((1, Wp, Cin), jnp.float32)
    xpad_ref[Hp - 1:Hp, :, :] = jnp.zeros((1, Wp, Cin), jnp.float32)
    xpad_ref[:, 0:1, :] = jnp.zeros((Hp, 1, Cin), jnp.float32)
    xpad_ref[:, Wp - 1:Wp, :] = jnp.zeros((Hp, 1, Cin), jnp.float32)
    xpad_ref[1:H + 1, 1:W + 1, :] = x

    # im2col: gather the 9 shifted taps once and contract them in a single MXU
    # matmul with K = 9*Cin (instead of 9 tiny K=Cin matmuls).
    taps = [xpad_ref[kh:kh + H, kw:kw + W, :].reshape(H * W, Cin)
            for kh in range(3) for kw in range(3)]
    patches = jnp.concatenate(taps, axis=-1)            # (H*W, 9*Cin)
    acc = jnp.dot(patches, w_ref[...],
                  preferred_element_type=jnp.float32)   # (H*W, Cout)

    # Conv bias intentionally omitted: under training-mode BN it shifts the
    # batch mean by exactly the bias and cancels out of the normalized output.
    # Fused BN statistics epilogue: per-channel sum and sum of squares.
    s = jnp.sum(acc, axis=0, keepdims=True)             # (1, Cout)
    ss = jnp.sum(acc * acc, axis=0, keepdims=True)      # (1, Cout)
    stats_ref[:, 0:1, :] = s[None]
    stats_ref[:, 1:2, :] = ss[None]

    y_ref[...] = acc[None]                              # (1, H*W, Cout)


def _affine_relu_kernel(y_ref, scale_ref, shift_ref, out_ref):
    """Final BN2 + ReLU: fully lane-dense elementwise pass (W*C lanes)."""
    # y_ref/out_ref: (1, H, W*C); scale/shift: (1, W*C) (per-channel values
    # pre-tiled over W) -> dense vregs and unmasked vector stores.
    out_ref[...] = jnp.maximum(y_ref[...] * scale_ref[...] + shift_ref[...], 0.0)


def _bn_scale_shift(stats, gamma, beta, count):
    """Per-sample [sum, sumsq] -> training-mode BN per-channel (scale, shift)."""
    s = jnp.sum(stats[:, 0, :], axis=0)
    ss = jnp.sum(stats[:, 1, :], axis=0)
    mean = s / count
    # E[x^2] - E[x]^2 can go slightly negative from cancellation -> clamp.
    var = jnp.maximum(ss / count - mean * mean, 0.0)
    scale = gamma.astype(jnp.float32) * jax.lax.rsqrt(var + EPS)
    shift = beta.astype(jnp.float32) - mean * scale
    return scale.reshape(1, -1), shift.reshape(1, -1)


def double_conv_pallas(x_nchw, w1, b1, g1, be1, w2, b2, g2, be2):
    """DoubleConv forward (NCHW in / NCHW out), training-mode BatchNorm.

    b1/b2 are accepted for API parity but unused: a conv bias that feeds a
    training-mode BatchNorm cancels exactly (dead compute).
    """
    del b1, b2
    N, Cin, H, W = x_nchw.shape
    Cmid = w1.shape[-1]
    Cout = w2.shape[-1]
    count = N * H * W

    x = jnp.transpose(x_nchw, (0, 2, 3, 1)).astype(jnp.float32)     # NHWC
    w1r = w1.astype(jnp.float32).reshape(9 * Cin, Cmid)
    w2r = w2.astype(jnp.float32).reshape(9 * Cmid, Cout)

    cparams = pltpu.CompilerParams(
        dimension_semantics=("parallel",),        # batch tiles split across TCs
        vmem_limit_bytes=VMEM_LIMIT_BYTES)

    # ---- pass 1: conv1 (bias-free) + per-sample BN1 statistics --------------
    y1_raw, stats1 = pl.pallas_call(
        functools.partial(_conv3x3_stats_kernel, H=H, W=W, Cin=Cin,
                          apply_input_affine_relu=False),
        grid=(N,),
        in_specs=[
            pl.BlockSpec((1, H, W, Cin), lambda n: (n, 0, 0, 0)),
            pl.BlockSpec((9 * Cin, Cmid), lambda n: (0, 0)),
        ],
        out_specs=[
            pl.BlockSpec((1, H * W, Cmid), lambda n: (n, 0, 0)),
            pl.BlockSpec((1, 2, Cmid), lambda n: (n, 0, 0)),
        ],
        out_shape=[
            jax.ShapeDtypeStruct((N, H * W, Cmid), jnp.float32),
            jax.ShapeDtypeStruct((N, 2, Cmid), jnp.float32),
        ],
        scratch_shapes=[pltpu.VMEM((H + 2, W + 2, Cin), jnp.float32)],
        compiler_params=cparams,
    )(x, w1r)

    scale1, shift1 = _bn_scale_shift(stats1, g1, be1, count)

    # ---- pass 2: fused BN1+ReLU -> conv2 + per-sample BN2 statistics ---------
    y2_raw, stats2 = pl.pallas_call(
        functools.partial(_conv3x3_stats_kernel, H=H, W=W, Cin=Cmid,
                          apply_input_affine_relu=True),
        grid=(N,),
        in_specs=[
            pl.BlockSpec((1, H * W, Cmid), lambda n: (n, 0, 0)),
            pl.BlockSpec((1, Cmid), lambda n: (0, 0)),
            pl.BlockSpec((1, Cmid), lambda n: (0, 0)),
            pl.BlockSpec((9 * Cmid, Cout), lambda n: (0, 0)),
        ],
        out_specs=[
            pl.BlockSpec((1, H * W, Cout), lambda n: (n, 0, 0)),
            pl.BlockSpec((1, 2, Cout), lambda n: (n, 0, 0)),
        ],
        out_shape=[
            jax.ShapeDtypeStruct((N, H * W, Cout), jnp.float32),
            jax.ShapeDtypeStruct((N, 2, Cout), jnp.float32),
        ],
        scratch_shapes=[pltpu.VMEM((H + 2, W + 2, Cmid), jnp.float32)],
        compiler_params=cparams,
    )(y1_raw, scale1, shift1, w2r)

    scale2, shift2 = _bn_scale_shift(stats2, g2, be2, count)

    # ---- pass 3: BN2 + ReLU, lane-dense (W*Cout lanes) writeback -------------
    y2_ld = y2_raw.reshape(N, H, W * Cout)              # row-major identity fold
    scale2t = jnp.tile(scale2, (1, W))                  # (1, W*Cout)
    shift2t = jnp.tile(shift2, (1, W))
    out_ld = pl.pallas_call(
        _affine_relu_kernel,
        grid=(N,),
        in_specs=[
            pl.BlockSpec((1, H, W * Cout), lambda n: (n, 0, 0)),
            pl.BlockSpec((1, W * Cout), lambda n: (0, 0)),
            pl.BlockSpec((1, W * Cout), lambda n: (0, 0)),
        ],
        out_specs=pl.BlockSpec((1, H, W * Cout), lambda n: (n, 0, 0)),
        out_shape=jax.ShapeDtypeStruct((N, H, W * Cout), jnp.float32),
        compiler_params=cparams,
    )(y2_ld, scale2t, shift2t)

    out_nhwc = out_ld.reshape(N, H, W, Cout)
    return jnp.transpose(out_nhwc, (0, 3, 1, 2))


def ref_double_conv(x_nchw, w1, b1, g1, be1, w2, b2, g2, be2):
    """Pure-JAX reference of DoubleConv.forward (training-mode BN, with biases)."""
    x = jnp.transpose(x_nchw, (0, 2, 3, 1)).astype(jnp.float32)

    def conv(x, w, b):
        y = jax.lax.conv_general_dilated(
            x, w, window_strides=(1, 1), padding="SAME",
            dimension_numbers=("NHWC", "HWIO", "NHWC"))
        return y + b

    def bn_relu(y, g, be):
        mean = jnp.mean(y, axis=(0, 1, 2), keepdims=True)
        var = jnp.mean((y - mean) ** 2, axis=(0, 1, 2), keepdims=True)
        return jnp.maximum((y - mean) * g * jax.lax.rsqrt(var + EPS) + be, 0.0)

    y = bn_relu(conv(x, w1, b1), g1, be1)
    y = bn_relu(conv(y, w2, b2), g2, be2)
    return jnp.transpose(y, (0, 3, 1, 2))


if __name__ == "__main__":
    # DoubleConv(in_channels=4, out_channels=8) -> mid_channels=8
    N, Cin, H, W = 2, 4, 16, 16
    Cmid = Cout = 8

    key = jax.random.PRNGKey(0)
    ks = jax.random.split(key, 9)
    x = jax.random.normal(ks[0], (N, Cin, H, W), jnp.float32)

    # Conv weights in HWIO layout (3,3,Cin,Cout); biases per channel.
    w1 = jax.random.normal(ks[1], (3, 3, Cin, Cmid), jnp.float32) * 0.1
    b1 = jax.random.normal(ks[2], (Cmid,), jnp.float32) * 0.1
    w2 = jax.random.normal(ks[3], (3, 3, Cmid, Cout), jnp.float32) * 0.1
    b2 = jax.random.normal(ks[4], (Cout,), jnp.float32) * 0.1
    # BatchNorm affine params.
    g1 = 1.0 + 0.1 * jax.random.normal(ks[5], (Cmid,), jnp.float32)
    be1 = 0.1 * jax.random.normal(ks[6], (Cmid,), jnp.float32)
    g2 = 1.0 + 0.1 * jax.random.normal(ks[7], (Cout,), jnp.float32)
    be2 = 0.1 * jax.random.normal(ks[8], (Cout,), jnp.float32)

    run = jax.jit(double_conv_pallas)
    out = jax.block_until_ready(run(x, w1, b1, g1, be1, w2, b2, g2, be2))

    ref = ref_double_conv(x, w1, b1, g1, be1, w2, b2, g2, be2)
    assert out.shape == (N, Cout, H, W), out.shape
    max_err = float(jnp.max(jnp.abs(out - ref)))
    assert jnp.allclose(out, ref, atol=1e-4, rtol=1e-4), max_err

    print("KERNEL_OK")
</pallas_src>

<mosaic_0001>
module attributes {stable_mosaic.version = 11 : i64} {
  func.func @_conv3x3_stats_kernel(%arg0: i32, %arg1: memref<1x16x16x4xf32, #tpu.memory_space<vmem>>, %arg2: memref<36x8xf32, #tpu.memory_space<vmem>>, %arg3: memref<1x256x8xf32, #tpu.memory_space<vmem>>, %arg4: memref<1x2x8xf32, #tpu.memory_space<vmem>>, %arg5: memref<18x18x4xf32, #tpu.memory_space<vmem>>) attributes {dimension_semantics = [#tpu.dimension_semantics<parallel>], iteration_bounds = array<i64: 2>, scalar_prefetch = 0 : i64, scratch_operands = 1 : i64, tpu.core_type = #tpu.core_type<tc>, window_params = [{transform_indices = @transform_0, window_bounds = array<i64: 1, 16, 16, 4>}, {pipeline_mode = #tpu.pipeline_mode<synchronous>, transform_indices = @transform_1, window_bounds = array<i64: 36, 8>}, {transform_indices = @transform_2, window_bounds = array<i64: 1, 256, 8>}, {transform_indices = @transform_3, window_bounds = array<i64: 1, 2, 8>}]} {
    %c0 = arith.constant 0 : index
    %c0_0 = arith.constant 0 : index
    %c0_1 = arith.constant 0 : index
    %c0_2 = arith.constant 0 : index
    %0 = vector.load %arg1[%c0, %c0_0, %c0_1, %c0_2] : memref<1x16x16x4xf32, #tpu.memory_space<vmem>>, vector<1x16x16x4xf32>
    %1 = vector.shape_cast %0 : vector<1x16x16x4xf32> to vector<16x16x4xf32>
    %cst = arith.constant 0.000000e+00 : f32
    %2 = vector.broadcast %cst : f32 to vector<1x18x4xf32>
    %c0_3 = arith.constant 0 : index
    %c0_4 = arith.constant 0 : index
    %c0_5 = arith.constant 0 : index
    %3 = vector.load %arg5[%c0_3, %c0_4, %c0_5] : memref<18x18x4xf32, #tpu.memory_space<vmem>>, vector<1x18x4xf32>
    tpu.vector_store %arg5[%c0_3, %c0_4, %c0_5], %2 {strides = array<i32>} : memref<18x18x4xf32, #tpu.memory_space<vmem>>, vector<1x18x4xf32>,
    %cst_6 = arith.constant 0.000000e+00 : f32
    %4 = vector.broadcast %cst_6 : f32 to vector<1x18x4xf32>
    %c17 = arith.constant 17 : index
    %c0_7 = arith.constant 0 : index
    %c0_8 = arith.constant 0 : index
    %5 = vector.load %arg5[%c17, %c0_7, %c0_8] : memref<18x18x4xf32, #tpu.memory_space<vmem>>, vector<1x18x4xf32>
    tpu.vector_store %arg5[%c17, %c0_7, %c0_8], %4 {strides = array<i32>} : memref<18x18x4xf32, #tpu.memory_space<vmem>>, vector<1x18x4xf32>,
    %cst_9 = arith.constant 0.000000e+00 : f32
    %6 = vector.broadcast %cst_9 : f32 to vector<18x1x4xf32>
    %c0_10 = arith.constant 0 : index
    %c0_11 = arith.constant 0 : index
    %c0_12 = arith.constant 0 : index
    %7 = vector.load %arg5[%c0_10, %c0_11, %c0_12] : memref<18x18x4xf32, #tpu.memory_space<vmem>>, vector<18x1x4xf32>
    tpu.vector_store %arg5[%c0_10, %c0_11, %c0_12], %6 {strides = array<i32>} : memref<18x18x4xf32, #tpu.memory_space<vmem>>, vector<18x1x4xf32>,
    %cst_13 = arith.constant 0.000000e+00 : f32
    %8 = vector.broadcast %cst_13 : f32 to vector<18x1x4xf32>
    %c0_14 = arith.constant 0 : index
    %c17_15 = arith.constant 17 : index
    %c0_16 = arith.constant 0 : index
    %9 = vector.load %arg5[%c0_14, %c17_15, %c0_16] : memref<18x18x4xf32, #tpu.memory_space<vmem>>, vector<18x1x4xf32>
    tpu.vector_store %arg5[%c0_14, %c17_15, %c0_16], %8 {strides = array<i32>} : memref<18x18x4xf32, #tpu.memory_space<vmem>>, vector<18x1x4xf32>,
    %c1 = arith.constant 1 : index
    %c1_17 = arith.constant 1 : index
    %c0_18 = arith.constant 0 : index
    %10 = vector.load %arg5[%c1, %c1_17, %c0_18] : memref<18x18x4xf32, #tpu.memory_space<vmem>>, vector<16x16x4xf32>
    tpu.vector_store %arg5[%c1, %c1_17, %c0_18], %1 {strides = array<i32>} : memref<18x18x4xf32, #tpu.memory_space<vmem>>, vector<16x16x4xf32>,
    %c0_19 = arith.constant 0 : index
    %c0_20 = arith.constant 0 : index
    %c0_21 = arith.constant 0 : index
    %11 = vector.load %arg5[%c0_19, %c0_20, %c0_21] : memref<18x18x4xf32, #tpu.memory_space<vmem>>, vector<16x16x4xf32>
    %12 = vector.shape_cast %11 : vector<16x16x4xf32> to vector<256x4xf32>
    %c0_22 = arith.constant 0 : index
    %c1_23 = arith.constant 1 : index
    %c0_24 = arith.constant 0 : index
    %13 = vector.load %arg5[%c0_22, %c1_23, %c0_24] : memref<18x18x4xf32, #tpu.memory_space<vmem>>, vector<16x16x4xf32>
    %14 = vector.shape_cast %13 : vector<16x16x4xf32> to vector<256x4xf32>
    %c0_25 = arith.constant 0 : index
    %c2 = arith.constant 2 : index
    %c0_26 = arith.constant 0 : index
    %15 = vector.load %arg5[%c0_25, %c2, %c0_26] : memref<18x18x4xf32, #tpu.memory_space<vmem>>, vector<16x16x4xf32>
    %16 = vector.shape_cast %15 : vector<16x16x4xf32> to vector<256x4xf32>
    %c1_27 = arith.constant 1 : index
    %c0_28 = arith.constant 0 : index
    %c0_29 = arith.constant 0 : index
    %17 = vector.load %arg5[%c1_27, %c0_28, %c0_29] : memref<18x18x4xf32, #tpu.memory_space<vmem>>, vector<16x16x4xf32>
    %18 = vector.shape_cast %17 : vector<16x16x4xf32> to vector<256x4xf32>
    %c1_30 = arith.constant 1 : index
    %c1_31 = arith.constant 1 : index
    %c0_32 = arith.constant 0 : index
    %19 = vector.load %arg5[%c1_30, %c1_31, %c0_32] : memref<18x18x4xf32, #tpu.memory_space<vmem>>, vector<16x16x4xf32>
    %20 = vector.shape_cast %19 : vector<16x16x4xf32> to vector<256x4xf32>
    %c1_33 = arith.constant 1 : index
    %c2_34 = arith.constant 2 : index
    %c0_35 = arith.constant 0 : index
    %21 = vector.load %arg5[%c1_33, %c2_34, %c0_35] : memref<18x18x4xf32, #tpu.memory_space<vmem>>, vector<16x16x4xf32>
    %22 = vector.shape_cast %21 : vector<16x16x4xf32> to vector<256x4xf32>
    %c2_36 = arith.constant 2 : index
    %c0_37 = arith.constant 0 : index
    %c0_38 = arith.constant 0 : index
    %23 = vector.load %arg5[%c2_36, %c0_37, %c0_38] : memref<18x18x4xf32, #tpu.memory_space<vmem>>, vector<16x16x4xf32>
    %24 = vector.shape_cast %23 : vector<16x16x4xf32> to vector<256x4xf32>
    %c2_39 = arith.constant 2 : index
    %c1_40 = arith.constant 1 : index
    %c0_41 = arith.constant 0 : index
    %25 = vector.load %arg5[%c2_39, %c1_40, %c0_41] : memref<18x18x4xf32, #tpu.memory_space<vmem>>, vector<16x16x4xf32>
    %26 = vector.shape_cast %25 : vector<16x16x4xf32> to vector<256x4xf32>
    %c2_42 = arith.constant 2 : index
    %c2_43 = arith.constant 2 : index
    %c0_44 = arith.constant 0 : index
    %27 = vector.load %arg5[%c2_42, %c2_43, %c0_44] : memref<18x18x4xf32, #tpu.memory_space<vmem>>, vector<16x16x4xf32>
    %28 = vector.shape_cast %27 : vector<16x16x4xf32> to vector<256x4xf32>
    %29 = tpu.concatenate %12, %14, %16, %18, %20, %22, %24, %26, %28 in 1 : vector<256x4xf32>, vector<256x4xf32>, vector<256x4xf32>, vector<256x4xf32>, vector<256x4xf32>, vector<256x4xf32>, vector<256x4xf32>, vector<256x4xf32>, vector<256x4xf32> -> vector<256x36xf32>
    %c0_45 = arith.constant 0 : index
    %c0_46 = arith.constant 0 : index
    %30 = vector.load %arg2[%c0_45, %c0_46] : memref<36x8xf32, #tpu.memory_space<vmem>>, vector<36x8xf32>
    %cst_47 = arith.constant dense<0.000000e+00> : vector<256x8xf32>
    %31 = tpu.matmul %29, %30, %cst_47 {dimension_numbers = #tpu.dot_dimension_numbers<[1], [0], [0], [1], [0, 0, 1, 1], [], []>} : vector<256x36xf32>, vector<36x8xf32>, vector<256x8xf32> -> vector<256x8xf32>
    %cst_48 = arith.constant dense<0.000000e+00> : vector<8xf32>
    %32 = vector.multi_reduction <add>, %31, %cst_48 [0] : vector<256x8xf32> to vector<8xf32>
    %33 = vector.shape_cast %32 : vector<8xf32> to vector<1x8xf32>
    %34 = arith.mulf %31, %31 : vector<256x8xf32>
    %cst_49 = arith.constant dense<0.000000e+00> : vector<8xf32>
    %35 = vector.multi_reduction <add>, %34, %cst_49 [0] : vector<256x8xf32> to vector<8xf32>
    %36 = vector.shape_cast %35 : vector<8xf32> to vector<1x8xf32>
    %37 = vector.shape_cast %33 : vector<1x8xf32> to vector<1x1x8xf32>
    %c0_50 = arith.constant 0 : index
    %c0_51 = arith.constant 0 : index
    %c0_52 = arith.constant 0 : index
    %38 = vector.load %arg4[%c0_50, %c0_51, %c0_52] : memref<1x2x8xf32, #tpu.memory_space<vmem>>, vector<1x1x8xf32>
    tpu.vector_store %arg4[%c0_50, %c0_51, %c0_52], %37 {strides = array<i32>} : memref<1x2x8xf32, #tpu.memory_space<vmem>>, vector<1x1x8xf32>,
    %39 = vector.shape_cast %36 : vector<1x8xf32> to vector<1x1x8xf32>
    %c0_53 = arith.constant 0 : index
    %c1_54 = arith.constant 1 : index
    %c0_55 = arith.constant 0 : index
    %40 = vector.load %arg4[%c0_53, %c1_54, %c0_55] : memref<1x2x8xf32, #tpu.memory_space<vmem>>, vector<1x1x8xf32>
    tpu.vector_store %arg4[%c0_53, %c1_54, %c0_55], %39 {strides = array<i32>} : memref<1x2x8xf32, #tpu.memory_space<vmem>>, vector<1x1x8xf32>,
    %41 = vector.shape_cast %31 : vector<256x8xf32> to vector<1x256x8xf32>
    %c0_56 = arith.constant 0 : index
    %c0_57 = arith.constant 0 : index
    %c0_58 = arith.constant 0 : index
    %42 = vector.load %arg3[%c0_56, %c0_57, %c0_58] : memref<1x256x8xf32, #tpu.memory_space<vmem>>, vector<1x256x8xf32>
    tpu.vector_store %arg3[%c0_56, %c0_57, %c0_58], %41 {strides = array<i32>} : memref<1x256x8xf32, #tpu.memory_space<vmem>>, vector<1x256x8xf32>,
    return
  }
  func.func @transform_0(%arg0: i32) -> (i32, i32, i32, i32) {
    %c0_i32 = arith.constant 0 : i32
    %c0_i32_0 = arith.constant 0 : i32
    %c0_i32_1 = arith.constant 0 : i32
    %c0_i32_2 = arith.constant 0 : i32
    return %arg0, %c0_i32, %c0_i32_0, %c0_i32_1 : i32, i32, i32, i32
  }
  func.func @transform_1(%arg0: i32) -> (i32, i32) {
    %c0_i32 = arith.constant 0 : i32
    %c0_i32_0 = arith.constant 0 : i32
    %c0_i32_1 = arith.constant 0 : i32
    return %c0_i32, %c0_i32_0 : i32, i32
  }
  func.func @transform_2(%arg0: i32) -> (i32, i32, i32) {
    %c0_i32 = arith.constant 0 : i32
    %c0_i32_0 = arith.constant 0 : i32
    %c0_i32_1 = arith.constant 0 : i32
    return %arg0, %c0_i32, %c0_i32_0 : i32, i32, i32
  }
  func.func @transform_3(%arg0: i32) -> (i32, i32, i32) {
    %c0_i32 = arith.constant 0 : i32
    %c0_i32_0 = arith.constant 0 : i32
    %c0_i32_1 = arith.constant 0 : i32
    return %arg0, %c0_i32, %c0_i32_0 : i32, i32, i32
  }
}

module attributes {stable_mosaic.version = 11 : i64} {
  func.func @_conv3x3_stats_kernel(%arg0: i32, %arg1: memref<1x256x8xf32, #tpu.memory_space<vmem>>, %arg2: memref<1x8xf32, #tpu.memory_space<vmem>>, %arg3: memref<1x8xf32, #tpu.memory_space<vmem>>, %arg4: memref<72x8xf32, #tpu.memory_space<vmem>>, %arg5: memref<1x256x8xf32, #tpu.memory_space<vmem>>, %arg6: memref<1x2x8xf32, #tpu.memory_space<vmem>>, %arg7: memref<18x18x8xf32, #tpu.memory_space<vmem>>) attributes {dimension_semantics = [#tpu.dimension_semantics<parallel>], iteration_bounds = array<i64: 2>, scalar_prefetch = 0 : i64, scratch_operands = 1 : i64, tpu.core_type = #tpu.core_type<tc>, window_params = [{transform_indices = @transform_0, window_bounds = array<i64: 1, 256, 8>}, {pipeline_mode = #tpu.pipeline_mode<synchronous>, transform_indices = @transform_1, window_bounds = array<i64: 1, 8>}, {pipeline_mode = #tpu.pipeline_mode<synchronous>, transform_indices = @transform_2, window_bounds = array<i64: 1, 8>}, {pipeline_mode = #tpu.pipeline_mode<synchronous>, transform_indices = @transform_3, window_bounds = array<i64: 72, 8>}, {transform_indices = @transform_4, window_bounds = array<i64: 1, 256, 8>}, {transform_indices = @transform_5, window_bounds = array<i64: 1, 2, 8>}]} {
    %c0 = arith.constant 0 : index
    %c0_0 = arith.constant 0 : index
    %c0_1 = arith.constant 0 : index
    %0 = vector.load %arg1[%c0, %c0_0, %c0_1] : memref<1x256x8xf32, #tpu.memory_space<vmem>>, vector<1x256x8xf32>
    %1 = vector.shape_cast %0 : vector<1x256x8xf32> to vector<256x8xf32>
    %c0_2 = arith.constant 0 : index
    %c0_3 = arith.constant 0 : index
    %2 = vector.load %arg2[%c0_2, %c0_3] : memref<1x8xf32, #tpu.memory_space<vmem>>, vector<1x8xf32>
    %3 = vector.broadcast %2 : vector<1x8xf32> to vector<256x8xf32>
    %4 = arith.mulf %1, %3 : vector<256x8xf32>
    %c0_4 = arith.constant 0 : index
    %c0_5 = arith.constant 0 : index
    %5 = vector.load %arg3[%c0_4, %c0_5] : memref<1x8xf32, #tpu.memory_space<vmem>>, vector<1x8xf32>
    %6 = vector.broadcast %5 : vector<1x8xf32> to vector<256x8xf32>
    %7 = arith.addf %4, %6 : vector<256x8xf32>
    %cst = arith.constant 0.000000e+00 : f32
    %8 = vector.broadcast %cst : f32 to vector<256x8xf32>
    %9 = arith.maximumf %7, %8 : vector<256x8xf32>
    %10 = vector.shape_cast %9 : vector<256x8xf32> to vector<16x16x8xf32>
    %cst_6 = arith.constant 0.000000e+00 : f32
    %11 = vector.broadcast %cst_6 : f32 to vector<1x18x8xf32>
    %c0_7 = arith.constant 0 : index
    %c0_8 = arith.constant 0 : index
    %c0_9 = arith.constant 0 : index
    %12 = vector.load %arg7[%c0_7, %c0_8, %c0_9] : memref<18x18x8xf32, #tpu.memory_space<vmem>>, vector<1x18x8xf32>
    tpu.vector_store %arg7[%c0_7, %c0_8, %c0_9], %11 {strides = array<i32>} : memref<18x18x8xf32, #tpu.memory_space<vmem>>, vector<1x18x8xf32>,
    %cst_10 = arith.constant 0.000000e+00 : f32
    %13 = vector.broadcast %cst_10 : f32 to vector<1x18x8xf32>
    %c17 = arith.constant 17 : index
    %c0_11 = arith.constant 0 : index
    %c0_12 = arith.constant 0 : index
    %14 = vector.load %arg7[%c17, %c0_11, %c0_12] : memref<18x18x8xf32, #tpu.memory_space<vmem>>, vector<1x18x8xf32>
    tpu.vector_store %arg7[%c17, %c0_11, %c0_12], %13 {strides = array<i32>} : memref<18x18x8xf32, #tpu.memory_space<vmem>>, vector<1x18x8xf32>,
    %cst_13 = arith.constant 0.000000e+00 : f32
    %15 = vector.broadcast %cst_13 : f32 to vector<18x1x8xf32>
    %c0_14 = arith.constant 0 : index
    %c0_15 = arith.constant 0 : index
    %c0_16 = arith.constant 0 : index
    %16 = vector.load %arg7[%c0_14, %c0_15, %c0_16] : memref<18x18x8xf32, #tpu.memory_space<vmem>>, vector<18x1x8xf32>
    tpu.vector_store %arg7[%c0_14, %c0_15, %c0_16], %15 {strides = array<i32>} : memref<18x18x8xf32, #tpu.memory_space<vmem>>, vector<18x1x8xf32>,
    %cst_17 = arith.constant 0.000000e+00 : f32
    %17 = vector.broadcast %cst_17 : f32 to vector<18x1x8xf32>
    %c0_18 = arith.constant 0 : index
    %c17_19 = arith.constant 17 : index
    %c0_20 = arith.constant 0 : index
    %18 = vector.load %arg7[%c0_18, %c17_19, %c0_20] : memref<18x18x8xf32, #tpu.memory_space<vmem>>, vector<18x1x8xf32>
    tpu.vector_store %arg7[%c0_18, %c17_19, %c0_20], %17 {strides = array<i32>} : memref<18x18x8xf32, #tpu.memory_space<vmem>>, vector<18x1x8xf32>,
    %c1 = arith.constant 1 : index
    %c1_21 = arith.constant 1 : index
    %c0_22 = arith.constant 0 : index
    %19 = vector.load %arg7[%c1, %c1_21, %c0_22] : memref<18x18x8xf32, #tpu.memory_space<vmem>>, vector<16x16x8xf32>
    tpu.vector_store %arg7[%c1, %c1_21, %c0_22], %10 {strides = array<i32>} : memref<18x18x8xf32, #tpu.memory_space<vmem>>, vector<16x16x8xf32>,
    %c0_23 = arith.constant 0 : index
    %c0_24 = arith.constant 0 : index
    %c0_25 = arith.constant 0 : index
    %20 = vector.load %arg7[%c0_23, %c0_24, %c0_25] : memref<18x18x8xf32, #tpu.memory_space<vmem>>, vector<16x16x8xf32>
    %21 = vector.shape_cast %20 : vector<16x16x8xf32> to vector<256x8xf32>
    %c0_26 = arith.constant 0 : index
    %c1_27 = arith.constant 1 : index
    %c0_28 = arith.constant 0 : index
    %22 = vector.load %arg7[%c0_26, %c1_27, %c0_28] : memref<18x18x8xf32, #tpu.memory_space<vmem>>, vector<16x16x8xf32>
    %23 = vector.shape_cast %22 : vector<16x16x8xf32> to vector<256x8xf32>
    %c0_29 = arith.constant 0 : index
    %c2 = arith.constant 2 : index
    %c0_30 = arith.constant 0 : index
    %24 = vector.load %arg7[%c0_29, %c2, %c0_30] : memref<18x18x8xf32, #tpu.memory_space<vmem>>, vector<16x16x8xf32>
    %25 = vector.shape_cast %24 : vector<16x16x8xf32> to vector<256x8xf32>
    %c1_31 = arith.constant 1 : index
    %c0_32 = arith.constant 0 : index
    %c0_33 = arith.constant 0 : index
    %26 = vector.load %arg7[%c1_31, %c0_32, %c0_33] : memref<18x18x8xf32, #tpu.memory_space<vmem>>, vector<16x16x8xf32>
    %27 = vector.shape_cast %26 : vector<16x16x8xf32> to vector<256x8xf32>
    %c1_34 = arith.constant 1 : index
    %c1_35 = arith.constant 1 : index
    %c0_36 = arith.constant 0 : index
    %28 = vector.load %arg7[%c1_34, %c1_35, %c0_36] : memref<18x18x8xf32, #tpu.memory_space<vmem>>, vector<16x16x8xf32>
    %29 = vector.shape_cast %28 : vector<16x16x8xf32> to vector<256x8xf32>
    %c1_37 = arith.constant 1 : index
    %c2_38 = arith.constant 2 : index
    %c0_39 = arith.constant 0 : index
    %30 = vector.load %arg7[%c1_37, %c2_38, %c0_39] : memref<18x18x8xf32, #tpu.memory_space<vmem>>, vector<16x16x8xf32>
    %31 = vector.shape_cast %30 : vector<16x16x8xf32> to vector<256x8xf32>
    %c2_40 = arith.constant 2 : index
    %c0_41 = arith.constant 0 : index
    %c0_42 = arith.constant 0 : index
    %32 = vector.load %arg7[%c2_40, %c0_41, %c0_42] : memref<18x18x8xf32, #tpu.memory_space<vmem>>, vector<16x16x8xf32>
    %33 = vector.shape_cast %32 : vector<16x16x8xf32> to vector<256x8xf32>
    %c2_43 = arith.constant 2 : index
    %c1_44 = arith.constant 1 : index
    %c0_45 = arith.constant 0 : index
    %34 = vector.load %arg7[%c2_43, %c1_44, %c0_45] : memref<18x18x8xf32, #tpu.memory_space<vmem>>, vector<16x16x8xf32>
    %35 = vector.shape_cast %34 : vector<16x16x8xf32> to vector<256x8xf32>
    %c2_46 = arith.constant 2 : index
    %c2_47 = arith.constant 2 : index
    %c0_48 = arith.constant 0 : index
    %36 = vector.load %arg7[%c2_46, %c2_47, %c0_48] : memref<18x18x8xf32, #tpu.memory_space<vmem>>, vector<16x16x8xf32>
    %37 = vector.shape_cast %36 : vector<16x16x8xf32> to vector<256x8xf32>
    %38 = tpu.concatenate %21, %23, %25, %27, %29, %31, %33, %35, %37 in 1 : vector<256x8xf32>, vector<256x8xf32>, vector<256x8xf32>, vector<256x8xf32>, vector<256x8xf32>, vector<256x8xf32>, vector<256x8xf32>, vector<256x8xf32>, vector<256x8xf32> -> vector<256x72xf32>
    %c0_49 = arith.constant 0 : index
    %c0_50 = arith.constant 0 : index
    %39 = vector.load %arg4[%c0_49, %c0_50] : memref<72x8xf32, #tpu.memory_space<vmem>>, vector<72x8xf32>
    %cst_51 = arith.constant dense<0.000000e+00> : vector<256x8xf32>
    %40 = tpu.matmul %38, %39, %cst_51 {dimension_numbers = #tpu.dot_dimension_numbers<[1], [0], [0], [1], [0, 0, 1, 1], [], []>} : vector<256x72xf32>, vector<72x8xf32>, vector<256x8xf32> -> vector<256x8xf32>
    %cst_52 = arith.constant dense<0.000000e+00> : vector<8xf32>
    %41 = vector.multi_reduction <add>, %40, %cst_52 [0] : vector<256x8xf32> to vector<8xf32>
    %42 = vector.shape_cast %41 : vector<8xf32> to vector<1x8xf32>
    %43 = arith.mulf %40, %40 : vector<256x8xf32>
    %cst_53 = arith.constant dense<0.000000e+00> : vector<8xf32>
    %44 = vector.multi_reduction <add>, %43, %cst_53 [0] : vector<256x8xf32> to vector<8xf32>
    %45 = vector.shape_cast %44 : vector<8xf32> to vector<1x8xf32>
    %46 = vector.shape_cast %42 : vector<1x8xf32> to vector<1x1x8xf32>
    %c0_54 = arith.constant 0 : index
    %c0_55 = arith.constant 0 : index
    %c0_56 = arith.constant 0 : index
    %47 = vector.load %arg6[%c0_54, %c0_55, %c0_56] : memref<1x2x8xf32, #tpu.memory_space<vmem>>, vector<1x1x8xf32>
    tpu.vector_store %arg6[%c0_54, %c0_55, %c0_56], %46 {strides = array<i32>} : memref<1x2x8xf32, #tpu.memory_space<vmem>>, vector<1x1x8xf32>,
    %48 = vector.shape_cast %45 : vector<1x8xf32> to vector<1x1x8xf32>
    %c0_57 = arith.constant 0 : index
    %c1_58 = arith.constant 1 : index
    %c0_59 = arith.constant 0 : index
    %49 = vector.load %arg6[%c0_57, %c1_58, %c0_59] : memref<1x2x8xf32, #tpu.memory_space<vmem>>, vector<1x1x8xf32>
    tpu.vector_store %arg6[%c0_57, %c1_58, %c0_59], %48 {strides = array<i32>} : memref<1x2x8xf32, #tpu.memory_space<vmem>>, vector<1x1x8xf32>,
    %50 = vector.shape_cast %40 : vector<256x8xf32> to vector<1x256x8xf32>
    %c0_60 = arith.constant 0 : index
    %c0_61 = arith.constant 0 : index
    %c0_62 = arith.constant 0 : index
    %51 = vector.load %arg5[%c0_60, %c0_61, %c0_62] : memref<1x256x8xf32, #tpu.memory_space<vmem>>, vector<1x256x8xf32>
    tpu.vector_store %arg5[%c0_60, %c0_61, %c0_62], %50 {strides = array<i32>} : memref<1x256x8xf32, #tpu.memory_space<vmem>>, vector<1x256x8xf32>,
    return
  }
  func.func @transform_0(%arg0: i32) -> (i32, i32, i32) {
    %c0_i32 = arith.constant 0 : i32
    %c0_i32_0 = arith.constant 0 : i32
    %c0_i32_1 = arith.constant 0 : i32
    return %arg0, %c0_i32, %c0_i32_0 : i32, i32, i32
  }
  func.func @transform_1(%arg0: i32) -> (i32, i32) {
    %c0_i32 = arith.constant 0 : i32
    %c0_i32_0 = arith.constant 0 : i32
    %c0_i32_1 = arith.constant 0 : i32
    return %c0_i32, %c0_i32_0 : i32, i32
  }
  func.func @transform_2(%arg0: i32) -> (i32, i32) {
    %c0_i32 = arith.constant 0 : i32
    %c0_i32_0 = arith.constant 0 : i32
    %c0_i32_1 = arith.constant 0 : i32
    return %c0_i32, %c0_i32_0 : i32, i32
  }
  func.func @transform_3(%arg0: i32) -> (i32, i32) {
    %c0_i32 = arith.constant 0 : i32
    %c0_i32_0 = arith.constant 0 : i32
    %c0_i32_1 = arith.constant 0 : i32
    return %c0_i32, %c0_i32_0 : i32, i32
  }
  func.func @transform_4(%arg0: i32) -> (i32, i32, i32) {
    %c0_i32 = arith.constant 0 : i32
    %c0_i32_0 = arith.constant 0 : i32
    %c0_i32_1 = arith.constant 0 : i32
    return %arg0, %c0_i32, %c0_i32_0 : i32, i32, i32
  }
  func.func @transform_5(%arg0: i32) -> (i32, i32, i32) {
    %c0_i32 = arith.constant 0 : i32
    %c0_i32_0 = arith.constant 0 : i32
    %c0_i32_1 = arith.constant 0 : i32
    return %arg0, %c0_i32, %c0_i32_0 : i32, i32, i32
  }
}

module attributes {stable_mosaic.version = 11 : i64} {
  func.func @_affine_relu_kernel(%arg0: i32, %arg1: memref<1x16x128xf32, #tpu.memory_space<vmem>>, %arg2: memref<1x128xf32, #tpu.memory_space<vmem>>, %arg3: memref<1x128xf32, #tpu.memory_space<vmem>>, %arg4: memref<1x16x128xf32, #tpu.memory_space<vmem>>) attributes {dimension_semantics = [#tpu.dimension_semantics<parallel>], iteration_bounds = array<i64: 2>, scalar_prefetch = 0 : i64, scratch_operands = 0 : i64, tpu.core_type = #tpu.core_type<tc>, window_params = [{transform_indices = @transform_0, window_bounds = array<i64: 1, 16, 128>}, {pipeline_mode = #tpu.pipeline_mode<synchronous>, transform_indices = @transform_1, window_bounds = array<i64: 1, 128>}, {pipeline_mode = #tpu.pipeline_mode<synchronous>, transform_indices = @transform_2, window_bounds = array<i64: 1, 128>}, {transform_indices = @transform_3, window_bounds = array<i64: 1, 16, 128>}]} {
    %c0 = arith.constant 0 : index
    %c0_0 = arith.constant 0 : index
    %c0_1 = arith.constant 0 : index
    %0 = vector.load %arg1[%c0, %c0_0, %c0_1] : memref<1x16x128xf32, #tpu.memory_space<vmem>>, vector<1x16x128xf32>
    %c0_2 = arith.constant 0 : index
    %c0_3 = arith.constant 0 : index
    %1 = vector.load %arg2[%c0_2, %c0_3] : memref<1x128xf32, #tpu.memory_space<vmem>>, vector<1x128xf32>
    %2 = vector.shape_cast %1 : vector<1x128xf32> to vector<1x1x128xf32>
    %3 = vector.broadcast %2 : vector<1x1x128xf32> to vector<1x16x128xf32>
    %4 = arith.mulf %0, %3 : vector<1x16x128xf32>
    %c0_4 = arith.constant 0 : index
    %c0_5 = arith.constant 0 : index
    %5 = vector.load %arg3[%c0_4, %c0_5] : memref<1x128xf32, #tpu.memory_space<vmem>>, vector<1x128xf32>
    %6 = vector.shape_cast %5 : vector<1x128xf32> to vector<1x1x128xf32>
    %7 = vector.broadcast %6 : vector<1x1x128xf32> to vector<1x16x128xf32>
    %8 = arith.addf %4, %7 : vector<1x16x128xf32>
    %cst = arith.constant 0.000000e+00 : f32
    %9 = vector.broadcast %cst : f32 to vector<1x16x128xf32>
    %10 = arith.maximumf %8, %9 : vector<1x16x128xf32>
    %c0_6 = arith.constant 0 : index
    %c0_7 = arith.constant 0 : index
    %c0_8 = arith.constant 0 : index
    %11 = vector.load %arg4[%c0_6, %c0_7, %c0_8] : memref<1x16x128xf32, #tpu.memory_space<vmem>>, vector<1x16x128xf32>
    tpu.vector_store %arg4[%c0_6, %c0_7, %c0_8], %10 {strides = array<i32>} : memref<1x16x128xf32, #tpu.memory_space<vmem>>, vector<1x16x128xf32>,
    return
  }
  func.func @transform_0(%arg0: i32) -> (i32, i32, i32) {
    %c0_i32 = arith.constant 0 : i32
    %c0_i32_0 = arith.constant 0 : i32
    %c0_i32_1 = arith.constant 0 : i32
    return %arg0, %c0_i32, %c0_i32_0 : i32, i32, i32
  }
  func.func @transform_1(%arg0: i32) -> (i32, i32) {
    %c0_i32 = arith.constant 0 : i32
    %c0_i32_0 = arith.constant 0 : i32
    %c0_i32_1 = arith.constant 0 : i32
    return %c0_i32, %c0_i32_0 : i32, i32
  }
  func.func @transform_2(%arg0: i32) -> (i32, i32) {
    %c0_i32 = arith.constant 0 : i32
    %c0_i32_0 = arith.constant 0 : i32
    %c0_i32_1 = arith.constant 0 : i32
    return %c0_i32, %c0_i32_0 : i32, i32
  }
  func.func @transform_3(%arg0: i32) -> (i32, i32, i32) {
    %c0_i32 = arith.constant 0 : i32
    %c0_i32_0 = arith.constant 0 : i32
    %c0_i32_1 = arith.constant 0 : i32
    return %arg0, %c0_i32, %c0_i32_0 : i32, i32, i32
  }
}

</mosaic_0001>

<llo_original>
// kernel: double_conv_pallas.5
$region0: #{double_conv_pallas.5}
  #allocation0 [shape = 'u32[]', space=smem, size = 0x4, offset = 0x4, fixed_abs, tag = 'smem constant byte address 0x4 - core index']
  #allocation1 [shape = 'u32[144,128]{1,0:T(1,128)}', space=vmem, size = 0x12000, scoped, tag = 'internal scratch']
  %s0 = inlined_call_operand.vmem [shape: f32[2,16,128], index: 0, kind: input, shape index: {}]
  %s1 = inlined_call_operand.vmem [shape: f32[1,128], index: 1, kind: input, shape index: {}]
  %s2 = inlined_call_operand.vmem [shape: f32[1,128], index: 2, kind: input, shape index: {}]
  %s3 = inlined_call_operand.vmem [shape: f32[2,16,128], index: 3, kind: output, shape index: {}]
  %s4 = sld [smem:[#allocation0]]
  $region45: #{double_conv_pallas.5} parent=0
    _
  %s6 = ssub.s32 1, %s4
  %s7 = scalar_select 0, %s6, %s4
  loop: start=0, step=1, limit=4
  $region2: #{double_conv_pallas.5} parent=0 // loop_pre_header
    _
  $region3: #{double_conv_pallas.5} parent=0 // loop_header
    %s9 = sphi 0, %s13
    %p10 = scmp.ge.s32.totalorder %s9, 4
    %s19 = sphi 0, %s21
    %s22 = sphi 0, %s19
    %s23 = sphi 0, %s22
    %s39 = sphi 0, %s23
    %s43 = sphi 0, %s43
    %s45 = sphi 0, %s43
    %s46 = sphi 0, %s45
    %s60 = sphi 0, %s46
    %s64 = sphi 0, %s64
    %s66 = sphi 0, %s64
    %s67 = sphi 0, %s66
    %s81 = sphi 0, %s67
    %s87 = sphi 0, %s89
    %s90 = sphi 0, %s87
    %s91 = sphi 0, %s90
    %s107 = sphi 0, %s91
  $region4: #{double_conv_pallas.5} parent=0 // loop_header_branch
    %12 = sbr.rel (%p10) target = $region8
  $region5: #{double_conv_pallas.5} parent=0 // loop_body
    %s14 = ssub.s32 %s9, 1
    %s15 = ssub.s32 %s9, 2
    %s16 = sadd.s32 %s9, 1
    %s17 = ssub.s32 %s9, %s16
    %p18 = scmp.eq.s32.totalorder %s17, 0
    %s20 = sadd.s32 %s19, 1
    %s21 = scalar_select %p18, %s19, %s20
    %p24 = pneg %p18
    %p25 = scmp.eq.s32.totalorder %s9, 1
    %p26 = por %p24, %p25
    %p27 = scmp.ne.s32.totalorder %s19, %s22
    %p28 = scmp.eq.s32.totalorder %s9, 0
    %p29 = por %p27, %p28
    %p30 = scmp.ne.s32.totalorder %s19, %s22
    %p31 = scmp.eq.s32.totalorder %s14, 1
    %p32 = por %p30, %p31
    %p33 = scmp.ne.s32.totalorder %s22, %s23
    %p34 = scmp.eq.s32.totalorder %s14, 0
    %p35 = por %p33, %p34
    %p36 = scmp.ne.s32.totalorder %s22, %s23
    %p37 = scmp.eq.s32.totalorder %s15, 1
    %p38 = por %p36, %p37
    %p40 = scmp.ne.s32.totalorder %s23, %s39
    %p41 = scmp.eq.s32.totalorder %s15, 0
    %p42 = por %p40, %p41
    %s44 = sadd.s32 %s43, 1
    %p47 = scmp.eq.s32.totalorder %s9, 1
    %p48 = scmp.ne.s32.totalorder %s43, %s45
    %p49 = scmp.eq.s32.totalorder %s9, 0
    %p50 = por %p48, %p49
    %p51 = scmp.ne.s32.totalorder %s43, %s45
    %p52 = scmp.eq.s32.totalorder %s14, 1
    %p53 = por %p51, %p52
    %p54 = scmp.ne.s32.totalorder %s45, %s46
    %p55 = scmp.eq.s32.totalorder %s14, 0
    %p56 = por %p54, %p55
    %p57 = scmp.ne.s32.totalorder %s45, %s46
    %p58 = scmp.eq.s32.totalorder %s15, 1
    %p59 = por %p57, %p58
    %p61 = scmp.ne.s32.totalorder %s46, %s60
    %p62 = scmp.eq.s32.totalorder %s15, 0
    %p63 = por %p61, %p62
    %s65 = sadd.s32 %s64, 1
    %p68 = scmp.eq.s32.totalorder %s9, 1
    %p69 = scmp.ne.s32.totalorder %s64, %s66
    %p70 = scmp.eq.s32.totalorder %s9, 0
    %p71 = por %p69, %p70
    %p72 = scmp.ne.s32.totalorder %s64, %s66
    %p73 = scmp.eq.s32.totalorder %s14, 1
    %p74 = por %p72, %p73
    %p75 = scmp.ne.s32.totalorder %s66, %s67
    %p76 = scmp.eq.s32.totalorder %s14, 0
    %p77 = por %p75, %p76
    %p78 = scmp.ne.s32.totalorder %s66, %s67
    %p79 = scmp.eq.s32.totalorder %s15, 1
    %p80 = por %p78, %p79
    %p82 = scmp.ne.s32.totalorder %s67, %s81
    %p83 = scmp.eq.s32.totalorder %s15, 0
    %p84 = por %p82, %p83
    %s85 = ssub.s32 %s9, %s16
    %p86 = scmp.eq.s32.totalorder %s85, 0
    %s88 = sadd.s32 %s87, 1
    %s89 = scalar_select %p86, %s87, %s88
    %p92 = pneg %p86
    %p93 = scmp.eq.s32.totalorder %s9, 1
    %p94 = por %p92, %p93
    %p95 = scmp.ne.s32.totalorder %s87, %s90
    %p96 = scmp.eq.s32.totalorder %s9, 0
    %p97 = por %p95, %p96
    %p98 = scmp.ne.s32.totalorder %s87, %s90
    %p99 = scmp.eq.s32.totalorder %s14, 1
    %p100 = por %p98, %p99
    %p101 = scmp.ne.s32.totalorder %s90, %s91
    %p102 = scmp.eq.s32.totalorder %s14, 0
    %p103 = por %p101, %p102
    %p104 = scmp.ne.s32.totalorder %s90, %s91
    %p105 = scmp.eq.s32.totalorder %s15, 1
    %p106 = por %p104, %p105
    %p108 = scmp.ne.s32.totalorder %s91, %s107
    %p109 = scmp.eq.s32.totalorder %s15, 0
    %p110 = por %p108, %p109
    %p111 = scmp.le.s32.totalorder 1, %s9
    %p112 = scmp.lt.s32.totalorder %s9, 3
    %p113 = pnand %p111, %p112
    %p114 = pneg %p113
    // Predicated region
    $region9: #{double_conv_pallas.5} parent=5 // pred_check
      _
    $region10: #{double_conv_pallas.5} parent=5 // pred_check_branch
      %116 = sbr.rel (%p113) target = $region12
    $region11: #{double_conv_pallas.5} parent=5 // pred_region
      %s117 = ssub.s32 %s9, 1
      // Predicated region
      $region13: #{double_conv_pallas.5} parent=11 // pred_check
        %p118 = pneg %p56
      $region14: #{double_conv_pallas.5} parent=11 // pred_check_branch
        %120 = sbr.rel (%p118) target = $region16
      $region15: #{double_conv_pallas.5} parent=11 // pred_region
        _
      $region16: #{double_conv_pallas.5} parent=11 // pred_fallthru
        _
      // Predicated region
      $region17: #{double_conv_pallas.5} parent=11 // pred_check
        %p121 = pneg %p77
      $region18: #{double_conv_pallas.5} parent=11 // pred_check_branch
        %123 = sbr.rel (%p121) target = $region20
      $region19: #{double_conv_pallas.5} parent=11 // pred_region
        _
      $region20: #{double_conv_pallas.5} parent=11 // pred_fallthru
        _
    $region12: #{double_conv_pallas.5} parent=5 // pred_fallthru
      _
    %p124 = scmp.lt.s32.totalorder %s9, 2
    // Predicated region
    $region21: #{double_conv_pallas.5} parent=5 // pred_check
      %p125 = pneg %p124
    $region22: #{double_conv_pallas.5} parent=5 // pred_check_branch
      %127 = sbr.rel (%p125) target = $region24
    $region23: #{double_conv_pallas.5} parent=5 // pred_region
      // Predicated region
      $region25: #{double_conv_pallas.5} parent=23 // pred_check
        %p128 = pneg %p29
      $region26: #{double_conv_pallas.5} parent=23 // pred_check_branch
        %130 = sbr.rel (%p128) target = $region28
      $region27: #{double_conv_pallas.5} parent=23 // pred_region
        %p131 = scmp.lt.s32.totalorder %s9, 1
        %s132 = scalar_select %p131, %s9, 1
        %s133 = smul.addr %s132, 2
        %s134 = smul.addr %s133, 8
        %s135 = scalar_lea.vmem %s0, %s134
      $region28: #{double_conv_pallas.5} parent=23 // pred_fallthru
        _
    $region24: #{double_conv_pallas.5} parent=5 // pred_fallthru
      _
    %p136 = scmp.le.s32.totalorder 1, %s9
    %p137 = scmp.lt.s32.totalorder %s9, 3
    %p138 = pnand %p136, %p137
    %p139 = pneg %p138
    // Predicated region
    $region29: #{double_conv_pallas.5} parent=5 // pred_check
      _
    $region30: #{double_conv_pallas.5} parent=5 // pred_check_branch
      %141 = sbr.rel (%p138) target = $region32
    $region31: #{double_conv_pallas.5} parent=5 // pred_region
      %s142 = ssub.s32 %s9, 1
      %p143 = scmp.lt.s32.totalorder %s14, 1
      %s144 = scalar_select %p143, %s14, 1
      %s145 = smul.addr %s144, 2
      %s146 = smul.addr %s145, 8
      %s147 = scalar_lea.vmem %s0, %s146
      %p148 = pneg %p35
      %p149 = pneg %p32
      %p150 = pneg %p56
      %p151 = pneg %p53
      %p152 = pneg %p77
      %p153 = pneg %p74
      %p154 = pneg %p103
      %p155 = pneg %p100
      %p156 = scmp.lt.s32.totalorder %s14, 1
      %s157 = scalar_select %p156, %s14, 1
      %s158 = smul.addr %s157, 2
      %s159 = smul.addr %s158, 8
      %s160 = scalar_lea.vmem %s3, %s159
      %p161 = scmp.lt.s32.totalorder %s14, 1
      %s162 = scalar_select %p161, %s14, 1
      %s163 = smul.addr %s162, 2
      %s164 = smul.addr %s163, 8
      %s165 = scalar_lea.vmem %s0, %s164
      %p166 = scmp.lt.s32.totalorder %s14, 1
      %s167 = scalar_select %p166, %s14, 1
      %s168 = smul.addr %s167, 2
      %s169 = smul.addr %s168, 8
      %s170 = scalar_lea.vmem %s3, %s169
      %v171 = vld [vmem:[%s165] sm:$0xff]
      %v172 = vld [vmem:[%s165 + $0x8] sm:$0xff]
      %v173 = vld [vmem:[%s1] sm:$0x1]
      %v175 = vlaneseq
      %v176 = vshrl.u32 %v175, 7
      %v177 = vsub.s32 0, %v176
      %v178 = vrot.slane %v173, %v177
      %v180 = vmul.f32 %v171, %v178
      %v181 = vmul.f32 %v172, %v178
      %v182 = vld [vmem:[%s2] sm:$0x1]
      %v184 = vlaneseq
      %v185 = vshrl.u32 %v184, 7
      %v186 = vsub.s32 0, %v185
      %v187 = vrot.slane %v182, %v186
      %v189 = vadd.f32 %v180, %v187
      %v190 = vadd.f32 %v181, %v187
      %v191 = vmax.f32 %v189, 0.0
      %v192 = vmax.f32 %v190, 0.0
      %193 = vst [vmem:[%s170] sm:$0xff] %v191
      %194 = vst [vmem:[%s170 + $0x8] sm:$0xff] %v192
      %p195 = scmp.lt.s32.totalorder %s14, 1
      %s196 = scalar_select %p195, %s14, 1
      %s197 = smul.addr %s196, 2
      %s198 = smul.addr %s197, 8
      %s199 = scalar_lea.vmem %s3, %s198
      // Predicated region
      $region33: #{double_conv_pallas.5} parent=31 // pred_check
        %p200 = pneg %p100
      $region34: #{double_conv_pallas.5} parent=31 // pred_check_branch
        %202 = sbr.rel (%p200) target = $region36
      $region35: #{double_conv_pallas.5} parent=31 // pred_region
        _
      $region36: #{double_conv_pallas.5} parent=31 // pred_fallthru
        _
    $region32: #{double_conv_pallas.5} parent=5 // pred_fallthru
      _
    %p203 = scmp.le.s32.totalorder 2, %s9
    // Predicated region
    $region37: #{double_conv_pallas.5} parent=5 // pred_check
      %p204 = pneg %p203
    $region38: #{double_conv_pallas.5} parent=5 // pred_check_branch
      %206 = sbr.rel (%p204) target = $region40
    $region39: #{double_conv_pallas.5} parent=5 // pred_region
      %s207 = ssub.s32 %s9, 2
      // Predicated region
      $region41: #{double_conv_pallas.5} parent=39 // pred_check
        %p208 = pneg %p106
      $region42: #{double_conv_pallas.5} parent=39 // pred_check_branch
        %210 = sbr.rel (%p208) target = $region44
      $region43: #{double_conv_pallas.5} parent=39 // pred_region
        %p211 = scmp.lt.s32.totalorder %s15, 1
        %s212 = scalar_select %p211, %s15, 1
        %s213 = smul.addr %s212, 2
        %s214 = smul.addr %s213, 8
        %s215 = scalar_lea.vmem %s3, %s214
      $region44: #{double_conv_pallas.5} parent=39 // pred_fallthru
        _
    $region40: #{double_conv_pallas.5} parent=5 // pred_fallthru
      _
  $region6: #{double_conv_pallas.5} parent=0 // loop_footer
    %s13 = sadd.s32 1, %s9
  $region7: #{double_conv_pallas.5} parent=0 // loop_footer_branch
    %8 = sbr.rel target = $region3
  $region8: #{double_conv_pallas.5} parent=0 // loop_exit
    _

// kernel: double_conv_pallas.3
$region0: #{double_conv_pallas.3}
  #allocation0 [shape = 'u32[]', space=smem, size = 0x4, offset = 0x4, fixed_abs, tag = 'smem constant byte address 0x4 - core index']
  #allocation1 [shape = 'u32[144,128]{1,0:T(1,128)}', space=vmem, size = 0x12000, scoped, tag = 'internal scratch']
  #allocation2 [shape = 'f32[18,18,4]{2,1,0:T(8,128)}', space=vmem, size = 0x36000, scoped, tag = 'scratch operand']
  %s0 = inlined_call_operand.vmem [shape: f32[2,16,16,4], index: 0, kind: input, shape index: {}]
  %s1 = inlined_call_operand.vmem [shape: f32[36,8], index: 1, kind: input, shape index: {}]
  %s2 = inlined_call_operand.vmem [shape: f32[2,256,8], index: 2, kind: output, shape index: {0}]
  %s3 = inlined_call_operand.vmem [shape: f32[2,2,8], index: 3, kind: output, shape index: {1}]
  %4 = xla_tuple %s2, %s3
  %s5 = sld [smem:[#allocation0]]
  $region49: #{double_conv_pallas.3} parent=0
    _
  %s7 = ssub.s32 1, %s5
  %s8 = scalar_select 0, %s7, %s5
  loop: start=0, step=1, limit=4
  $region2: #{double_conv_pallas.3} parent=0 // loop_pre_header
    _
  $region3: #{double_conv_pallas.3} parent=0 // loop_header
    %s10 = sphi 0, %s14
    %p11 = scmp.ge.s32.totalorder %s10, 4
    %s20 = sphi 0, %s22
    %s23 = sphi 0, %s20
    %s24 = sphi 0, %s23
    %s40 = sphi 0, %s24
    %s44 = sphi 0, %s44
    %s46 = sphi 0, %s44
    %s47 = sphi 0, %s46
    %s61 = sphi 0, %s47
    %s67 = sphi 0, %s69
    %s70 = sphi 0, %s67
    %s71 = sphi 0, %s70
    %s87 = sphi 0, %s71
    %s93 = sphi 0, %s95
    %s96 = sphi 0, %s93
    %s97 = sphi 0, %s96
    %s113 = sphi 0, %s97
  $region4: #{double_conv_pallas.3} parent=0 // loop_header_branch
    %13 = sbr.rel (%p11) target = $region8
  $region5: #{double_conv_pallas.3} parent=0 // loop_body
    %s15 = ssub.s32 %s10, 1
    %s16 = ssub.s32 %s10, 2
    %s17 = sadd.s32 %s10, 1
    %s18 = ssub.s32 %s10, %s17
    %p19 = scmp.eq.s32.totalorder %s18, 0
    %s21 = sadd.s32 %s20, 1
    %s22 = scalar_select %p19, %s20, %s21
    %p25 = pneg %p19
    %p26 = scmp.eq.s32.totalorder %s10, 1
    %p27 = por %p25, %p26
    %p28 = scmp.ne.s32.totalorder %s20, %s23
    %p29 = scmp.eq.s32.totalorder %s10, 0
    %p30 = por %p28, %p29
    %p31 = scmp.ne.s32.totalorder %s20, %s23
    %p32 = scmp.eq.s32.totalorder %s15, 1
    %p33 = por %p31, %p32
    %p34 = scmp.ne.s32.totalorder %s23, %s24
    %p35 = scmp.eq.s32.totalorder %s15, 0
    %p36 = por %p34, %p35
    %p37 = scmp.ne.s32.totalorder %s23, %s24
    %p38 = scmp.eq.s32.totalorder %s16, 1
    %p39 = por %p37, %p38
    %p41 = scmp.ne.s32.totalorder %s24, %s40
    %p42 = scmp.eq.s32.totalorder %s16, 0
    %p43 = por %p41, %p42
    %s45 = sadd.s32 %s44, 1
    %p48 = scmp.eq.s32.totalorder %s10, 1
    %p49 = scmp.ne.s32.totalorder %s44, %s46
    %p50 = scmp.eq.s32.totalorder %s10, 0
    %p51 = por %p49, %p50
    %p52 = scmp.ne.s32.totalorder %s44, %s46
    %p53 = scmp.eq.s32.totalorder %s15, 1
    %p54 = por %p52, %p53
    %p55 = scmp.ne.s32.totalorder %s46, %s47
    %p56 = scmp.eq.s32.totalorder %s15, 0
    %p57 = por %p55, %p56
    %p58 = scmp.ne.s32.totalorder %s46, %s47
    %p59 = scmp.eq.s32.totalorder %s16, 1
    %p60 = por %p58, %p59
    %p62 = scmp.ne.s32.totalorder %s47, %s61
    %p63 = scmp.eq.s32.totalorder %s16, 0
    %p64 = por %p62, %p63
    %s65 = ssub.s32 %s10, %s17
    %p66 = scmp.eq.s32.totalorder %s65, 0
    %s68 = sadd.s32 %s67, 1
    %s69 = scalar_select %p66, %s67, %s68
    %p72 = pneg %p66
    %p73 = scmp.eq.s32.totalorder %s10, 1
    %p74 = por %p72, %p73
    %p75 = scmp.ne.s32.totalorder %s67, %s70
    %p76 = scmp.eq.s32.totalorder %s10, 0
    %p77 = por %p75, %p76
    %p78 = scmp.ne.s32.totalorder %s67, %s70
    %p79 = scmp.eq.s32.totalorder %s15, 1
    %p80 = por %p78, %p79
    %p81 = scmp.ne.s32.totalorder %s70, %s71
    %p82 = scmp.eq.s32.totalorder %s15, 0
    %p83 = por %p81, %p82
    %p84 = scmp.ne.s32.totalorder %s70, %s71
    %p85 = scmp.eq.s32.totalorder %s16, 1
    %p86 = por %p84, %p85
    %p88 = scmp.ne.s32.totalorder %s71, %s87
    %p89 = scmp.eq.s32.totalorder %s16, 0
    %p90 = por %p88, %p89
    %s91 = ssub.s32 %s10, %s17
    %p92 = scmp.eq.s32.totalorder %s91, 0
    %s94 = sadd.s32 %s93, 1
    %s95 = scalar_select %p92, %s93, %s94
    %p98 = pneg %p92
    %p99 = scmp.eq.s32.totalorder %s10, 1
    %p100 = por %p98, %p99
    %p101 = scmp.ne.s32.totalorder %s93, %s96
    %p102 = scmp.eq.s32.totalorder %s10, 0
    %p103 = por %p101, %p102
    %p104 = scmp.ne.s32.totalorder %s93, %s96
    %p105 = scmp.eq.s32.totalorder %s15, 1
    %p106 = por %p104, %p105
    %p107 = scmp.ne.s32.totalorder %s96, %s97
    %p108 = scmp.eq.s32.totalorder %s15, 0
    %p109 = por %p107, %p108
    %p110 = scmp.ne.s32.totalorder %s96, %s97
    %p111 = scmp.eq.s32.totalorder %s16, 1
    %p112 = por %p110, %p111
    %p114 = scmp.ne.s32.totalorder %s97, %s113
    %p115 = scmp.eq.s32.totalorder %s16, 0
    %p116 = por %p114, %p115
    %p117 = scmp.le.s32.totalorder 1, %s10
    %p118 = scmp.lt.s32.totalorder %s10, 3
    %p119 = pnand %p117, %p118
    %p120 = pneg %p119
    // Predicated region
    $region9: #{double_conv_pallas.3} parent=5 // pred_check
      _
    $region10: #{double_conv_pallas.3} parent=5 // pred_check_branch
      %122 = sbr.rel (%p119) target = $region12
    $region11: #{double_conv_pallas.3} parent=5 // pred_region
      %s123 = ssub.s32 %s10, 1
      // Predicated region
      $region13: #{double_conv_pallas.3} parent=11 // pred_check
        %p124 = pneg %p57
      $region14: #{double_conv_pallas.3} parent=11 // pred_check_branch
        %126 = sbr.rel (%p124) target = $region16
      $region15: #{double_conv_pallas.3} parent=11 // pred_region
        _
      $region16: #{double_conv_pallas.3} parent=11 // pred_fallthru
        _
    $region12: #{double_conv_pallas.3} parent=5 // pred_fallthru
      _
    %p127 = scmp.lt.s32.totalorder %s10, 2
    // Predicated region
    $region17: #{double_conv_pallas.3} parent=5 // pred_check
      %p128 = pneg %p127
    $region18: #{double_conv_pallas.3} parent=5 // pred_check_branch
      %130 = sbr.rel (%p128) target = $region20
    $region19: #{double_conv_pallas.3} parent=5 // pred_region
      // Predicated region
      $region21: #{double_conv_pallas.3} parent=19 // pred_check
        %p131 = pneg %p30
      $region22: #{double_conv_pallas.3} parent=19 // pred_check_branch
        %133 = sbr.rel (%p131) target = $region24
      $region23: #{double_conv_pallas.3} parent=19 // pred_region
        %p134 = scmp.lt.s32.totalorder %s10, 1
        %s135 = scalar_select %p134, %s10, 1
        %s136 = smul.addr %s135, 32
        %s137 = smul.addr %s136, 8
        %s138 = scalar_lea.vmem %s0, %s137
      $region24: #{double_conv_pallas.3} parent=19 // pred_fallthru
        _
    $region20: #{double_conv_pallas.3} parent=5 // pred_fallthru
      _
    %p139 = scmp.le.s32.totalorder 1, %s10
    %p140 = scmp.lt.s32.totalorder %s10, 3
    %p141 = pnand %p139, %p140
    %p142 = pneg %p141
    // Predicated region
    $region25: #{double_conv_pallas.3} parent=5 // pred_check
      _
    $region26: #{double_conv_pallas.3} parent=5 // pred_check_branch
      %144 = sbr.rel (%p141) target = $region28
    $region27: #{double_conv_pallas.3} parent=5 // pred_region
      %s145 = ssub.s32 %s10, 1
      %p146 = scmp.lt.s32.totalorder %s15, 1
      %s147 = scalar_select %p146, %s15, 1
      %s148 = smul.addr %s147, 32
      %s149 = smul.addr %s148, 8
      %s150 = scalar_lea.vmem %s0, %s149
      %p151 = pneg %p36
      %p152 = pneg %p33
      %p153 = pneg %p57
      %p154 = pneg %p54
      %p155 = pneg %p83
      %p156 = pneg %p80
      %p157 = scmp.lt.s32.totalorder %s15, 1
      %s158 = scalar_select %p157, %s15, 1
      %s159 = smul.addr %s158, 32
      %s160 = smul.addr %s159, 8
      %s161 = scalar_lea.vmem %s2, %s160
      %p162 = pneg %p109
      %p163 = pneg %p106
      %p164 = scmp.lt.s32.totalorder %s15, 1
      %s165 = scalar_select %p164, %s15, 1
      %s166 = smul.addr %s165, 2
      %s167 = scalar_lea.vmem %s3, %s166
      %p168 = scmp.lt.s32.totalorder %s15, 1
      %s169 = scalar_select %p168, %s15, 1
      %s170 = smul.addr %s169, 32
      %s171 = smul.addr %s170, 8
      %s172 = scalar_lea.vmem %s0, %s171
      %p173 = scmp.lt.s32.totalorder %s15, 1
      %s174 = scalar_select %p173, %s15, 1
      %s175 = smul.addr %s174, 32
      %s176 = smul.addr %s175, 8
      %s177 = scalar_lea.vmem %s2, %s176
      %p178 = scmp.lt.s32.totalorder %s15, 1
      %s179 = scalar_select %p178, %s15, 1
      %s180 = smul.addr %s179, 2
      %s181 = scalar_lea.vmem %s3, %s180
      %v182 = vld [vmem:[%s172] sm:$0xff]
      %v183 = vld [vmem:[%s172 + $0x8] sm:$0xff]
      %v184 = vld [vmem:[%s172 + $0x10] sm:$0xff]
      %v185 = vld [vmem:[%s172 + $0x18] sm:$0xff]
      %v186 = vld [vmem:[%s172 + $0x20] sm:$0xff]
      %v187 = vld [vmem:[%s172 + $0x28] sm:$0xff]
      %v188 = vld [vmem:[%s172 + $0x30] sm:$0xff]
      %v189 = vld [vmem:[%s172 + $0x38] sm:$0xff]
      %v190 = vld [vmem:[%s172 + $0x40] sm:$0xff]
      %v191 = vld [vmem:[%s172 + $0x48] sm:$0xff]
      %v192 = vld [vmem:[%s172 + $0x50] sm:$0xff]
      %v193 = vld [vmem:[%s172 + $0x58] sm:$0xff]
      %v194 = vld [vmem:[%s172 + $0x60] sm:$0xff]
      %v195 = vld [vmem:[%s172 + $0x68] sm:$0xff]
      %v196 = vld [vmem:[%s172 + $0x70] sm:$0xff]
      %v197 = vld [vmem:[%s172 + $0x78] sm:$0xff]
      %v198 = vld [vmem:[%s172 + $0x80] sm:$0xff]
      %v199 = vld [vmem:[%s172 + $0x88] sm:$0xff]
      %v200 = vld [vmem:[%s172 + $0x90] sm:$0xff]
      %v201 = vld [vmem:[%s172 + $0x98] sm:$0xff]
      %v202 = vld [vmem:[%s172 + $0xa0] sm:$0xff]
      %v203 = vld [vmem:[%s172 + $0xa8] sm:$0xff]
      %v204 = vld [vmem:[%s172 + $0xb0] sm:$0xff]
      %v205 = vld [vmem:[%s172 + $0xb8] sm:$0xff]
      %v206 = vld [vmem:[%s172 + $0xc0] sm:$0xff]
      %v207 = vld [vmem:[%s172 + $0xc8] sm:$0xff]
      %v208 = vld [vmem:[%s172 + $0xd0] sm:$0xff]
      %v209 = vld [vmem:[%s172 + $0xd8] sm:$0xff]
      %v210 = vld [vmem:[%s172 + $0xe0] sm:$0xff]
      %v211 = vld [vmem:[%s172 + $0xe8] sm:$0xff]
      %v212 = vld [vmem:[%s172 + $0xf0] sm:$0xff]
      %v213 = vld [vmem:[%s172 + $0xf8] sm:$0xff]
      %vm214 = vcmask 31744
      %215 = vst.msk [vmem:[#allocation2] sm:$0xff] %vm214, 0.0
      %216 = vst.msk [vmem:[#allocation2 + $0x8] sm:$0xff] %vm214, 0.0
      %vm217 = vcmask 25600
      %218 = vst.msk [vmem:[#allocation2 + $0x10] sm:$0x3] %vm217, 0.0
      %s219 = scalar_lea.vmem [#allocation2], 408
      %220 = vst.msk [vmem:[%s219] sm:$0xff] %vm214, 0.0
      %221 = vst.msk [vmem:[%s219 + $0x8] sm:$0xff] %vm214, 0.0
      %222 = vst.msk [vmem:[%s219 + $0x10] sm:$0x3] %vm217, 0.0
      %vm223 = vcmask 24576
      %224 = vst.msk [vmem:[#allocation2] sm:$0x1] %vm223, 0.0
      %225 = vst.msk [vmem:[#allocation2 + $0x18] sm:$0x1] %vm223, 0.0
      %226 = vst.msk [vmem:[#allocation2 + $0x30] sm:$0x1] %vm223, 0.0
      %227 = vst.msk [vmem:[#allocation2 + $0x48] sm:$0x1] %vm223, 0.0
      %228 = vst.msk [vmem:[#allocation2 + $0x60] sm:$0x1] %vm223, 0.0
      %229 = vst.msk [vmem:[#allocation2 + $0x78] sm:$0x1] %vm223, 0.0
      %230 = vst.msk [vmem:[#allocation2 + $0x90] sm:$0x1] %vm223, 0.0
      %231 = vst.msk [vmem:[#allocation2 + $0xa8] sm:$0x1] %vm223, 0.0
      %232 = vst.msk [vmem:[#allocation2 + $0xc0] sm:$0x1] %vm223, 0.0
      %233 = vst.msk [vmem:[#allocation2 + $0xd8] sm:$0x1] %vm223, 0.0
      %234 = vst.msk [vmem:[#allocation2 + $0xf0] sm:$0x1] %vm223, 0.0
      %235 = vst.msk [vmem:[#allocation2 + $0x108] sm:$0x1] %vm223, 0.0
      %236 = vst.msk [vmem:[#allocation2 + $0x120] sm:$0x1] %vm223, 0.0
      %237 = vst.msk [vmem:[#allocation2 + $0x138] sm:$0x1] %vm223, 0.0
      %238 = vst.msk [vmem:[#allocation2 + $0x150] sm:$0x1] %vm223, 0.0
      %239 = vst.msk [vmem:[#allocation2 + $0x168] sm:$0x1] %vm223, 0.0
      %240 = vst.msk [vmem:[#allocation2 + $0x180] sm:$0x1] %vm223, 0.0
      %241 = vst.msk [vmem:[#allocation2 + $0x198] sm:$0x1] %vm223, 0.0
      %242 = vst.msk [vmem:[#allocation2 + $0x11] sm:$0x1] %vm223, 0.0
      %243 = vst.msk [vmem:[#allocation2 + $0x29] sm:$0x1] %vm223, 0.0
      %244 = vst.msk [vmem:[#allocation2 + $0x41] sm:$0x1] %vm223, 0.0
      %245 = vst.msk [vmem:[#allocation2 + $0x59] sm:$0x1] %vm223, 0.0
      %246 = vst.msk [vmem:[#allocation2 + $0x71] sm:$0x1] %vm223, 0.0
      %247 = vst.msk [vmem:[#allocation2 + $0x89] sm:$0x1] %vm223, 0.0
      %248 = vst.msk [vmem:[#allocation2 + $0xa1] sm:$0x1] %vm223, 0.0
      %249 = vst.msk [vmem:[#allocation2 + $0xb9] sm:$0x1] %vm223, 0.0
      %250 = vst.msk [vmem:[#allocation2 + $0xd1] sm:$0x1] %vm223, 0.0
      %251 = vst.msk [vmem:[#allocation2 + $0xe9] sm:$0x1] %vm223, 0.0
      %252 = vst.msk [vmem:[#allocation2 + $0x101] sm:$0x1] %vm223, 0.0
      %253 = vst.msk [vmem:[#allocation2 + $0x119] sm:$0x1] %vm223, 0.0
      %254 = vst.msk [vmem:[#allocation2 + $0x131] sm:$0x1] %vm223, 0.0
      %255 = vst.msk [vmem:[#allocation2 + $0x149] sm:$0x1] %vm223, 0.0
      %256 = vst.msk [vmem:[#allocation2 + $0x161] sm:$0x1] %vm223, 0.0
      %257 = vst.msk [vmem:[#allocation2 + $0x179] sm:$0x1] %vm223, 0.0
      %258 = vst.msk [vmem:[#allocation2 + $0x191] sm:$0x1] %vm223, 0.0
      %259 = vst.msk [vmem:[#allocation2 + $0x1a9] sm:$0x1] %vm223, 0.0
      %s260 = scalar_lea.vmem [#allocation2], 24
      %261 = vst.msk [vmem:[%s260 + $0x1] sm:$0xff] %vm214, %v182
      %262 = vst.msk [vmem:[%s260 + $0x9] sm:$0xff] %vm214, %v183
      %263 = vst.msk [vmem:[%s260 + $0x19] sm:$0xff] %vm214, %v184
      %264 = vst.msk [vmem:[%s260 + $0x21] sm:$0xff] %vm214, %v185
      %265 = vst.msk [vmem:[%s260 + $0x31] sm:$0xff] %vm214, %v186
      %266 = vst.msk [vmem:[%s260 + $0x39] sm:$0xff] %vm214, %v187
      %267 = vst.msk [vmem:[%s260 + $0x49] sm:$0xff] %vm214, %v188
      %268 = vst.msk [vmem:[%s260 + $0x51] sm:$0xff] %vm214, %v189
      %269 = vst.msk [vmem:[%s260 + $0x61] sm:$0xff] %vm214, %v190
      %270 = vst.msk [vmem:[%s260 + $0x69] sm:$0xff] %vm214, %v191
      %271 = vst.msk [vmem:[%s260 + $0x79] sm:$0xff] %vm214, %v192
      %272 = vst.msk [vmem:[%s260 + $0x81] sm:$0xff] %vm214, %v193
      %273 = vst.msk [vmem:[%s260 + $0x91] sm:$0xff] %vm214, %v194
      %274 = vst.msk [vmem:[%s260 + $0x99] sm:$0xff] %vm214, %v195
      %275 = vst.msk [vmem:[%s260 + $0xa9] sm:$0xff] %vm214, %v196
      %276 = vst.msk [vmem:[%s260 + $0xb1] sm:$0xff] %vm214, %v197
      %277 = vst.msk [vmem:[%s260 + $0xc1] sm:$0xff] %vm214, %v198
      %278 = vst.msk [vmem:[%s260 + $0xc9] sm:$0xff] %vm214, %v199
      %279 = vst.msk [vmem:[%s260 + $0xd9] sm:$0xff] %vm214, %v200
      %280 = vst.msk [vmem:[%s260 + $0xe1] sm:$0xff] %vm214, %v201
      %281 = vst.msk [vmem:[%s260 + $0xf1] sm:$0xff] %vm214, %v202
      %282 = vst.msk [vmem:[%s260 + $0xf9] sm:$0xff] %vm214, %v203
      %283 = vst.msk [vmem:[%s260 + $0x109] sm:$0xff] %vm214, %v204
      %284 = vst.msk [vmem:[%s260 + $0x111] sm:$0xff] %vm214, %v205
      %285 = vst.msk [vmem:[%s260 + $0x121] sm:$0xff] %vm214, %v206
      %286 = vst.msk [vmem:[%s260 + $0x129] sm:$0xff] %vm214, %v207
      %287 = vst.msk [vmem:[%s260 + $0x139] sm:$0xff] %vm214, %v208
      %288 = vst.msk [vmem:[%s260 + $0x141] sm:$0xff] %vm214, %v209
      %289 = vst.msk [vmem:[%s260 + $0x151] sm:$0xff] %vm214, %v210
      %290 = vst.msk [vmem:[%s260 + $0x159] sm:$0xff] %vm214, %v211
      %291 = vst.msk [vmem:[%s260 + $0x169] sm:$0xff] %vm214, %v212
      %292 = vst.msk [vmem:[%s260 + $0x171] sm:$0xff] %vm214, %v213
      %v293 = vld [vmem:[#allocation2] sm:$0xff]
      %v294 = vld [vmem:[#allocation2 + $0x8] sm:$0xff]
      %v295 = vld [vmem:[#allocation2 + $0x18] sm:$0xff]
      %v296 = vld [vmem:[#allocation2 + $0x20] sm:$0xff]
      %v297 = vld [vmem:[#allocation2 + $0x30] sm:$0xff]
      %v298 = vld [vmem:[#allocation2 + $0x38] sm:$0xff]
      %v299 = vld [vmem:[#allocation2 + $0x48] sm:$0xff]
      %v300 = vld [vmem:[#allocation2 + $0x50] sm:$0xff]
      %v301 = vld [vmem:[#allocation2 + $0x60] sm:$0xff]
      %v302 = vld [vmem:[#allocation2 + $0x68] sm:$0xff]
      %v303 = vld [vmem:[#allocation2 + $0x78] sm:$0xff]
      %v304 = vld [vmem:[#allocation2 + $0x80] sm:$0xff]
      %v305 = vld [vmem:[#allocation2 + $0x90] sm:$0xff]
      %v306 = vld [vmem:[#allocation2 + $0x98] sm:$0xff]
      %v307 = vld [vmem:[#allocation2 + $0xa8] sm:$0xff]
      %v308 = vld [vmem:[#allocation2 + $0xb0] sm:$0xff]
      %v309 = vld [vmem:[#allocation2 + $0xc0] sm:$0xff]
      %v310 = vld [vmem:[#allocation2 + $0xc8] sm:$0xff]
      %v311 = vld [vmem:[#allocation2 + $0xd8] sm:$0xff]
      %v312 = vld [vmem:[#allocation2 + $0xe0] sm:$0xff]
      %v313 = vld [vmem:[#allocation2 + $0xf0] sm:$0xff]
      %v314 = vld [vmem:[#allocation2 + $0xf8] sm:$0xff]
      %v315 = vld [vmem:[#allocation2 + $0x108] sm:$0xff]
      %v316 = vld [vmem:[#allocation2 + $0x110] sm:$0xff]
      %v317 = vld [vmem:[#allocation2 + $0x120] sm:$0xff]
      %v318 = vld [vmem:[#allocation2 + $0x128] sm:$0xff]
      %v319 = vld [vmem:[#allocation2 + $0x138] sm:$0xff]
      %v320 = vld [vmem:[#allocation2 + $0x140] sm:$0xff]
      %v321 = vld [vmem:[#allocation2 + $0x150] sm:$0xff]
      %v322 = vld [vmem:[#allocation2 + $0x158] sm:$0xff]
      %v323 = vld [vmem:[#allocation2 + $0x168] sm:$0xff]
      %v324 = vld [vmem:[#allocation2 + $0x170] sm:$0xff]
      %v325 = vld [vmem:[#allocation2 + $0x1] sm:$0xff]
      %v326 = vld [vmem:[#allocation2 + $0x9] sm:$0xff]
      %v327 = vld [vmem:[#allocation2 + $0x19] sm:$0xff]
      %v328 = vld [vmem:[#allocation2 + $0x21] sm:$0xff]
      %v329 = vld [vmem:[#allocation2 + $0x31] sm:$0xff]
      %v330 = vld [vmem:[#allocation2 + $0x39] sm:$0xff]
      %v331 = vld [vmem:[#allocation2 + $0x49] sm:$0xff]
      %v332 = vld [vmem:[#allocation2 + $0x51] sm:$0xff]
      %v333 = vld [vmem:[#allocation2 + $0x61] sm:$0xff]
      %v334 = vld [vmem:[#allocation2 + $0x69] sm:$0xff]
      %v335 = vld [vmem:[#allocation2 + $0x79] sm:$0xff]
      %v336 = vld [vmem:[#allocation2 + $0x81] sm:$0xff]
      %v337 = vld [vmem:[#allocation2 + $0x91] sm:$0xff]
      %v338 = vld [vmem:[#allocation2 + $0x99] sm:$0xff]
      %v339 = vld [vmem:[#allocation2 + $0xa9] sm:$0xff]
      %v340 = vld [vmem:[#allocation2 + $0xb1] sm:$0xff]
      %v341 = vld [vmem:[#allocation2 + $0xc1] sm:$0xff]
      %v342 = vld [vmem:[#allocation2 + $0xc9] sm:$0xff]
      %v343 = vld [vmem:[#allocation2 + $0xd9] sm:$0xff]
      %v344 = vld [vmem:[#allocation2 + $0xe1] sm:$0xff]
      %v345 = vld [vmem:[#allocation2 + $0xf1] sm:$0xff]
      %v346 = vld [vmem:[#allocation2 + $0xf9] sm:$0xff]
      %v347 = vld [vmem:[#allocation2 + $0x109] sm:$0xff]
      %v348 = vld [vmem:[#allocation2 + $0x111] sm:$0xff]
      %v349 = vld [vmem:[#allocation2 + $0x121] sm:$0xff]
      %v350 = vld [vmem:[#allocation2 + $0x129] sm:$0xff]
      %v351 = vld [vmem:[#allocation2 + $0x139] sm:$0xff]
      %v352 = vld [vmem:[#allocation2 + $0x141] sm:$0xff]
      %v353 = vld [vmem:[#allocation2 + $0x151] sm:$0xff]
      %v354 = vld [vmem:[#allocation2 + $0x159] sm:$0xff]
      %v355 = vld [vmem:[#allocation2 + $0x169] sm:$0xff]
      %v356 = vld [vmem:[#allocation2 + $0x171] sm:$0xff]
      %v357 = vld [vmem:[#allocation2 + $0x2] sm:$0xff]
      %v358 = vld [vmem:[#allocation2 + $0xa] sm:$0xff]
      %v359 = vld [vmem:[#allocation2 + $0x1a] sm:$0xff]
      %v360 = vld [vmem:[#allocation2 + $0x22] sm:$0xff]
      %v361 = vld [vmem:[#allocation2 + $0x32] sm:$0xff]
      %v362 = vld [vmem:[#allocation2 + $0x3a] sm:$0xff]
      %v363 = vld [vmem:[#allocation2 + $0x4a] sm:$0xff]
      %v364 = vld [vmem:[#allocation2 + $0x52] sm:$0xff]
      %v365 = vld [vmem:[#allocation2 + $0x62] sm:$0xff]
      %v366 = vld [vmem:[#allocation2 + $0x6a] sm:$0xff]
      %v367 = vld [vmem:[#allocation2 + $0x7a] sm:$0xff]
      %v368 = vld [vmem:[#allocation2 + $0x82] sm:$0xff]
      %v369 = vld [vmem:[#allocation2 + $0x92] sm:$0xff]
      %v370 = vld [vmem:[#allocation2 + $0x9a] sm:$0xff]
      %v371 = vld [vmem:[#allocation2 + $0xaa] sm:$0xff]
      %v372 = vld [vmem:[#allocation2 + $0xb2] sm:$0xff]
      %v373 = vld [vmem:[#allocation2 + $0xc2] sm:$0xff]
      %v374 = vld [vmem:[#allocation2 + $0xca] sm:$0xff]
      %v375 = vld [vmem:[#allocation2 + $0xda] sm:$0xff]
      %v376 = vld [vmem:[#allocation2 + $0xe2] sm:$0xff]
      %v377 = vld [vmem:[#allocation2 + $0xf2] sm:$0xff]
      %v378 = vld [vmem:[#allocation2 + $0xfa] sm:$0xff]
      %v379 = vld [vmem:[#allocation2 + $0x10a] sm:$0xff]
      %v380 = vld [vmem:[#allocation2 + $0x112] sm:$0xff]
      %v381 = vld [vmem:[#allocation2 + $0x122] sm:$0xff]
      %v382 = vld [vmem:[#allocation2 + $0x12a] sm:$0xff]
      %v383 = vld [vmem:[#allocation2 + $0x13a] sm:$0xff]
      %v384 = vld [vmem:[#allocation2 + $0x142] sm:$0xff]
      %v385 = vld [vmem:[#allocation2 + $0x152] sm:$0xff]
      %v386 = vld [vmem:[#allocation2 + $0x15a] sm:$0xff]
      %v387 = vld [vmem:[#allocation2 + $0x16a] sm:$0xff]
      %v388 = vld [vmem:[#allocation2 + $0x172] sm:$0xff]
      %v389 = vld [vmem:[%s260] sm:$0xff]
      %v390 = vld [vmem:[%s260 + $0x8] sm:$0xff]
      %v391 = vld [vmem:[%s260 + $0x18] sm:$0xff]
      %v392 = vld [vmem:[%s260 + $0x20] sm:$0xff]
      %v393 = vld [vmem:[%s260 + $0x30] sm:$0xff]
      %v394 = vld [vmem:[%s260 + $0x38] sm:$0xff]
      %v395 = vld [vmem:[%s260 + $0x48] sm:$0xff]
      %v396 = vld [vmem:[%s260 + $0x50] sm:$0xff]
      %v397 = vld [vmem:[%s260 + $0x60] sm:$0xff]
      %v398 = vld [vmem:[%s260 + $0x68] sm:$0xff]
      %v399 = vld [vmem:[%s260 + $0x78] sm:$0xff]
      %v400 = vld [vmem:[%s260 + $0x80] sm:$0xff]
      %v401 = vld [vmem:[%s260 + $0x90] sm:$0xff]
      %v402 = vld [vmem:[%s260 + $0x98] sm:$0xff]
      %v403 = vld [vmem:[%s260 + $0xa8] sm:$0xff]
      %v404 = vld [vmem:[%s260 + $0xb0] sm:$0xff]
      %v405 = vld [vmem:[%s260 + $0xc0] sm:$0xff]
      %v406 = vld [vmem:[%s260 + $0xc8] sm:$0xff]
      %v407 = vld [vmem:[%s260 + $0xd8] sm:$0xff]
      %v408 = vld [vmem:[%s260 + $0xe0] sm:$0xff]
      %v409 = vld [vmem:[%s260 + $0xf0] sm:$0xff]
      %v410 = vld [vmem:[%s260 + $0xf8] sm:$0xff]
      %v411 = vld [vmem:[%s260 + $0x108] sm:$0xff]
      %v412 = vld [vmem:[%s260 + $0x110] sm:$0xff]
      %v413 = vld [vmem:[%s260 + $0x120] sm:$0xff]
      %v414 = vld [vmem:[%s260 + $0x128] sm:$0xff]
      %v415 = vld [vmem:[%s260 + $0x138] sm:$0xff]
      %v416 = vld [vmem:[%s260 + $0x140] sm:$0xff]
      %v417 = vld [vmem:[%s260 + $0x150] sm:$0xff]
      %v418 = vld [vmem:[%s260 + $0x158] sm:$0xff]
      %v419 = vld [vmem:[%s260 + $0x168] sm:$0xff]
      %v420 = vld [vmem:[%s260 + $0x170] sm:$0xff]
      %v421 = vld [vmem:[%s260 + $0x1] sm:$0xff]
      %v422 = vld [vmem:[%s260 + $0x9] sm:$0xff]
      %v423 = vld [vmem:[%s260 + $0x19] sm:$0xff]
      %v424 = vld [vmem:[%s260 + $0x21] sm:$0xff]
      %v425 = vld [vmem:[%s260 + $0x31] sm:$0xff]
      %v426 = vld [vmem:[%s260 + $0x39] sm:$0xff]
      %v427 = vld [vmem:[%s260 + $0x49] sm:$0xff]
      %v428 = vld [vmem:[%s260 + $0x51] sm:$0xff]
      %v429 = vld [vmem:[%s260 + $0x61] sm:$0xff]
      %v430 = vld [vmem:[%s260 + $0x69] sm:$0xff]
      %v431 = vld [vmem:[%s260 + $0x79] sm:$0xff]
      %v432 = vld [vmem:[%s260 + $0x81] sm:$0xff]
      %v433 = vld [vmem:[%s260 + $0x91] sm:$0xff]
      %v434 = vld [vmem:[%s260 + $0x99] sm:$0xff]
      %v435 = vld [vmem:[%s260 + $0xa9] sm:$0xff]
      %v436 = vld [vmem:[%s260 + $0xb1] sm:$0xff]
      %v437 = vld [vmem:[%s260 + $0xc1] sm:$0xff]
      %v438 = vld [vmem:[%s260 + $0xc9] sm:$0xff]
      %v439 = vld [vmem:[%s260 + $0xd9] sm:$0xff]
      %v440 = vld [vmem:[%s260 + $0xe1] sm:$0xff]
      %v441 = vld [vmem:[%s260 + $0xf1] sm:$0xff]
      %v442 = vld [vmem:[%s260 + $0xf9] sm:$0xff]
      %v443 = vld [vmem:[%s260 + $0x109] sm:$0xff]
      %v444 = vld [vmem:[%s260 + $0x111] sm:$0xff]
      %v445 = vld [vmem:[%s260 + $0x121] sm:$0xff]
      %v446 = vld [vmem:[%s260 + $0x129] sm:$0xff]
      %v447 = vld [vmem:[%s260 + $0x139] sm:$0xff]
      %v448 = vld [vmem:[%s260 + $0x141] sm:$0xff]
      %v449 = vld [vmem:[%s260 + $0x151] sm:$0xff]
      %v450 = vld [vmem:[%s260 + $0x159] sm:$0xff]
      %v451 = vld [vmem:[%s260 + $0x169] sm:$0xff]
      %v452 = vld [vmem:[%s260 + $0x171] sm:$0xff]
      %v453 = vld [vmem:[%s260 + $0x2] sm:$0xff]
      %v454 = vld [vmem:[%s260 + $0xa] sm:$0xff]
      %v455 = vld [vmem:[%s260 + $0x1a] sm:$0xff]
      %v456 = vld [vmem:[%s260 + $0x22] sm:$0xff]
      %v457 = vld [vmem:[%s260 + $0x32] sm:$0xff]
      %v458 = vld [vmem:[%s260 + $0x3a] sm:$0xff]
      %v459 = vld [vmem:[%s260 + $0x4a] sm:$0xff]
      %v460 = vld [vmem:[%s260 + $0x52] sm:$0xff]
      %v461 = vld [vmem:[%s260 + $0x62] sm:$0xff]
      %v462 = vld [vmem:[%s260 + $0x6a] sm:$0xff]
      %v463 = vld [vmem:[%s260 + $0x7a] sm:$0xff]
      %v464 = vld [vmem:[%s260 + $0x82] sm:$0xff]
      %v465 = vld [vmem:[%s260 + $0x92] sm:$0xff]
      %v466 = vld [vmem:[%s260 + $0x9a] sm:$0xff]
      %v467 = vld [vmem:[%s260 + $0xaa] sm:$0xff]
      %v468 = vld [vmem:[%s260 + $0xb2] sm:$0xff]
      %v469 = vld [vmem:[%s260 + $0xc2] sm:$0xff]
      %v470 = vld [vmem:[%s260 + $0xca] sm:$0xff]
      %v471 = vld [vmem:[%s260 + $0xda] sm:$0xff]
      %v472 = vld [vmem:[%s260 + $0xe2] sm:$0xff]
      %v473 = vld [vmem:[%s260 + $0xf2] sm:$0xff]
      %v474 = vld [vmem:[%s260 + $0xfa] sm:$0xff]
      %v475 = vld [vmem:[%s260 + $0x10a] sm:$0xff]
      %v476 = vld [vmem:[%s260 + $0x112] sm:$0xff]
      %v477 = vld [vmem:[%s260 + $0x122] sm:$0xff]
      %v478 = vld [vmem:[%s260 + $0x12a] sm:$0xff]
      %v479 = vld [vmem:[%s260 + $0x13a] sm:$0xff]
      %v480 = vld [vmem:[%s260 + $0x142] sm:$0xff]
      %v481 = vld [vmem:[%s260 + $0x152] sm:$0xff]
      %v482 = vld [vmem:[%s260 + $0x15a] sm:$0xff]
      %v483 = vld [vmem:[%s260 + $0x16a] sm:$0xff]
      %v484 = vld [vmem:[%s260 + $0x172] sm:$0xff]
      %s485 = scalar_lea.vmem [#allocation2], 48
      %v486 = vld [vmem:[%s485] sm:$0xff]
      %v487 = vld [vmem:[%s485 + $0x8] sm:$0xff]
      %v488 = vld [vmem:[%s485 + $0x18] sm:$0xff]
      %v489 = vld [vmem:[%s485 + $0x20] sm:$0xff]
      %v490 = vld [vmem:[%s485 + $0x30] sm:$0xff]
      %v491 = vld [vmem:[%s485 + $0x38] sm:$0xff]
      %v492 = vld [vmem:[%s485 + $0x48] sm:$0xff]
      %v493 = vld [vmem:[%s485 + $0x50] sm:$0xff]
      %v494 = vld [vmem:[%s485 + $0x60] sm:$0xff]
      %v495 = vld [vmem:[%s485 + $0x68] sm:$0xff]
      %v496 = vld [vmem:[%s485 + $0x78] sm:$0xff]
      %v497 = vld [vmem:[%s485 + $0x80] sm:$0xff]
      %v498 = vld [vmem:[%s485 + $0x90] sm:$0xff]
      %v499 = vld [vmem:[%s485 + $0x98] sm:$0xff]
      %v500 = vld [vmem:[%s485 + $0xa8] sm:$0xff]
      %v501 = vld [vmem:[%s485 + $0xb0] sm:$0xff]
      %v502 = vld [vmem:[%s485 + $0xc0] sm:$0xff]
      %v503 = vld [vmem:[%s485 + $0xc8] sm:$0xff]
      %v504 = vld [vmem:[%s485 + $0xd8] sm:$0xff]
      %v505 = vld [vmem:[%s485 + $0xe0] sm:$0xff]
      %v506 = vld [vmem:[%s485 + $0xf0] sm:$0xff]
      %v507 = vld [vmem:[%s485 + $0xf8] sm:$0xff]
      %v508 = vld [vmem:[%s485 + $0x108] sm:$0xff]
      %v509 = vld [vmem:[%s485 + $0x110] sm:$0xff]
      %v510 = vld [vmem:[%s485 + $0x120] sm:$0xff]
      %v511 = vld [vmem:[%s485 + $0x128] sm:$0xff]
      %v512 = vld [vmem:[%s485 + $0x138] sm:$0xff]
      %v513 = vld [vmem:[%s485 + $0x140] sm:$0xff]
      %v514 = vld [vmem:[%s485 + $0x150] sm:$0xff]
      %v515 = vld [vmem:[%s485 + $0x158] sm:$0xff]
      %v516 = vld [vmem:[%s485 + $0x168] sm:$0xff]
      %v517 = vld [vmem:[%s485 + $0x170] sm:$0xff]
      %v518 = vld [vmem:[%s485 + $0x1] sm:$0xff]
      %v519 = vld [vmem:[%s485 + $0x9] sm:$0xff]
      %v520 = vld [vmem:[%s485 + $0x19] sm:$0xff]
      %v521 = vld [vmem:[%s485 + $0x21] sm:$0xff]
      %v522 = vld [vmem:[%s485 + $0x31] sm:$0xff]
      %v523 = vld [vmem:[%s485 + $0x39] sm:$0xff]
      %v524 = vld [vmem:[%s485 + $0x49] sm:$0xff]
      %v525 = vld [vmem:[%s485 + $0x51] sm:$0xff]
      %v526 = vld [vmem:[%s485 + $0x61] sm:$0xff]
      %v527 = vld [vmem:[%s485 + $0x69] sm:$0xff]
      %v528 = vld [vmem:[%s485 + $0x79] sm:$0xff]
      %v529 = vld [vmem:[%s485 + $0x81] sm:$0xff]
      %v530 = vld [vmem:[%s485 + $0x91] sm:$0xff]
      %v531 = vld [vmem:[%s485 + $0x99] sm:$0xff]
      %v532 = vld [vmem:[%s485 + $0xa9] sm:$0xff]
      %v533 = vld [vmem:[%s485 + $0xb1] sm:$0xff]
      %v534 = vld [vmem:[%s485 + $0xc1] sm:$0xff]
      %v535 = vld [vmem:[%s485 + $0xc9] sm:$0xff]
      %v536 = vld [vmem:[%s485 + $0xd9] sm:$0xff]
      %v537 = vld [vmem:[%s485 + $0xe1] sm:$0xff]
      %v538 = vld [vmem:[%s485 + $0xf1] sm:$0xff]
      %v539 = vld [vmem:[%s485 + $0xf9] sm:$0xff]
      %v540 = vld [vmem:[%s485 + $0x109] sm:$0xff]
      %v541 = vld [vmem:[%s485 + $0x111] sm:$0xff]
      %v542 = vld [vmem:[%s485 + $0x121] sm:$0xff]
      %v543 = vld [vmem:[%s485 + $0x129] sm:$0xff]
      %v544 = vld [vmem:[%s485 + $0x139] sm:$0xff]
      %v545 = vld [vmem:[%s485 + $0x141] sm:$0xff]
      %v546 = vld [vmem:[%s485 + $0x151] sm:$0xff]
      %v547 = vld [vmem:[%s485 + $0x159] sm:$0xff]
      %v548 = vld [vmem:[%s485 + $0x169] sm:$0xff]
      %v549 = vld [vmem:[%s485 + $0x171] sm:$0xff]
      %v550 = vld [vmem:[%s485 + $0x2] sm:$0xff]
      %v551 = vld [vmem:[%s485 + $0xa] sm:$0xff]
      %v552 = vld [vmem:[%s485 + $0x1a] sm:$0xff]
      %v553 = vld [vmem:[%s485 + $0x22] sm:$0xff]
      %v554 = vld [vmem:[%s485 + $0x32] sm:$0xff]
      %v555 = vld [vmem:[%s485 + $0x3a] sm:$0xff]
      %v556 = vld [vmem:[%s485 + $0x4a] sm:$0xff]
      %v557 = vld [vmem:[%s485 + $0x52] sm:$0xff]
      %v558 = vld [vmem:[%s485 + $0x62] sm:$0xff]
      %v559 = vld [vmem:[%s485 + $0x6a] sm:$0xff]
      %v560 = vld [vmem:[%s485 + $0x7a] sm:$0xff]
      %v561 = vld [vmem:[%s485 + $0x82] sm:$0xff]
      %v562 = vld [vmem:[%s485 + $0x92] sm:$0xff]
      %v563 = vld [vmem:[%s485 + $0x9a] sm:$0xff]
      %v564 = vld [vmem:[%s485 + $0xaa] sm:$0xff]
      %v565 = vld [vmem:[%s485 + $0xb2] sm:$0xff]
      %v566 = vld [vmem:[%s485 + $0xc2] sm:$0xff]
      %v567 = vld [vmem:[%s485 + $0xca] sm:$0xff]
      %v568 = vld [vmem:[%s485 + $0xda] sm:$0xff]
      %v569 = vld [vmem:[%s485 + $0xe2] sm:$0xff]
      %v570 = vld [vmem:[%s485 + $0xf2] sm:$0xff]
      %v571 = vld [vmem:[%s485 + $0xfa] sm:$0xff]
      %v572 = vld [vmem:[%s485 + $0x10a] sm:$0xff]
      %v573 = vld [vmem:[%s485 + $0x112] sm:$0xff]
      %v574 = vld [vmem:[%s485 + $0x122] sm:$0xff]
      %v575 = vld [vmem:[%s485 + $0x12a] sm:$0xff]
      %v576 = vld [vmem:[%s485 + $0x13a] sm:$0xff]
      %v577 = vld [vmem:[%s485 + $0x142] sm:$0xff]
      %v578 = vld [vmem:[%s485 + $0x152] sm:$0xff]
      %v579 = vld [vmem:[%s485 + $0x15a] sm:$0xff]
      %v580 = vld [vmem:[%s485 + $0x16a] sm:$0xff]
      %v581 = vld [vmem:[%s485 + $0x172] sm:$0xff]
      %614 = vrot.lane.b32.xlu0 %v325, 4
      %v615 = vpop.permute.xlu0 %614
      %616 = vrot.lane.b32.xlu0 %v326, 4
      %v617 = vpop.permute.xlu0 %616
      %618 = vrot.lane.b32.xlu0 %v327, 4
      %v619 = vpop.permute.xlu0 %618
      %620 = vrot.lane.b32.xlu0 %v328, 4
      %v621 = vpop.permute.xlu0 %620
      %622 = vrot.lane.b32.xlu0 %v329, 4
      %v623 = vpop.permute.xlu0 %622
      %624 = vrot.lane.b32.xlu0 %v330, 4
      %v625 = vpop.permute.xlu0 %624
      %626 = vrot.lane.b32.xlu0 %v331, 4
      %v627 = vpop.permute.xlu0 %626
      %628 = vrot.lane.b32.xlu0 %v332, 4
      %v629 = vpop.permute.xlu0 %628
      %630 = vrot.lane.b32.xlu0 %v333, 4
      %v631 = vpop.permute.xlu0 %630
      %632 = vrot.lane.b32.xlu0 %v334, 4
      %v633 = vpop.permute.xlu0 %632
      %634 = vrot.lane.b32.xlu0 %v335, 4
      %v635 = vpop.permute.xlu0 %634
      %636 = vrot.lane.b32.xlu0 %v336, 4
      %v637 = vpop.permute.xlu0 %636
      %638 = vrot.lane.b32.xlu0 %v337, 4
      %v639 = vpop.permute.xlu0 %638
      %640 = vrot.lane.b32.xlu0 %v338, 4
      %v641 = vpop.permute.xlu0 %640
      %642 = vrot.lane.b32.xlu0 %v339, 4
      %v643 = vpop.permute.xlu0 %642
      %644 = vrot.lane.b32.xlu0 %v340, 4
      %v645 = vpop.permute.xlu0 %644
      %646 = vrot.lane.b32.xlu0 %v341, 4
      %v647 = vpop.permute.xlu0 %646
      %648 = vrot.lane.b32.xlu0 %v342, 4
      %v649 = vpop.permute.xlu0 %648
      %650 = vrot.lane.b32.xlu0 %v343, 4
      %v651 = vpop.permute.xlu0 %650
      %652 = vrot.lane.b32.xlu0 %v344, 4
      %v653 = vpop.permute.xlu0 %652
      %654 = vrot.lane.b32.xlu0 %v345, 4
      %v655 = vpop.permute.xlu0 %654
      %656 = vrot.lane.b32.xlu0 %v346, 4
      %v657 = vpop.permute.xlu0 %656
      %658 = vrot.lane.b32.xlu0 %v347, 4
      %v659 = vpop.permute.xlu0 %658
      %660 = vrot.lane.b32.xlu0 %v348, 4
      %v661 = vpop.permute.xlu0 %660
      %662 = vrot.lane.b32.xlu0 %v349, 4
      %v663 = vpop.permute.xlu0 %662
      %664 = vrot.lane.b32.xlu0 %v350, 4
      %v665 = vpop.permute.xlu0 %664
      %666 = vrot.lane.b32.xlu0 %v351, 4
      %v667 = vpop.permute.xlu0 %666
      %668 = vrot.lane.b32.xlu0 %v352, 4
      %v669 = vpop.permute.xlu0 %668
      %670 = vrot.lane.b32.xlu0 %v353, 4
      %v671 = vpop.permute.xlu0 %670
      %672 = vrot.lane.b32.xlu0 %v354, 4
      %v673 = vpop.permute.xlu0 %672
      %674 = vrot.lane.b32.xlu0 %v355, 4
      %v675 = vpop.permute.xlu0 %674
      %676 = vrot.lane.b32.xlu0 %v356, 4
      %v677 = vpop.permute.xlu0 %676
      %742 = vrot.lane.b32.xlu0 %v357, 8
      %v743 = vpop.permute.xlu0 %742
      %744 = vrot.lane.b32.xlu0 %v358, 8
      %v745 = vpop.permute.xlu0 %744
      %746 = vrot.lane.b32.xlu0 %v359, 8
      %v747 = vpop.permute.xlu0 %746
      %748 = vrot.lane.b32.xlu0 %v360, 8
      %v749 = vpop.permute.xlu0 %748
      %750 = vrot.lane.b32.xlu0 %v361, 8
      %v751 = vpop.permute.xlu0 %750
      %752 = vrot.lane.b32.xlu0 %v362, 8
      %v753 = vpop.permute.xlu0 %752
      %754 = vrot.lane.b32.xlu0 %v363, 8
      %v755 = vpop.permute.xlu0 %754
      %756 = vrot.lane.b32.xlu0 %v364, 8
      %v757 = vpop.permute.xlu0 %756
      %758 = vrot.lane.b32.xlu0 %v365, 8
      %v759 = vpop.permute.xlu0 %758
      %760 = vrot.lane.b32.xlu0 %v366, 8
      %v761 = vpop.permute.xlu0 %760
      %762 = vrot.lane.b32.xlu0 %v367, 8
      %v763 = vpop.permute.xlu0 %762
      %764 = vrot.lane.b32.xlu0 %v368, 8
      %v765 = vpop.permute.xlu0 %764
      %766 = vrot.lane.b32.xlu0 %v369, 8
      %v767 = vpop.permute.xlu0 %766
      %768 = vrot.lane.b32.xlu0 %v370, 8
      %v769 = vpop.permute.xlu0 %768
      %770 = vrot.lane.b32.xlu0 %v371, 8
      %v771 = vpop.permute.xlu0 %770
      %772 = vrot.lane.b32.xlu0 %v372, 8
      %v773 = vpop.permute.xlu0 %772
      %774 = vrot.lane.b32.xlu0 %v373, 8
      %v775 = vpop.permute.xlu0 %774
      %776 = vrot.lane.b32.xlu0 %v374, 8
      %v777 = vpop.permute.xlu0 %776
      %778 = vrot.lane.b32.xlu0 %v375, 8
      %v779 = vpop.permute.xlu0 %778
      %780 = vrot.lane.b32.xlu0 %v376, 8
      %v781 = vpop.permute.xlu0 %780
      %782 = vrot.lane.b32.xlu0 %v377, 8
      %v783 = vpop.permute.xlu0 %782
      %784 = vrot.lane.b32.xlu0 %v378, 8
      %v785 = vpop.permute.xlu0 %784
      %786 = vrot.lane.b32.xlu0 %v379, 8
      %v787 = vpop.permute.xlu0 %786
      %788 = vrot.lane.b32.xlu0 %v380, 8
      %v789 = vpop.permute.xlu0 %788
      %790 = vrot.lane.b32.xlu0 %v381, 8
      %v791 = vpop.permute.xlu0 %790
      %792 = vrot.lane.b32.xlu0 %v382, 8
      %v793 = vpop.permute.xlu0 %792
      %794 = vrot.lane.b32.xlu0 %v383, 8
      %v795 = vpop.permute.xlu0 %794
      %796 = vrot.lane.b32.xlu0 %v384, 8
      %v797 = vpop.permute.xlu0 %796
      %798 = vrot.lane.b32.xlu0 %v385, 8
      %v799 = vpop.permute.xlu0 %798
      %800 = vrot.lane.b32.xlu0 %v386, 8
      %v801 = vpop.permute.xlu0 %800
      %802 = vrot.lane.b32.xlu0 %v387, 8
      %v803 = vpop.permute.xlu0 %802
      %804 = vrot.lane.b32.xlu0 %v388, 8
      %v805 = vpop.permute.xlu0 %804
      %870 = vrot.lane.b32.xlu0 %v389, 12
      %v871 = vpop.permute.xlu0 %870
      %872 = vrot.lane.b32.xlu0 %v390, 12
      %v873 = vpop.permute.xlu0 %872
      %874 = vrot.lane.b32.xlu0 %v391, 12
      %v875 = vpop.permute.xlu0 %874
      %876 = vrot.lane.b32.xlu0 %v392, 12
      %v877 = vpop.permute.xlu0 %876
      %878 = vrot.lane.b32.xlu0 %v393, 12
      %v879 = vpop.permute.xlu0 %878
      %880 = vrot.lane.b32.xlu0 %v394, 12
      %v881 = vpop.permute.xlu0 %880
      %882 = vrot.lane.b32.xlu0 %v395, 12
      %v883 = vpop.permute.xlu0 %882
      %884 = vrot.lane.b32.xlu0 %v396, 12
      %v885 = vpop.permute.xlu0 %884
      %886 = vrot.lane.b32.xlu0 %v397, 12
      %v887 = vpop.permute.xlu0 %886
      %888 = vrot.lane.b32.xlu0 %v398, 12
      %v889 = vpop.permute.xlu0 %888
      %890 = vrot.lane.b32.xlu0 %v399, 12
      %v891 = vpop.permute.xlu0 %890
      %892 = vrot.lane.b32.xlu0 %v400, 12
      %v893 = vpop.permute.xlu0 %892
      %894 = vrot.lane.b32.xlu0 %v401, 12
      %v895 = vpop.permute.xlu0 %894
      %896 = vrot.lane.b32.xlu0 %v402, 12
      %v897 = vpop.permute.xlu0 %896
      %898 = vrot.lane.b32.xlu0 %v403, 12
      %v899 = vpop.permute.xlu0 %898
      %900 = vrot.lane.b32.xlu0 %v404, 12
      %v901 = vpop.permute.xlu0 %900
      %902 = vrot.lane.b32.xlu0 %v405, 12
      %v903 = vpop.permute.xlu0 %902
      %904 = vrot.lane.b32.xlu0 %v406, 12
      %v905 = vpop.permute.xlu0 %904
      %906 = vrot.lane.b32.xlu0 %v407, 12
      %v907 = vpop.permute.xlu0 %906
      %908 = vrot.lane.b32.xlu0 %v408, 12
      %v909 = vpop.permute.xlu0 %908
      %910 = vrot.lane.b32.xlu0 %v409, 12
      %v911 = vpop.permute.xlu0 %910
      %912 = vrot.lane.b32.xlu0 %v410, 12
      %v913 = vpop.permute.xlu0 %912
      %914 = vrot.lane.b32.xlu0 %v411, 12
      %v915 = vpop.permute.xlu0 %914
      %916 = vrot.lane.b32.xlu0 %v412, 12
      %v917 = vpop.permute.xlu0 %916
      %918 = vrot.lane.b32.xlu0 %v413, 12
      %v919 = vpop.permute.xlu0 %918
      %920 = vrot.lane.b32.xlu0 %v414, 12
      %v921 = vpop.permute.xlu0 %920
      %922 = vrot.lane.b32.xlu0 %v415, 12
      %v923 = vpop.permute.xlu0 %922
      %924 = vrot.lane.b32.xlu0 %v416, 12
      %v925 = vpop.permute.xlu0 %924
      %926 = vrot.lane.b32.xlu0 %v417, 12
      %v927 = vpop.permute.xlu0 %926
      %928 = vrot.lane.b32.xlu0 %v418, 12
      %v929 = vpop.permute.xlu0 %928
      %930 = vrot.lane.b32.xlu0 %v419, 12
      %v931 = vpop.permute.xlu0 %930
      %932 = vrot.lane.b32.xlu0 %v420, 12
      %v933 = vpop.permute.xlu0 %932
      %998 = vrot.lane.b32.xlu0 %v421, 16
      %v999 = vpop.permute.xlu0 %998
      %1000 = vrot.lane.b32.xlu0 %v422, 16
      %v1001 = vpop.permute.xlu0 %1000
      %1002 = vrot.lane.b32.xlu0 %v423, 16
      %v1003 = vpop.permute.xlu0 %1002
      %1004 = vrot.lane.b32.xlu0 %v424, 16
      %v1005 = vpop.permute.xlu0 %1004
      %1006 = vrot.lane.b32.xlu0 %v425, 16
      %v1007 = vpop.permute.xlu0 %1006
      %1008 = vrot.lane.b32.xlu0 %v426, 16
      %v1009 = vpop.permute.xlu0 %1008
      %1010 = vrot.lane.b32.xlu0 %v427, 16
      %v1011 = vpop.permute.xlu0 %1010
      %1012 = vrot.lane.b32.xlu0 %v428, 16
      %v1013 = vpop.permute.xlu0 %1012
      %1014 = vrot.lane.b32.xlu0 %v429, 16
      %v1015 = vpop.permute.xlu0 %1014
      %1016 = vrot.lane.b32.xlu0 %v430, 16
      %v1017 = vpop.permute.xlu0 %1016
      %1018 = vrot.lane.b32.xlu0 %v431, 16
      %v1019 = vpop.permute.xlu0 %1018
      %1020 = vrot.lane.b32.xlu0 %v432, 16
      %v1021 = vpop.permute.xlu0 %1020
      %1022 = vrot.lane.b32.xlu0 %v433, 16
      %v1023 = vpop.permute.xlu0 %1022
      %1024 = vrot.lane.b32.xlu0 %v434, 16
      %v1025 = vpop.permute.xlu0 %1024
      %1026 = vrot.lane.b32.xlu0 %v435, 16
      %v1027 = vpop.permute.xlu0 %1026
      %1028 = vrot.lane.b32.xlu0 %v436, 16
      %v1029 = vpop.permute.xlu0 %1028
      %1030 = vrot.lane.b32.xlu0 %v437, 16
      %v1031 = vpop.permute.xlu0 %1030
      %1032 = vrot.lane.b32.xlu0 %v438, 16
      %v1033 = vpop.permute.xlu0 %1032
      %1034 = vrot.lane.b32.xlu0 %v439, 16
      %v1035 = vpop.permute.xlu0 %1034
      %1036 = vrot.lane.b32.xlu0 %v440, 16
      %v1037 = vpop.permute.xlu0 %1036
      %1038 = vrot.lane.b32.xlu0 %v441, 16
      %v1039 = vpop.permute.xlu0 %1038
      %1040 = vrot.lane.b32.xlu0 %v442, 16
      %v1041 = vpop.permute.xlu0 %1040
      %1042 = vrot.lane.b32.xlu0 %v443, 16
      %v1043 = vpop.permute.xlu0 %1042
      %1044 = vrot.lane.b32.xlu0 %v444, 16
      %v1045 = vpop.permute.xlu0 %1044
      %1046 = vrot.lane.b32.xlu0 %v445, 16
      %v1047 = vpop.permute.xlu0 %1046
      %1048 = vrot.lane.b32.xlu0 %v446, 16
      %v1049 = vpop.permute.xlu0 %1048
      %1050 = vrot.lane.b32.xlu0 %v447, 16
      %v1051 = vpop.permute.xlu0 %1050
      %1052 = vrot.lane.b32.xlu0 %v448, 16
      %v1053 = vpop.permute.xlu0 %1052
      %1054 = vrot.lane.b32.xlu0 %v449, 16
      %v1055 = vpop.permute.xlu0 %1054
      %1056 = vrot.lane.b32.xlu0 %v450, 16
      %v1057 = vpop.permute.xlu0 %1056
      %1058 = vrot.lane.b32.xlu0 %v451, 16
      %v1059 = vpop.permute.xlu0 %1058
      %1060 = vrot.lane.b32.xlu0 %v452, 16
      %v1061 = vpop.permute.xlu0 %1060
      %1126 = vrot.lane.b32.xlu0 %v453, 20
      %v1127 = vpop.permute.xlu0 %1126
      %1128 = vrot.lane.b32.xlu0 %v454, 20
      %v1129 = vpop.permute.xlu0 %1128
      %1130 = vrot.lane.b32.xlu0 %v455, 20
      %v1131 = vpop.permute.xlu0 %1130
      %1132 = vrot.lane.b32.xlu0 %v456, 20
      %v1133 = vpop.permute.xlu0 %1132
      %1134 = vrot.lane.b32.xlu0 %v457, 20
      %v1135 = vpop.permute.xlu0 %1134
      %1136 = vrot.lane.b32.xlu0 %v458, 20
      %v1137 = vpop.permute.xlu0 %1136
      %1138 = vrot.lane.b32.xlu0 %v459, 20
      %v1139 = vpop.permute.xlu0 %1138
      %1140 = vrot.lane.b32.xlu0 %v460, 20
      %v1141 = vpop.permute.xlu0 %1140
      %1142 = vrot.lane.b32.xlu0 %v461, 20
      %v1143 = vpop.permute.xlu0 %1142
      %1144 = vrot.lane.b32.xlu0 %v462, 20
      %v1145 = vpop.permute.xlu0 %1144
      %1146 = vrot.lane.b32.xlu0 %v463, 20
      %v1147 = vpop.permute.xlu0 %1146
      %1148 = vrot.lane.b32.xlu0 %v464, 20
      %v1149 = vpop.permute.xlu0 %1148
      %1150 = vrot.lane.b32.xlu0 %v465, 20
      %v1151 = vpop.permute.xlu0 %1150
      %1152 = vrot.lane.b32.xlu0 %v466, 20
      %v1153 = vpop.permute.xlu0 %1152
      %1154 = vrot.lane.b32.xlu0 %v467, 20
      %v1155 = vpop.permute.xlu0 %1154
      %1156 = vrot.lane.b32.xlu0 %v468, 20
      %v1157 = vpop.permute.xlu0 %1156
      %1158 = vrot.lane.b32.xlu0 %v469, 20
      %v1159 = vpop.permute.xlu0 %1158
      %1160 = vrot.lane.b32.xlu0 %v470, 20
      %v1161 = vpop.permute.xlu0 %1160
      %1162 = vrot.lane.b32.xlu0 %v471, 20
      %v1163 = vpop.permute.xlu0 %1162
      %1164 = vrot.lane.b32.xlu0 %v472, 20
      %v1165 = vpop.permute.xlu0 %1164
      %1166 = vrot.lane.b32.xlu0 %v473, 20
      %v1167 = vpop.permute.xlu0 %1166
      %1168 = vrot.lane.b32.xlu0 %v474, 20
      %v1169 = vpop.permute.xlu0 %1168
      %1170 = vrot.lane.b32.xlu0 %v475, 20
      %v1171 = vpop.permute.xlu0 %1170
      %1172 = vrot.lane.b32.xlu0 %v476, 20
      %v1173 = vpop.permute.xlu0 %1172
      %1174 = vrot.lane.b32.xlu0 %v477, 20
      %v1175 = vpop.permute.xlu0 %1174
      %1176 = vrot.lane.b32.xlu0 %v478, 20
      %v1177 = vpop.permute.xlu0 %1176
      %1178 = vrot.lane.b32.xlu0 %v479, 20
      %v1179 = vpop.permute.xlu0 %1178
      %1180 = vrot.lane.b32.xlu0 %v480, 20
      %v1181 = vpop.permute.xlu0 %1180
      %1182 = vrot.lane.b32.xlu0 %v481, 20
      %v1183 = vpop.permute.xlu0 %1182
      %1184 = vrot.lane.b32.xlu0 %v482, 20
      %v1185 = vpop.permute.xlu0 %1184
      %1186 = vrot.lane.b32.xlu0 %v483, 20
      %v1187 = vpop.permute.xlu0 %1186
      %1188 = vrot.lane.b32.xlu0 %v484, 20
      %v1189 = vpop.permute.xlu0 %1188
      %1254 = vrot.lane.b32.xlu0 %v486, 24
      %v1255 = vpop.permute.xlu0 %1254
      %1256 = vrot.lane.b32.xlu0 %v487, 24
      %v1257 = vpop.permute.xlu0 %1256
      %1258 = vrot.lane.b32.xlu0 %v488, 24
      %v1259 = vpop.permute.xlu0 %1258
      %1260 = vrot.lane.b32.xlu0 %v489, 24
      %v1261 = vpop.permute.xlu0 %1260
      %1262 = vrot.lane.b32.xlu0 %v490, 24
      %v1263 = vpop.permute.xlu0 %1262
      %1264 = vrot.lane.b32.xlu0 %v491, 24
      %v1265 = vpop.permute.xlu0 %1264
      %1266 = vrot.lane.b32.xlu0 %v492, 24
      %v1267 = vpop.permute.xlu0 %1266
      %1268 = vrot.lane.b32.xlu0 %v493, 24
      %v1269 = vpop.permute.xlu0 %1268
      %1270 = vrot.lane.b32.xlu0 %v494, 24
      %v1271 = vpop.permute.xlu0 %1270
      %1272 = vrot.lane.b32.xlu0 %v495, 24
      %v1273 = vpop.permute.xlu0 %1272
      %1274 = vrot.lane.b32.xlu0 %v496, 24
      %v1275 = vpop.permute.xlu0 %1274
      %1276 = vrot.lane.b32.xlu0 %v497, 24
      %v1277 = vpop.permute.xlu0 %1276
      %1278 = vrot.lane.b32.xlu0 %v498, 24
      %v1279 = vpop.permute.xlu0 %1278
      %1280 = vrot.lane.b32.xlu0 %v499, 24
      %v1281 = vpop.permute.xlu0 %1280
      %1282 = vrot.lane.b32.xlu0 %v500, 24
      %v1283 = vpop.permute.xlu0 %1282
      %1284 = vrot.lane.b32.xlu0 %v501, 24
      %v1285 = vpop.permute.xlu0 %1284
      %1286 = vrot.lane.b32.xlu0 %v502, 24
      %v1287 = vpop.permute.xlu0 %1286
      %1288 = vrot.lane.b32.xlu0 %v503, 24
      %v1289 = vpop.permute.xlu0 %1288
      %1290 = vrot.lane.b32.xlu0 %v504, 24
      %v1291 = vpop.permute.xlu0 %1290
      %1292 = vrot.lane.b32.xlu0 %v505, 24
      %v1293 = vpop.permute.xlu0 %1292
      %1294 = vrot.lane.b32.xlu0 %v506, 24
      %v1295 = vpop.permute.xlu0 %1294
      %1296 = vrot.lane.b32.xlu0 %v507, 24
      %v1297 = vpop.permute.xlu0 %1296
      %1298 = vrot.lane.b32.xlu0 %v508, 24
      %v1299 = vpop.permute.xlu0 %1298
      %1300 = vrot.lane.b32.xlu0 %v509, 24
      %v1301 = vpop.permute.xlu0 %1300
      %1302 = vrot.lane.b32.xlu0 %v510, 24
      %v1303 = vpop.permute.xlu0 %1302
      %1304 = vrot.lane.b32.xlu0 %v511, 24
      %v1305 = vpop.permute.xlu0 %1304
      %1306 = vrot.lane.b32.xlu0 %v512, 24
      %v1307 = vpop.permute.xlu0 %1306
      %1308 = vrot.lane.b32.xlu0 %v513, 24
      %v1309 = vpop.permute.xlu0 %1308
      %1310 = vrot.lane.b32.xlu0 %v514, 24
      %v1311 = vpop.permute.xlu0 %1310
      %1312 = vrot.lane.b32.xlu0 %v515, 24
      %v1313 = vpop.permute.xlu0 %1312
      %1314 = vrot.lane.b32.xlu0 %v516, 24
      %v1315 = vpop.permute.xlu0 %1314
      %1316 = vrot.lane.b32.xlu0 %v517, 24
      %v1317 = vpop.permute.xlu0 %1316
      %1382 = vrot.lane.b32.xlu0 %v518, 28
      %v1383 = vpop.permute.xlu0 %1382
      %1384 = vrot.lane.b32.xlu0 %v519, 28
      %v1385 = vpop.permute.xlu0 %1384
      %1386 = vrot.lane.b32.xlu0 %v520, 28
      %v1387 = vpop.permute.xlu0 %1386
      %1388 = vrot.lane.b32.xlu0 %v521, 28
      %v1389 = vpop.permute.xlu0 %1388
      %1390 = vrot.lane.b32.xlu0 %v522, 28
      %v1391 = vpop.permute.xlu0 %1390
      %1392 = vrot.lane.b32.xlu0 %v523, 28
      %v1393 = vpop.permute.xlu0 %1392
      %1394 = vrot.lane.b32.xlu0 %v524, 28
      %v1395 = vpop.permute.xlu0 %1394
      %1396 = vrot.lane.b32.xlu0 %v525, 28
      %v1397 = vpop.permute.xlu0 %1396
      %1398 = vrot.lane.b32.xlu0 %v526, 28
      %v1399 = vpop.permute.xlu0 %1398
      %1400 = vrot.lane.b32.xlu0 %v527, 28
      %v1401 = vpop.permute.xlu0 %1400
      %1402 = vrot.lane.b32.xlu0 %v528, 28
      %v1403 = vpop.permute.xlu0 %1402
      %1404 = vrot.lane.b32.xlu0 %v529, 28
      %v1405 = vpop.permute.xlu0 %1404
      %1406 = vrot.lane.b32.xlu0 %v530, 28
      %v1407 = vpop.permute.xlu0 %1406
      %1408 = vrot.lane.b32.xlu0 %v531, 28
      %v1409 = vpop.permute.xlu0 %1408
      %1410 = vrot.lane.b32.xlu0 %v532, 28
      %v1411 = vpop.permute.xlu0 %1410
      %1412 = vrot.lane.b32.xlu0 %v533, 28
      %v1413 = vpop.permute.xlu0 %1412
      %1414 = vrot.lane.b32.xlu0 %v534, 28
      %v1415 = vpop.permute.xlu0 %1414
      %1416 = vrot.lane.b32.xlu0 %v535, 28
      %v1417 = vpop.permute.xlu0 %1416
      %1418 = vrot.lane.b32.xlu0 %v536, 28
      %v1419 = vpop.permute.xlu0 %1418
      %1420 = vrot.lane.b32.xlu0 %v537, 28
      %v1421 = vpop.permute.xlu0 %1420
      %1422 = vrot.lane.b32.xlu0 %v538, 28
      %v1423 = vpop.permute.xlu0 %1422
      %1424 = vrot.lane.b32.xlu0 %v539, 28
      %v1425 = vpop.permute.xlu0 %1424
      %1426 = vrot.lane.b32.xlu0 %v540, 28
      %v1427 = vpop.permute.xlu0 %1426
      %1428 = vrot.lane.b32.xlu0 %v541, 28
      %v1429 = vpop.permute.xlu0 %1428
      %1430 = vrot.lane.b32.xlu0 %v542, 28
      %v1431 = vpop.permute.xlu0 %1430
      %1432 = vrot.lane.b32.xlu0 %v543, 28
      %v1433 = vpop.permute.xlu0 %1432
      %1434 = vrot.lane.b32.xlu0 %v544, 28
      %v1435 = vpop.permute.xlu0 %1434
      %1436 = vrot.lane.b32.xlu0 %v545, 28
      %v1437 = vpop.permute.xlu0 %1436
      %1438 = vrot.lane.b32.xlu0 %v546, 28
      %v1439 = vpop.permute.xlu0 %1438
      %1440 = vrot.lane.b32.xlu0 %v547, 28
      %v1441 = vpop.permute.xlu0 %1440
      %1442 = vrot.lane.b32.xlu0 %v548, 28
      %v1443 = vpop.permute.xlu0 %1442
      %1444 = vrot.lane.b32.xlu0 %v549, 28
      %v1445 = vpop.permute.xlu0 %1444
      %1510 = vrot.lane.b32.xlu0 %v550, 32
      %v1511 = vpop.permute.xlu0 %1510
      %1512 = vrot.lane.b32.xlu0 %v551, 32
      %v1513 = vpop.permute.xlu0 %1512
      %1514 = vrot.lane.b32.xlu0 %v552, 32
      %v1515 = vpop.permute.xlu0 %1514
      %1516 = vrot.lane.b32.xlu0 %v553, 32
      %v1517 = vpop.permute.xlu0 %1516
      %1518 = vrot.lane.b32.xlu0 %v554, 32
      %v1519 = vpop.permute.xlu0 %1518
      %1520 = vrot.lane.b32.xlu0 %v555, 32
      %v1521 = vpop.permute.xlu0 %1520
      %1522 = vrot.lane.b32.xlu0 %v556, 32
      %v1523 = vpop.permute.xlu0 %1522
      %1524 = vrot.lane.b32.xlu0 %v557, 32
      %v1525 = vpop.permute.xlu0 %1524
      %1526 = vrot.lane.b32.xlu0 %v558, 32
      %v1527 = vpop.permute.xlu0 %1526
      %1528 = vrot.lane.b32.xlu0 %v559, 32
      %v1529 = vpop.permute.xlu0 %1528
      %1530 = vrot.lane.b32.xlu0 %v560, 32
      %v1531 = vpop.permute.xlu0 %1530
      %1532 = vrot.lane.b32.xlu0 %v561, 32
      %v1533 = vpop.permute.xlu0 %1532
      %1534 = vrot.lane.b32.xlu0 %v562, 32
      %v1535 = vpop.permute.xlu0 %1534
      %1536 = vrot.lane.b32.xlu0 %v563, 32
      %v1537 = vpop.permute.xlu0 %1536
      %1538 = vrot.lane.b32.xlu0 %v564, 32
      %v1539 = vpop.permute.xlu0 %1538
      %1540 = vrot.lane.b32.xlu0 %v565, 32
      %v1541 = vpop.permute.xlu0 %1540
      %1542 = vrot.lane.b32.xlu0 %v566, 32
      %v1543 = vpop.permute.xlu0 %1542
      %1544 = vrot.lane.b32.xlu0 %v567, 32
      %v1545 = vpop.permute.xlu0 %1544
      %1546 = vrot.lane.b32.xlu0 %v568, 32
      %v1547 = vpop.permute.xlu0 %1546
      %1548 = vrot.lane.b32.xlu0 %v569, 32
      %v1549 = vpop.permute.xlu0 %1548
      %1550 = vrot.lane.b32.xlu0 %v570, 32
      %v1551 = vpop.permute.xlu0 %1550
      %1552 = vrot.lane.b32.xlu0 %v571, 32
      %v1553 = vpop.permute.xlu0 %1552
      %1554 = vrot.lane.b32.xlu0 %v572, 32
      %v1555 = vpop.permute.xlu0 %1554
      %1556 = vrot.lane.b32.xlu0 %v573, 32
      %v1557 = vpop.permute.xlu0 %1556
      %1558 = vrot.lane.b32.xlu0 %v574, 32
      %v1559 = vpop.permute.xlu0 %1558
      %1560 = vrot.lane.b32.xlu0 %v575, 32
      %v1561 = vpop.permute.xlu0 %1560
      %1562 = vrot.lane.b32.xlu0 %v576, 32
      %v1563 = vpop.permute.xlu0 %1562
      %1564 = vrot.lane.b32.xlu0 %v577, 32
      %v1565 = vpop.permute.xlu0 %1564
      %1566 = vrot.lane.b32.xlu0 %v578, 32
      %v1567 = vpop.permute.xlu0 %1566
      %1568 = vrot.lane.b32.xlu0 %v579, 32
      %v1569 = vpop.permute.xlu0 %1568
      %1570 = vrot.lane.b32.xlu0 %v580, 32
      %v1571 = vpop.permute.xlu0 %1570
      %1572 = vrot.lane.b32.xlu0 %v581, 32
      %v1573 = vpop.permute.xlu0 %1572
      %v1606 = vsel %vm214, %v293, %v615
      %v1607 = vsel %vm214, %v294, %v617
      %v1608 = vsel %vm214, %v295, %v619
      %v1609 = vsel %vm214, %v296, %v621
      %v1610 = vsel %vm214, %v297, %v623
      %v1611 = vsel %vm214, %v298, %v625
      %v1612 = vsel %vm214, %v299, %v627
      %v1613 = vsel %vm214, %v300, %v629
      %v1614 = vsel %vm214, %v301, %v631
      %v1615 = vsel %vm214, %v302, %v633
      %v1616 = vsel %vm214, %v303, %v635
      %v1617 = vsel %vm214, %v304, %v637
      %v1618 = vsel %vm214, %v305, %v639
      %v1619 = vsel %vm214, %v306, %v641
      %v1620 = vsel %vm214, %v307, %v643
      %v1621 = vsel %vm214, %v308, %v645
      %v1622 = vsel %vm214, %v309, %v647
      %v1623 = vsel %vm214, %v310, %v649
      %v1624 = vsel %vm214, %v311, %v651
      %v1625 = vsel %vm214, %v312, %v653
      %v1626 = vsel %vm214, %v313, %v655
      %v1627 = vsel %vm214, %v314, %v657
      %v1628 = vsel %vm214, %v315, %v659
      %v1629 = vsel %vm214, %v316, %v661
      %v1630 = vsel %vm214, %v317, %v663
      %v1631 = vsel %vm214, %v318, %v665
      %v1632 = vsel %vm214, %v319, %v667
      %v1633 = vsel %vm214, %v320, %v669
      %v1634 = vsel %vm214, %v321, %v671
      %v1635 = vsel %vm214, %v322, %v673
      %v1636 = vsel %vm214, %v323, %v675
      %v1637 = vsel %vm214, %v324, %v677
      %vm1638 = vcmask 64512
      %v1639 = vsel %vm1638, %v1606, %v743
      %v1640 = vsel %vm1638, %v1607, %v745
      %v1641 = vsel %vm1638, %v1608, %v747
      %v1642 = vsel %vm1638, %v1609, %v749
      %v1643 = vsel %vm1638, %v1610, %v751
      %v1644 = vsel %vm1638, %v1611, %v753
      %v1645 = vsel %vm1638, %v1612, %v755
      %v1646 = vsel %vm1638, %v1613, %v757
      %v1647 = vsel %vm1638, %v1614, %v759
      %v1648 = vsel %vm1638, %v1615, %v761
      %v1649 = vsel %vm1638, %v1616, %v763
      %v1650 = vsel %vm1638, %v1617, %v765
      %v1651 = vsel %vm1638, %v1618, %v767
      %v1652 = vsel %vm1638, %v1619, %v769
      %v1653 = vsel %vm1638, %v1620, %v771
      %v1654 = vsel %vm1638, %v1621, %v773
      %v1655 = vsel %vm1638, %v1622, %v775
      %v1656 = vsel %vm1638, %v1623, %v777
      %v1657 = vsel %vm1638, %v1624, %v779
      %v1658 = vsel %vm1638, %v1625, %v781
      %v1659 = vsel %vm1638, %v1626, %v783
      %v1660 = vsel %vm1638, %v1627, %v785
      %v1661 = vsel %vm1638, %v1628, %v787
      %v1662 = vsel %vm1638, %v1629, %v789
      %v1663 = vsel %vm1638, %v1630, %v791
      %v1664 = vsel %vm1638, %v1631, %v793
      %v1665 = vsel %vm1638, %v1632, %v795
      %v1666 = vsel %vm1638, %v1633, %v797
      %v1667 = vsel %vm1638, %v1634, %v799
      %v1668 = vsel %vm1638, %v1635, %v801
      %v1669 = vsel %vm1638, %v1636, %v803
      %v1670 = vsel %vm1638, %v1637, %v805
      %vm1671 = vcmask 97280
      %v1672 = vsel %vm1671, %v1639, %v871
      %v1673 = vsel %vm1671, %v1640, %v873
      %v1674 = vsel %vm1671, %v1641, %v875
      %v1675 = vsel %vm1671, %v1642, %v877
      %v1676 = vsel %vm1671, %v1643, %v879
      %v1677 = vsel %vm1671, %v1644, %v881
      %v1678 = vsel %vm1671, %v1645, %v883
      %v1679 = vsel %vm1671, %v1646, %v885
      %v1680 = vsel %vm1671, %v1647, %v887
      %v1681 = vsel %vm1671, %v1648, %v889
      %v1682 = vsel %vm1671, %v1649, %v891
      %v1683 = vsel %vm1671, %v1650, %v893
      %v1684 = vsel %vm1671, %v1651, %v895
      %v1685 = vsel %vm1671, %v1652, %v897
      %v1686 = vsel %vm1671, %v1653, %v899
      %v1687 = vsel %vm1671, %v1654, %v901
      %v1688 = vsel %vm1671, %v1655, %v903
      %v1689 = vsel %vm1671, %v1656, %v905
      %v1690 = vsel %vm1671, %v1657, %v907
      %v1691 = vsel %vm1671, %v1658, %v909
      %v1692 = vsel %vm1671, %v1659, %v911
      %v1693 = vsel %vm1671, %v1660, %v913
      %v1694 = vsel %vm1671, %v1661, %v915
      %v1695 = vsel %vm1671, %v1662, %v917
      %v1696 = vsel %vm1671, %v1663, %v919
      %v1697 = vsel %vm1671, %v1664, %v921
      %v1698 = vsel %vm1671, %v1665, %v923
      %v1699 = vsel %vm1671, %v1666, %v925
      %v1700 = vsel %vm1671, %v1667, %v927
      %v1701 = vsel %vm1671, %v1668, %v929
      %v1702 = vsel %vm1671, %v1669, %v931
      %v1703 = vsel %vm1671, %v1670, %v933
      %vm1704 = vcmask 130048
      %v1705 = vsel %vm1704, %v1672, %v999
      %v1706 = vsel %vm1704, %v1673, %v1001
      %v1707 = vsel %vm1704, %v1674, %v1003
      %v1708 = vsel %vm1704, %v1675, %v1005
      %v1709 = vsel %vm1704, %v1676, %v1007
      %v1710 = vsel %vm1704, %v1677, %v1009
      %v1711 = vsel %vm1704, %v1678, %v1011
      %v1712 = vsel %vm1704, %v1679, %v1013
      %v1713 = vsel %vm1704, %v1680, %v1015
      %v1714 = vsel %vm1704, %v1681, %v1017
      %v1715 = vsel %vm1704, %v1682, %v1019
      %v1716 = vsel %vm1704, %v1683, %v1021
      %v1717 = vsel %vm1704, %v1684, %v1023
      %v1718 = vsel %vm1704, %v1685, %v1025
      %v1719 = vsel %vm1704, %v1686, %v1027
      %v1720 = vsel %vm1704, %v1687, %v1029
      %v1721 = vsel %vm1704, %v1688, %v1031
      %v1722 = vsel %vm1704, %v1689, %v1033
      %v1723 = vsel %vm1704, %v1690, %v1035
      %v1724 = vsel %vm1704, %v1691, %v1037
      %v1725 = vsel %vm1704, %v1692, %v1039
      %v1726 = vsel %vm1704, %v1693, %v1041
      %v1727 = vsel %vm1704, %v1694, %v1043
      %v1728 = vsel %vm1704, %v1695, %v1045
      %v1729 = vsel %vm1704, %v1696, %v1047
      %v1730 = vsel %vm1704, %v1697, %v1049
      %v1731 = vsel %vm1704, %v1698, %v1051
      %v1732 = vsel %vm1704, %v1699, %v1053
      %v1733 = vsel %vm1704, %v1700, %v1055
      %v1734 = vsel %vm1704, %v1701, %v1057
      %v1735 = vsel %vm1704, %v1702, %v1059
      %v1736 = vsel %vm1704, %v1703, %v1061
      %vm1737 = vcmask 162816
      %v1738 = vsel %vm1737, %v1705, %v1127
      %v1739 = vsel %vm1737, %v1706, %v1129
      %v1740 = vsel %vm1737, %v1707, %v1131
      %v1741 = vsel %vm1737, %v1708, %v1133
      %v1742 = vsel %vm1737, %v1709, %v1135
      %v1743 = vsel %vm1737, %v1710, %v1137
      %v1744 = vsel %vm1737, %v1711, %v1139
      %v1745 = vsel %vm1737, %v1712, %v1141
      %v1746 = vsel %vm1737, %v1713, %v1143
      %v1747 = vsel %vm1737, %v1714, %v1145
      %v1748 = vsel %vm1737, %v1715, %v1147
      %v1749 = vsel %vm1737, %v1716, %v1149
      %v1750 = vsel %vm1737, %v1717, %v1151
      %v1751 = vsel %vm1737, %v1718, %v1153
      %v1752 = vsel %vm1737, %v1719, %v1155
      %v1753 = vsel %vm1737, %v1720, %v1157
      %v1754 = vsel %vm1737, %v1721, %v1159
      %v1755 = vsel %vm1737, %v1722, %v1161
      %v1756 = vsel %vm1737, %v1723, %v1163
      %v1757 = vsel %vm1737, %v1724, %v1165
      %v1758 = vsel %vm1737, %v1725, %v1167
      %v1759 = vsel %vm1737, %v1726, %v1169
      %v1760 = vsel %vm1737, %v1727, %v1171
      %v1761 = vsel %vm1737, %v1728, %v1173
      %v1762 = vsel %vm1737, %v1729, %v1175
      %v1763 = vsel %vm1737, %v1730, %v1177
      %v1764 = vsel %vm1737, %v1731, %v1179
      %v1765 = vsel %vm1737, %v1732, %v1181
      %v1766 = vsel %vm1737, %v1733, %v1183
      %v1767 = vsel %vm1737, %v1734, %v1185
      %v1768 = vsel %vm1737, %v1735, %v1187
      %v1769 = vsel %vm1737, %v1736, %v1189
      %vm1770 = vcmask 195584
      %v1771 = vsel %vm1770, %v1738, %v1255
      %v1772 = vsel %vm1770, %v1739, %v1257
      %v1773 = vsel %vm1770, %v1740, %v1259
      %v1774 = vsel %vm1770, %v1741, %v1261
      %v1775 = vsel %vm1770, %v1742, %v1263
      %v1776 = vsel %vm1770, %v1743, %v1265
      %v1777 = vsel %vm1770, %v1744, %v1267
      %v1778 = vsel %vm1770, %v1745, %v1269
      %v1779 = vsel %vm1770, %v1746, %v1271
      %v1780 = vsel %vm1770, %v1747, %v1273
      %v1781 = vsel %vm1770, %v1748, %v1275
      %v1782 = vsel %vm1770, %v1749, %v1277
      %v1783 = vsel %vm1770, %v1750, %v1279
      %v1784 = vsel %vm1770, %v1751, %v1281
      %v1785 = vsel %vm1770, %v1752, %v1283
      %v1786 = vsel %vm1770, %v1753, %v1285
      %v1787 = vsel %vm1770, %v1754, %v1287
      %v1788 = vsel %vm1770, %v1755, %v1289
      %v1789 = vsel %vm1770, %v1756, %v1291
      %v1790 = vsel %vm1770, %v1757, %v1293
      %v1791 = vsel %vm1770, %v1758, %v1295
      %v1792 = vsel %vm1770, %v1759, %v1297
      %v1793 = vsel %vm1770, %v1760, %v1299
      %v1794 = vsel %vm1770, %v1761, %v1301
      %v1795 = vsel %vm1770, %v1762, %v1303
      %v1796 = vsel %vm1770, %v1763, %v1305
      %v1797 = vsel %vm1770, %v1764, %v1307
      %v1798 = vsel %vm1770, %v1765, %v1309
      %v1799 = vsel %vm1770, %v1766, %v1311
      %v1800 = vsel %vm1770, %v1767, %v1313
      %v1801 = vsel %vm1770, %v1768, %v1315
      %v1802 = vsel %vm1770, %v1769, %v1317
      %vm1803 = vcmask 228352
      %v1804 = vsel %vm1803, %v1771, %v1383
      %v1805 = vsel %vm1803, %v1772, %v1385
      %v1806 = vsel %vm1803, %v1773, %v1387
      %v1807 = vsel %vm1803, %v1774, %v1389
      %v1808 = vsel %vm1803, %v1775, %v1391
      %v1809 = vsel %vm1803, %v1776, %v1393
      %v1810 = vsel %vm1803, %v1777, %v1395
      %v1811 = vsel %vm1803, %v1778, %v1397
      %v1812 = vsel %vm1803, %v1779, %v1399
      %v1813 = vsel %vm1803, %v1780, %v1401
      %v1814 = vsel %vm1803, %v1781, %v1403
      %v1815 = vsel %vm1803, %v1782, %v1405
      %v1816 = vsel %vm1803, %v1783, %v1407
      %v1817 = vsel %vm1803, %v1784, %v1409
      %v1818 = vsel %vm1803, %v1785, %v1411
      %v1819 = vsel %vm1803, %v1786, %v1413
      %v1820 = vsel %vm1803, %v1787, %v1415
      %v1821 = vsel %vm1803, %v1788, %v1417
      %v1822 = vsel %vm1803, %v1789, %v1419
      %v1823 = vsel %vm1803, %v1790, %v1421
      %v1824 = vsel %vm1803, %v1791, %v1423
      %v1825 = vsel %vm1803, %v1792, %v1425
      %v1826 = vsel %vm1803, %v1793, %v1427
      %v1827 = vsel %vm1803, %v1794, %v1429
      %v1828 = vsel %vm1803, %v1795, %v1431
      %v1829 = vsel %vm1803, %v1796, %v1433
      %v1830 = vsel %vm1803, %v1797, %v1435
      %v1831 = vsel %vm1803, %v1798, %v1437
      %v1832 = vsel %vm1803, %v1799, %v1439
      %v1833 = vsel %vm1803, %v1800, %v1441
      %v1834 = vsel %vm1803, %v1801, %v1443
      %v1835 = vsel %vm1803, %v1802, %v1445
      %vm1836 = vcmask 261120
      %v1837 = vsel %vm1836, %v1804, %v1511
      %v1838 = vsel %vm1836, %v1805, %v1513
      %v1839 = vsel %vm1836, %v1806, %v1515
      %v1840 = vsel %vm1836, %v1807, %v1517
      %v1841 = vsel %vm1836, %v1808, %v1519
      %v1842 = vsel %vm1836, %v1809, %v1521
      %v1843 = vsel %vm1836, %v1810, %v1523
      %v1844 = vsel %vm1836, %v1811, %v1525
      %v1845 = vsel %vm1836, %v1812, %v1527
      %v1846 = vsel %vm1836, %v1813, %v1529
      %v1847 = vsel %vm1836, %v1814, %v1531
      %v1848 = vsel %vm1836, %v1815, %v1533
      %v1849 = vsel %vm1836, %v1816, %v1535
      %v1850 = vsel %vm1836, %v1817, %v1537
      %v1851 = vsel %vm1836, %v1818, %v1539
      %v1852 = vsel %vm1836, %v1819, %v1541
      %v1853 = vsel %vm1836, %v1820, %v1543
      %v1854 = vsel %vm1836, %v1821, %v1545
      %v1855 = vsel %vm1836, %v1822, %v1547
      %v1856 = vsel %vm1836, %v1823, %v1549
      %v1857 = vsel %vm1836, %v1824, %v1551
      %v1858 = vsel %vm1836, %v1825, %v1553
      %v1859 = vsel %vm1836, %v1826, %v1555
      %v1860 = vsel %vm1836, %v1827, %v1557
      %v1861 = vsel %vm1836, %v1828, %v1559
      %v1862 = vsel %vm1836, %v1829, %v1561
      %v1863 = vsel %vm1836, %v1830, %v1563
      %v1864 = vsel %vm1836, %v1831, %v1565
      %v1865 = vsel %vm1836, %v1832, %v1567
      %v1866 = vsel %vm1836, %v1833, %v1569
      %v1867 = vsel %vm1836, %v1834, %v1571
      %v1868 = vsel %vm1836, %v1835, %v1573
      %v1869 = vld [vmem:[%s1] sm:$0xff]
      %v1870 = vld [vmem:[%s1 + $0x8] sm:$0xff]
      %v1871 = vld [vmem:[%s1 + $0x10] sm:$0xff]
      %v1872 = vld [vmem:[%s1 + $0x18] sm:$0xff]
      %v1873 = vld [vmem:[%s1 + $0x20] sm:$0xf]
      %vm1874 = vcmask 293888
      %v1876 = vsel %vm1874, %v1837, 0
      %v1879 = vsel %vm1874, %v1838, 0
      %v1882 = vsel %vm1874, %v1839, 0
      %v1885 = vsel %vm1874, %v1840, 0
      %v1888 = vsel %vm1874, %v1841, 0
      %v1891 = vsel %vm1874, %v1842, 0
      %v1894 = vsel %vm1874, %v1843, 0
      %v1897 = vsel %vm1874, %v1844, 0
      %v1900 = vsel %vm1874, %v1845, 0
      %v1903 = vsel %vm1874, %v1846, 0
      %v1906 = vsel %vm1874, %v1847, 0
      %v1909 = vsel %vm1874, %v1848, 0
      %v1912 = vsel %vm1874, %v1849, 0
      %v1915 = vsel %vm1874, %v1850, 0
      %v1918 = vsel %vm1874, %v1851, 0
      %v1921 = vsel %vm1874, %v1852, 0
      %v1924 = vsel %vm1874, %v1853, 0
      %v1927 = vsel %vm1874, %v1854, 0
      %v1930 = vsel %vm1874, %v1855, 0
      %v1933 = vsel %vm1874, %v1856, 0
      %v1936 = vsel %vm1874, %v1857, 0
      %v1939 = vsel %vm1874, %v1858, 0
      %v1942 = vsel %vm1874, %v1859, 0
      %v1945 = vsel %vm1874, %v1860, 0
      %v1948 = vsel %vm1874, %v1861, 0
      %v1951 = vsel %vm1874, %v1862, 0
      %v1954 = vsel %vm1874, %v1863, 0
      %v1957 = vsel %vm1874, %v1864, 0
      %v1960 = vsel %vm1874, %v1865, 0
      %v1963 = vsel %vm1874, %v1866, 0
      %v1966 = vsel %vm1874, %v1867, 0
      %v1969 = vsel %vm1874, %v1868, 0
      %vm1971 = vcmask 1043456
      %v1973 = vsel %vm1971, %v1873, 0
      %1975 = vmatprep.subr.mxu0 0.0
      %1976 = vmatpush1.msra.mxu0 0.0
      %1977 = vmatprep.subr.mxu0 0.0
      %1978 = vmatpush1.msra.mxu0 0.0
      %1979 = vmatprep.subr.mxu0 0.0
      %1980 = vmatpush1.msra.mxu0 0.0
      %1981 = vmatprep.subr.mxu0 0.0
      %1982 = vmatpush1.msra.mxu0 0.0
      %1983 = vmatprep.subr.mxu0 0.0
      %1984 = vmatpush1.msra.mxu0 0.0
      %1985 = vmatprep.subr.mxu0 0.0
      %1986 = vmatpush1.msra.mxu0 0.0
      %1987 = vmatprep.subr.mxu0 0.0
      %1988 = vmatpush1.msra.mxu0 0.0
      %1989 = vmatprep.subr.mxu0 0.0
      %1990 = vmatpush1.msra.mxu0 0.0
      %1991 = vmatprep.subr.mxu0 0.0
      %1992 = vmatpush1.msra.mxu0 0.0
      %1993 = vmatprep.subr.mxu0 0.0
      %1994 = vmatpush1.msra.mxu0 0.0
      %1995 = vmatprep.subr.mxu0 0.0
      %1996 = vmatpush1.msra.mxu0 0.0
      %1997 = vmatprep.subr.mxu0 0.0
      %1998 = vmatpush1.msra.mxu0 %v1973
      %1999 = vmatprep.subr.mxu0 0.0
      %2000 = vmatpush1.msra.mxu0 %v1872
      %2001 = vmatprep.subr.mxu0 0.0
      %2002 = vmatpush1.msra.mxu0 %v1871
      %2003 = vmatprep.subr.mxu0 0.0
      %2004 = vmatpush1.msra.mxu0 %v1870
      %2005 = vmatprep.subr.mxu0 0.0
      %2006 = vmatpush1.msra.mxu0 %v1869
      %2007 = vmatprep.subr.mxu0 0.0
      %2008 = vmatpush2.msra.mxu0 0.0
      %2009 = vmatprep.subr.mxu0 0.0
      %2010 = vmatpush2.msra.mxu0 0.0
      %2011 = vmatprep.subr.mxu0 0.0
      %2012 = vmatpush2.msra.mxu0 0.0
      %2013 = vmatprep.subr.mxu0 0.0
      %2014 = vmatpush2.msra.mxu0 0.0
      %2015 = vmatprep.subr.mxu0 0.0
      %2016 = vmatpush2.msra.mxu0 0.0
      %2017 = vmatprep.subr.mxu0 0.0
      %2018 = vmatpush2.msra.mxu0 0.0
      %2019 = vmatprep.subr.mxu0 0.0
      %2020 = vmatpush2.msra.mxu0 0.0
      %2021 = vmatprep.subr.mxu0 0.0
      %2022 = vmatpush2.msra.mxu0 0.0
      %2023 = vmatprep.subr.mxu0 0.0
      %2024 = vmatpush2.msra.mxu0 0.0
      %2025 = vmatprep.subr.mxu0 0.0
      %2026 = vmatpush2.msra.mxu0 0.0
      %2027 = vmatprep.subr.mxu0 0.0
      %2028 = vmatpush2.msra.mxu0 0.0
      %2029 = vmatprep.subr.mxu0 0.0
      %2030 = vmatpush2.msra.mxu0 0.0
      %2031 = vmatprep.subr.mxu0 0.0
      %2032 = vmatpush2.msra.mxu0 0.0
      %2033 = vmatprep.subr.mxu0 0.0
      %2034 = vmatpush2.msra.mxu0 0.0
      %2035 = vmatprep.subr.mxu0 0.0
      %2036 = vmatpush2.msra.mxu0 0.0
      %2037 = vmatprep.subr.mxu0 0.0
      %2038 = vmatpush2.msra.mxu0 0.0
      %2039 = vmatprep.mubr.f32.mxu0 0.0
      %2040 = vmatmul.mubr.f32.gmra.mxu0 %v1876
      %v2041 = vpop.f32.mrf.mxu0
      %v2042 = vadd.f32 0.0, %v2041
      %v2043 = vpop.f32.mrf.mxu0
      %2044 = vmatprep.mubr.f32.mxu0 0.0
      %2045 = vmatmul.mubr.f32.gmra.mxu0 %v1879
      %v2046 = vpop.f32.mrf.mxu0
      %v2047 = vadd.f32 0.0, %v2046
      %v2048 = vpop.f32.mrf.mxu0
      %2049 = vmatprep.mubr.f32.mxu0 0.0
      %2050 = vmatmul.mubr.f32.gmra.mxu0 %v1882
      %v2051 = vpop.f32.mrf.mxu0
      %v2052 = vadd.f32 0.0, %v2051
      %v2053 = vpop.f32.mrf.mxu0
      %2054 = vmatprep.mubr.f32.mxu0 0.0
      %2055 = vmatmul.mubr.f32.gmra.mxu0 %v1885
      %v2056 = vpop.f32.mrf.mxu0
      %v2057 = vadd.f32 0.0, %v2056
      %v2058 = vpop.f32.mrf.mxu0
      %2059 = vmatprep.mubr.f32.mxu0 0.0
      %2060 = vmatmul.mubr.f32.gmra.mxu0 %v1888
      %v2061 = vpop.f32.mrf.mxu0
      %v2062 = vadd.f32 0.0, %v2061
      %v2063 = vpop.f32.mrf.mxu0
      %2064 = vmatprep.mubr.f32.mxu0 0.0
      %2065 = vmatmul.mubr.f32.gmra.mxu0 %v1891
      %v2066 = vpop.f32.mrf.mxu0
      %v2067 = vadd.f32 0.0, %v2066
      %v2068 = vpop.f32.mrf.mxu0
      %2069 = vmatprep.mubr.f32.mxu0 0.0
      %2070 = vmatmul.mubr.f32.gmra.mxu0 %v1894
      %v2071 = vpop.f32.mrf.mxu0
      %v2072 = vadd.f32 0.0, %v2071
      %v2073 = vpop.f32.mrf.mxu0
      %2074 = vmatprep.mubr.f32.mxu0 0.0
      %2075 = vmatmul.mubr.f32.gmra.mxu0 %v1897
      %v2076 = vpop.f32.mrf.mxu0
      %v2077 = vadd.f32 0.0, %v2076
      %v2078 = vpop.f32.mrf.mxu0
      %2079 = vmatprep.mubr.f32.mxu0 0.0
      %2080 = vmatmul.mubr.f32.gmra.mxu0 %v1900
      %v2081 = vpop.f32.mrf.mxu0
      %v2082 = vadd.f32 0.0, %v2081
      %v2083 = vpop.f32.mrf.mxu0
      %2084 = vmatprep.mubr.f32.mxu0 0.0
      %2085 = vmatmul.mubr.f32.gmra.mxu0 %v1903
      %v2086 = vpop.f32.mrf.mxu0
      %v2087 = vadd.f32 0.0, %v2086
      %v2088 = vpop.f32.mrf.mxu0
      %2089 = vmatprep.mubr.f32.mxu0 0.0
      %2090 = vmatmul.mubr.f32.gmra.mxu0 %v1906
      %v2091 = vpop.f32.mrf.mxu0
      %v2092 = vadd.f32 0.0, %v2091
      %v2093 = vpop.f32.mrf.mxu0
      %2094 = vmatprep.mubr.f32.mxu0 0.0
      %2095 = vmatmul.mubr.f32.gmra.mxu0 %v1909
      %v2096 = vpop.f32.mrf.mxu0
      %v2097 = vadd.f32 0.0, %v2096
      %v2098 = vpop.f32.mrf.mxu0
      %2099 = vmatprep.mubr.f32.mxu0 0.0
      %2100 = vmatmul.mubr.f32.gmra.mxu0 %v1912
      %v2101 = vpop.f32.mrf.mxu0
      %v2102 = vadd.f32 0.0, %v2101
      %v2103 = vpop.f32.mrf.mxu0
      %2104 = vmatprep.mubr.f32.mxu0 0.0
      %2105 = vmatmul.mubr.f32.gmra.mxu0 %v1915
      %v2106 = vpop.f32.mrf.mxu0
      %v2107 = vadd.f32 0.0, %v2106
      %v2108 = vpop.f32.mrf.mxu0
      %2109 = vmatprep.mubr.f32.mxu0 0.0
      %2110 = vmatmul.mubr.f32.gmra.mxu0 %v1918
      %v2111 = vpop.f32.mrf.mxu0
      %v2112 = vadd.f32 0.0, %v2111
      %v2113 = vpop.f32.mrf.mxu0
      %2114 = vmatprep.mubr.f32.mxu0 0.0
      %2115 = vmatmul.mubr.f32.gmra.mxu0 %v1921
      %v2116 = vpop.f32.mrf.mxu0
      %v2117 = vadd.f32 0.0, %v2116
      %v2118 = vpop.f32.mrf.mxu0
      %2119 = vmatprep.mubr.f32.mxu0 0.0
      %2120 = vmatmul.mubr.f32.gmra.mxu0 %v1924
      %v2121 = vpop.f32.mrf.mxu0
      %v2122 = vadd.f32 0.0, %v2121
      %v2123 = vpop.f32.mrf.mxu0
      %2124 = vmatprep.mubr.f32.mxu0 0.0
      %2125 = vmatmul.mubr.f32.gmra.mxu0 %v1927
      %v2126 = vpop.f32.mrf.mxu0
      %v2127 = vadd.f32 0.0, %v2126
      %v2128 = vpop.f32.mrf.mxu0
      %2129 = vmatprep.mubr.f32.mxu0 0.0
      %2130 = vmatmul.mubr.f32.gmra.mxu0 %v1930
      %v2131 = vpop.f32.mrf.mxu0
      %v2132 = vadd.f32 0.0, %v2131
      %v2133 = vpop.f32.mrf.mxu0
      %2134 = vmatprep.mubr.f32.mxu0 0.0
      %2135 = vmatmul.mubr.f32.gmra.mxu0 %v1933
      %v2136 = vpop.f32.mrf.mxu0
      %v2137 = vadd.f32 0.0, %v2136
      %v2138 = vpop.f32.mrf.mxu0
      %2139 = vmatprep.mubr.f32.mxu0 0.0
      %2140 = vmatmul.mubr.f32.gmra.mxu0 %v1936
      %v2141 = vpop.f32.mrf.mxu0
      %v2142 = vadd.f32 0.0, %v2141
      %v2143 = vpop.f32.mrf.mxu0
      %2144 = vmatprep.mubr.f32.mxu0 0.0
      %2145 = vmatmul.mubr.f32.gmra.mxu0 %v1939
      %v2146 = vpop.f32.mrf.mxu0
      %v2147 = vadd.f32 0.0, %v2146
      %v2148 = vpop.f32.mrf.mxu0
      %2149 = vmatprep.mubr.f32.mxu0 0.0
      %2150 = vmatmul.mubr.f32.gmra.mxu0 %v1942
      %v2151 = vpop.f32.mrf.mxu0
      %v2152 = vadd.f32 0.0, %v2151
      %v2153 = vpop.f32.mrf.mxu0
      %2154 = vmatprep.mubr.f32.mxu0 0.0
      %2155 = vmatmul.mubr.f32.gmra.mxu0 %v1945
      %v2156 = vpop.f32.mrf.mxu0
      %v2157 = vadd.f32 0.0, %v2156
      %v2158 = vpop.f32.mrf.mxu0
      %2159 = vmatprep.mubr.f32.mxu0 0.0
      %2160 = vmatmul.mubr.f32.gmra.mxu0 %v1948
      %v2161 = vpop.f32.mrf.mxu0
      %v2162 = vadd.f32 0.0, %v2161
      %v2163 = vpop.f32.mrf.mxu0
      %2164 = vmatprep.mubr.f32.mxu0 0.0
      %2165 = vmatmul.mubr.f32.gmra.mxu0 %v1951
      %v2166 = vpop.f32.mrf.mxu0
      %v2167 = vadd.f32 0.0, %v2166
      %v2168 = vpop.f32.mrf.mxu0
      %2169 = vmatprep.mubr.f32.mxu0 0.0
      %2170 = vmatmul.mubr.f32.gmra.mxu0 %v1954
      %v2171 = vpop.f32.mrf.mxu0
      %v2172 = vadd.f32 0.0, %v2171
      %v2173 = vpop.f32.mrf.mxu0
      %2174 = vmatprep.mubr.f32.mxu0 0.0
      %2175 = vmatmul.mubr.f32.gmra.mxu0 %v1957
      %v2176 = vpop.f32.mrf.mxu0
      %v2177 = vadd.f32 0.0, %v2176
      %v2178 = vpop.f32.mrf.mxu0
      %2179 = vmatprep.mubr.f32.mxu0 0.0
      %2180 = vmatmul.mubr.f32.gmra.mxu0 %v1960
      %v2181 = vpop.f32.mrf.mxu0
      %v2182 = vadd.f32 0.0, %v2181
      %v2183 = vpop.f32.mrf.mxu0
      %2184 = vmatprep.mubr.f32.mxu0 0.0
      %2185 = vmatmul.mubr.f32.gmra.mxu0 %v1963
      %v2186 = vpop.f32.mrf.mxu0
      %v2187 = vadd.f32 0.0, %v2186
      %v2188 = vpop.f32.mrf.mxu0
      %2189 = vmatprep.mubr.f32.mxu0 0.0
      %2190 = vmatmul.mubr.f32.gmra.mxu0 %v1966
      %v2191 = vpop.f32.mrf.mxu0
      %v2192 = vadd.f32 0.0, %v2191
      %v2193 = vpop.f32.mrf.mxu0
      %2194 = vmatprep.mubr.f32.mxu0 0.0
      %2195 = vmatmul.mubr.f32.gmra.mxu0 %v1969
      %v2196 = vpop.f32.mrf.mxu0
      %v2197 = vadd.f32 0.0, %v2196
      %v2198 = vpop.f32.mrf.mxu0
      %2199 = vdwg.mxu0
      %v2200 = vsel %vm1638, %v2042, 0.0
      %v2201 = vsel %vm1638, %v2047, 0.0
      %v2202 = vadd.f32 %v2200, %v2201
      %v2203 = vsel %vm1638, %v2052, 0.0
      %v2204 = vadd.f32 %v2202, %v2203
      %v2205 = vsel %vm1638, %v2057, 0.0
      %v2206 = vadd.f32 %v2204, %v2205
      %v2207 = vsel %vm1638, %v2062, 0.0
      %v2208 = vadd.f32 %v2206, %v2207
      %v2209 = vsel %vm1638, %v2067, 0.0
      %v2210 = vadd.f32 %v2208, %v2209
      %v2211 = vsel %vm1638, %v2072, 0.0
      %v2212 = vadd.f32 %v2210, %v2211
      %v2213 = vsel %vm1638, %v2077, 0.0
      %v2214 = vadd.f32 %v2212, %v2213
      %v2215 = vsel %vm1638, %v2082, 0.0
      %v2216 = vadd.f32 %v2214, %v2215
      %v2217 = vsel %vm1638, %v2087, 0.0
      %v2218 = vadd.f32 %v2216, %v2217
      %v2219 = vsel %vm1638, %v2092, 0.0
      %v2220 = vadd.f32 %v2218, %v2219
      %v2221 = vsel %vm1638, %v2097, 0.0
      %v2222 = vadd.f32 %v2220, %v2221
      %v2223 = vsel %vm1638, %v2102, 0.0
      %v2224 = vadd.f32 %v2222, %v2223
      %v2225 = vsel %vm1638, %v2107, 0.0
      %v2226 = vadd.f32 %v2224, %v2225
      %v2227 = vsel %vm1638, %v2112, 0.0
      %v2228 = vadd.f32 %v2226, %v2227
      %v2229 = vsel %vm1638, %v2117, 0.0
      %v2230 = vadd.f32 %v2228, %v2229
      %v2231 = vsel %vm1638, %v2122, 0.0
      %v2232 = vadd.f32 %v2230, %v2231
      %v2233 = vsel %vm1638, %v2127, 0.0
      %v2234 = vadd.f32 %v2232, %v2233
      %v2235 = vsel %vm1638, %v2132, 0.0
      %v2236 = vadd.f32 %v2234, %v2235
      %v2237 = vsel %vm1638, %v2137, 0.0
      %v2238 = vadd.f32 %v2236, %v2237
      %v2239 = vsel %vm1638, %v2142, 0.0
      %v2240 = vadd.f32 %v2238, %v2239
      %v2241 = vsel %vm1638, %v2147, 0.0
      %v2242 = vadd.f32 %v2240, %v2241
      %v2243 = vsel %vm1638, %v2152, 0.0
      %v2244 = vadd.f32 %v2242, %v2243
      %v2245 = vsel %vm1638, %v2157, 0.0
      %v2246 = vadd.f32 %v2244, %v2245
      %v2247 = vsel %vm1638, %v2162, 0.0
      %v2248 = vadd.f32 %v2246, %v2247
      %v2249 = vsel %vm1638, %v2167, 0.0
      %v2250 = vadd.f32 %v2248, %v2249
      %v2251 = vsel %vm1638, %v2172, 0.0
      %v2252 = vadd.f32 %v2250, %v2251
      %v2253 = vsel %vm1638, %v2177, 0.0
      %v2254 = vadd.f32 %v2252, %v2253
      %v2255 = vsel %vm1638, %v2182, 0.0
      %v2256 = vadd.f32 %v2254, %v2255
      %v2257 = vsel %vm1638, %v2187, 0.0
      %v2258 = vadd.f32 %v2256, %v2257
      %v2259 = vsel %vm1638, %v2192, 0.0
      %v2260 = vadd.f32 %v2258, %v2259
      %v2261 = vsel %vm1638, %v2197, 0.0
      %v2262 = vadd.f32 %v2260, %v2261
      %v2263 = vrot.slane %v2262, 4
      %v2264 = vadd.f32 %v2262, %v2263
      %v2265 = vrot.slane %v2264, 2
      %v2266 = vadd.f32 %v2264, %v2265
      %v2267 = vrot.slane %v2266, 1
      %v2268 = vadd.f32 %v2266, %v2267
      %v2269 = vmul.f32 %v2042, %v2042
      %v2270 = vmul.f32 %v2047, %v2047
      %v2271 = vmul.f32 %v2052, %v2052
      %v2272 = vmul.f32 %v2057, %v2057
      %v2273 = vmul.f32 %v2062, %v2062
      %v2274 = vmul.f32 %v2067, %v2067
      %v2275 = vmul.f32 %v2072, %v2072
      %v2276 = vmul.f32 %v2077, %v2077
      %v2277 = vmul.f32 %v2082, %v2082
      %v2278 = vmul.f32 %v2087, %v2087
      %v2279 = vmul.f32 %v2092, %v2092
      %v2280 = vmul.f32 %v2097, %v2097
      %v2281 = vmul.f32 %v2102, %v2102
      %v2282 = vmul.f32 %v2107, %v2107
      %v2283 = vmul.f32 %v2112, %v2112
      %v2284 = vmul.f32 %v2117, %v2117
      %v2285 = vmul.f32 %v2122, %v2122
      %v2286 = vmul.f32 %v2127, %v2127
      %v2287 = vmul.f32 %v2132, %v2132
      %v2288 = vmul.f32 %v2137, %v2137
      %v2289 = vmul.f32 %v2142, %v2142
      %v2290 = vmul.f32 %v2147, %v2147
      %v2291 = vmul.f32 %v2152, %v2152
      %v2292 = vmul.f32 %v2157, %v2157
      %v2293 = vmul.f32 %v2162, %v2162
      %v2294 = vmul.f32 %v2167, %v2167
      %v2295 = vmul.f32 %v2172, %v2172
      %v2296 = vmul.f32 %v2177, %v2177
      %v2297 = vmul.f32 %v2182, %v2182
      %v2298 = vmul.f32 %v2187, %v2187
      %v2299 = vmul.f32 %v2192, %v2192
      %v2300 = vmul.f32 %v2197, %v2197
      %v2301 = vsel %vm1638, %v2269, 0.0
      %v2302 = vsel %vm1638, %v2270, 0.0
      %v2303 = vadd.f32 %v2301, %v2302
      %v2304 = vsel %vm1638, %v2271, 0.0
      %v2305 = vadd.f32 %v2303, %v2304
      %v2306 = vsel %vm1638, %v2272, 0.0
      %v2307 = vadd.f32 %v2305, %v2306
      %v2308 = vsel %vm1638, %v2273, 0.0
      %v2309 = vadd.f32 %v2307, %v2308
      %v2310 = vsel %vm1638, %v2274, 0.0
      %v2311 = vadd.f32 %v2309, %v2310
      %v2312 = vsel %vm1638, %v2275, 0.0
      %v2313 = vadd.f32 %v2311, %v2312
      %v2314 = vsel %vm1638, %v2276, 0.0
      %v2315 = vadd.f32 %v2313, %v2314
      %v2316 = vsel %vm1638, %v2277, 0.0
      %v2317 = vadd.f32 %v2315, %v2316
      %v2318 = vsel %vm1638, %v2278, 0.0
      %v2319 = vadd.f32 %v2317, %v2318
      %v2320 = vsel %vm1638, %v2279, 0.0
      %v2321 = vadd.f32 %v2319, %v2320
      %v2322 = vsel %vm1638, %v2280, 0.0
      %v2323 = vadd.f32 %v2321, %v2322
      %v2324 = vsel %vm1638, %v2281, 0.0
      %v2325 = vadd.f32 %v2323, %v2324
      %v2326 = vsel %vm1638, %v2282, 0.0
      %v2327 = vadd.f32 %v2325, %v2326
      %v2328 = vsel %vm1638, %v2283, 0.0
      %v2329 = vadd.f32 %v2327, %v2328
      %v2330 = vsel %vm1638, %v2284, 0.0
      %v2331 = vadd.f32 %v2329, %v2330
      %v2332 = vsel %vm1638, %v2285, 0.0
      %v2333 = vadd.f32 %v2331, %v2332
      %v2334 = vsel %vm1638, %v2286, 0.0
      %v2335 = vadd.f32 %v2333, %v2334
      %v2336 = vsel %vm1638, %v2287, 0.0
      %v2337 = vadd.f32 %v2335, %v2336
      %v2338 = vsel %vm1638, %v2288, 0.0
      %v2339 = vadd.f32 %v2337, %v2338
      %v2340 = vsel %vm1638, %v2289, 0.0
      %v2341 = vadd.f32 %v2339, %v2340
      %v2342 = vsel %vm1638, %v2290, 0.0
      %v2343 = vadd.f32 %v2341, %v2342
      %v2344 = vsel %vm1638, %v2291, 0.0
      %v2345 = vadd.f32 %v2343, %v2344
      %v2346 = vsel %vm1638, %v2292, 0.0
      %v2347 = vadd.f32 %v2345, %v2346
      %v2348 = vsel %vm1638, %v2293, 0.0
      %v2349 = vadd.f32 %v2347, %v2348
      %v2350 = vsel %vm1638, %v2294, 0.0
      %v2351 = vadd.f32 %v2349, %v2350
      %v2352 = vsel %vm1638, %v2295, 0.0
      %v2353 = vadd.f32 %v2351, %v2352
      %v2354 = vsel %vm1638, %v2296, 0.0
      %v2355 = vadd.f32 %v2353, %v2354
      %v2356 = vsel %vm1638, %v2297, 0.0
      %v2357 = vadd.f32 %v2355, %v2356
      %v2358 = vsel %vm1638, %v2298, 0.0
      %v2359 = vadd.f32 %v2357, %v2358
      %v2360 = vsel %vm1638, %v2299, 0.0
      %v2361 = vadd.f32 %v2359, %v2360
      %v2362 = vsel %vm1638, %v2300, 0.0
      %v2363 = vadd.f32 %v2361, %v2362
      %v2364 = vrot.slane %v2363, 4
      %v2365 = vadd.f32 %v2363, %v2364
      %v2366 = vrot.slane %v2365, 2
      %v2367 = vadd.f32 %v2365, %v2366
      %v2368 = vrot.slane %v2367, 1
      %v2369 = vadd.f32 %v2367, %v2368
      %vm2370 = vcmask 57344
      %2371 = vst.msk [vmem:[%s181] sm:$0x1] %vm2370, %v2268
      %2372 = vst.msk [vmem:[%s181 + $0x1] sm:$0x1] %vm2370, %v2369
      %2373 = vst.msk [vmem:[%s177] sm:$0xff] %vm1638, %v2042
      %2374 = vst.msk [vmem:[%s177 + $0x8] sm:$0xff] %vm1638, %v2047
      %2375 = vst.msk [vmem:[%s177 + $0x10] sm:$0xff] %vm1638, %v2052
      %2376 = vst.msk [vmem:[%s177 + $0x18] sm:$0xff] %vm1638, %v2057
      %2377 = vst.msk [vmem:[%s177 + $0x20] sm:$0xff] %vm1638, %v2062
      %2378 = vst.msk [vmem:[%s177 + $0x28] sm:$0xff] %vm1638, %v2067
      %2379 = vst.msk [vmem:[%s177 + $0x30] sm:$0xff] %vm1638, %v2072
      %2380 = vst.msk [vmem:[%s177 + $0x38] sm:$0xff] %vm1638, %v2077
      %2381 = vst.msk [vmem:[%s177 + $0x40] sm:$0xff] %vm1638, %v2082
      %2382 = vst.msk [vmem:[%s177 + $0x48] sm:$0xff] %vm1638, %v2087
      %2383 = vst.msk [vmem:[%s177 + $0x50] sm:$0xff] %vm1638, %v2092
      %2384 = vst.msk [vmem:[%s177 + $0x58] sm:$0xff] %vm1638, %v2097
      %2385 = vst.msk [vmem:[%s177 + $0x60] sm:$0xff] %vm1638, %v2102
      %2386 = vst.msk [vmem:[%s177 + $0x68] sm:$0xff] %vm1638, %v2107
      %2387 = vst.msk [vmem:[%s177 + $0x70] sm:$0xff] %vm1638, %v2112
      %2388 = vst.msk [vmem:[%s177 + $0x78] sm:$0xff] %vm1638, %v2117
      %2389 = vst.msk [vmem:[%s177 + $0x80] sm:$0xff] %vm1638, %v2122
      %2390 = vst.msk [vmem:[%s177 + $0x88] sm:$0xff] %vm1638, %v2127
      %2391 = vst.msk [vmem:[%s177 + $0x90] sm:$0xff] %vm1638, %v2132
      %2392 = vst.msk [vmem:[%s177 + $0x98] sm:$0xff] %vm1638, %v2137
      %2393 = vst.msk [vmem:[%s177 + $0xa0] sm:$0xff] %vm1638, %v2142
      %2394 = vst.msk [vmem:[%s177 + $0xa8] sm:$0xff] %vm1638, %v2147
      %2395 = vst.msk [vmem:[%s177 + $0xb0] sm:$0xff] %vm1638, %v2152
      %2396 = vst.msk [vmem:[%s177 + $0xb8] sm:$0xff] %vm1638, %v2157
      %2397 = vst.msk [vmem:[%s177 + $0xc0] sm:$0xff] %vm1638, %v2162
      %2398 = vst.msk [vmem:[%s177 + $0xc8] sm:$0xff] %vm1638, %v2167
      %2399 = vst.msk [vmem:[%s177 + $0xd0] sm:$0xff] %vm1638, %v2172
      %2400 = vst.msk [vmem:[%s177 + $0xd8] sm:$0xff] %vm1638, %v2177
      %2401 = vst.msk [vmem:[%s177 + $0xe0] sm:$0xff] %vm1638, %v2182
      %2402 = vst.msk [vmem:[%s177 + $0xe8] sm:$0xff] %vm1638, %v2187
      %2403 = vst.msk [vmem:[%s177 + $0xf0] sm:$0xff] %vm1638, %v2192
      %2404 = vst.msk [vmem:[%s177 + $0xf8] sm:$0xff] %vm1638, %v2197
      %p2405 = scmp.lt.s32.totalorder %s15, 1
      %s2406 = scalar_select %p2405, %s15, 1
      %s2407 = smul.addr %s2406, 32
      %s2408 = smul.addr %s2407, 8
      %s2409 = scalar_lea.vmem %s2, %s2408
      %p2410 = scmp.lt.s32.totalorder %s15, 1
      %s2411 = scalar_select %p2410, %s15, 1
      %s2412 = smul.addr %s2411, 2
      %s2413 = scalar_lea.vmem %s3, %s2412
      // Predicated region
      $region29: #{double_conv_pallas.3} parent=27 // pred_check
        %p2414 = pneg %p80
      $region30: #{double_conv_pallas.3} parent=27 // pred_check_branch
        %2416 = sbr.rel (%p2414) target = $region32
      $region31: #{double_conv_pallas.3} parent=27 // pred_region
        _
      $region32: #{double_conv_pallas.3} parent=27 // pred_fallthru
        _
      // Predicated region
      $region33: #{double_conv_pallas.3} parent=27 // pred_check
        %p2417 = pneg %p106
      $region34: #{double_conv_pallas.3} parent=27 // pred_check_branch
        %2419 = sbr.rel (%p2417) target = $region36
      $region35: #{double_conv_pallas.3} parent=27 // pred_region
        _
      $region36: #{double_conv_pallas.3} parent=27 // pred_fallthru
        _
    $region28: #{double_conv_pallas.3} parent=5 // pred_fallthru
      _
    %p2420 = scmp.le.s32.totalorder 2, %s10
    // Predicated region
    $region37: #{double_conv_pallas.3} parent=5 // pred_check
      %p2421 = pneg %p2420
    $region38: #{double_conv_pallas.3} parent=5 // pred_check_branch
      %2423 = sbr.rel (%p2421) target = $region40
    $region39: #{double_conv_pallas.3} parent=5 // pred_region
      %s2424 = ssub.s32 %s10, 2
      // Predicated region
      $region41: #{double_conv_pallas.3} parent=39 // pred_check
        %p2425 = pneg %p86
      $region42: #{double_conv_pallas.3} parent=39 // pred_check_branch
        %2427 = sbr.rel (%p2425) target = $region44
      $region43: #{double_conv_pallas.3} parent=39 // pred_region
        %p2428 = scmp.lt.s32.totalorder %s16, 1
        %s2429 = scalar_select %p2428, %s16, 1
        %s2430 = smul.addr %s2429, 32
        %s2431 = smul.addr %s2430, 8
        %s2432 = scalar_lea.vmem %s2, %s2431
      $region44: #{double_conv_pallas.3} parent=39 // pred_fallthru
        _
      // Predicated region
      $region45: #{double_conv_pallas.3} parent=39 // pred_check
        %p2433 = pneg %p112
      $region46: #{double_conv_pallas.3} parent=39 // pred_check_branch
        %2435 = sbr.rel (%p2433) target = $region48
      $region47: #{double_conv_pallas.3} parent=39 // pred_region
        %p2436 = scmp.lt.s32.totalorder %s16, 1
        %s2437 = scalar_select %p2436, %s16, 1
        %s2438 = smul.addr %s2437, 2
        %s2439 = scalar_lea.vmem %s3, %s2438
      $region48: #{double_conv_pallas.3} parent=39 // pred_fallthru
        _
    $region40: #{double_conv_pallas.3} parent=5 // pred_fallthru
      _
  $region6: #{double_conv_pallas.3} parent=0 // loop_footer
    %s14 = sadd.s32 1, %s10
  $region7: #{double_conv_pallas.3} parent=0 // loop_footer_branch
    %9 = sbr.rel target = $region3
  $region8: #{double_conv_pallas.3} parent=0 // loop_exit
    _

// kernel: double_conv_pallas.4
$region0: #{double_conv_pallas.4}
  #allocation0 [shape = 'u32[]', space=smem, size = 0x4, offset = 0x4, fixed_abs, tag = 'smem constant byte address 0x4 - core index']
  #allocation1 [shape = 'u32[144,128]{1,0:T(1,128)}', space=vmem, size = 0x12000, scoped, tag = 'internal scratch']
  #allocation2 [shape = 'f32[18,18,8]{2,1,0:T(8,128)}', space=vmem, size = 0x36000, scoped, tag = 'scratch operand']
  %s0 = inlined_call_operand.vmem [shape: f32[2,256,8], index: 0, kind: input, shape index: {}]
  %s1 = inlined_call_operand.vmem [shape: f32[1,8], index: 1, kind: input, shape index: {}]
  %s2 = inlined_call_operand.vmem [shape: f32[1,8], index: 2, kind: input, shape index: {}]
  %s3 = inlined_call_operand.vmem [shape: f32[72,8], index: 3, kind: input, shape index: {}]
  %s4 = inlined_call_operand.vmem [shape: f32[2,256,8], index: 4, kind: output, shape index: {0}]
  %s5 = inlined_call_operand.vmem [shape: f32[2,2,8], index: 5, kind: output, shape index: {1}]
  %6 = xla_tuple %s4, %s5
  %s7 = sld [smem:[#allocation0]]
  $region57: #{double_conv_pallas.4} parent=0
    _
  %s9 = ssub.s32 1, %s7
  %s10 = scalar_select 0, %s9, %s7
  loop: start=0, step=1, limit=4
  $region2: #{double_conv_pallas.4} parent=0 // loop_pre_header
    _
  $region3: #{double_conv_pallas.4} parent=0 // loop_header
    %s12 = sphi 0, %s16
    %p13 = scmp.ge.s32.totalorder %s12, 4
    %s22 = sphi 0, %s24
    %s25 = sphi 0, %s22
    %s26 = sphi 0, %s25
    %s42 = sphi 0, %s26
    %s46 = sphi 0, %s46
    %s48 = sphi 0, %s46
    %s49 = sphi 0, %s48
    %s63 = sphi 0, %s49
    %s67 = sphi 0, %s67
    %s69 = sphi 0, %s67
    %s70 = sphi 0, %s69
    %s84 = sphi 0, %s70
    %s88 = sphi 0, %s88
    %s90 = sphi 0, %s88
    %s91 = sphi 0, %s90
    %s105 = sphi 0, %s91
    %s111 = sphi 0, %s113
    %s114 = sphi 0, %s111
    %s115 = sphi 0, %s114
    %s131 = sphi 0, %s115
    %s137 = sphi 0, %s139
    %s140 = sphi 0, %s137
    %s141 = sphi 0, %s140
    %s157 = sphi 0, %s141
  $region4: #{double_conv_pallas.4} parent=0 // loop_header_branch
    %15 = sbr.rel (%p13) target = $region8
  $region5: #{double_conv_pallas.4} parent=0 // loop_body
    %s17 = ssub.s32 %s12, 1
    %s18 = ssub.s32 %s12, 2
    %s19 = sadd.s32 %s12, 1
    %s20 = ssub.s32 %s12, %s19
    %p21 = scmp.eq.s32.totalorder %s20, 0
    %s23 = sadd.s32 %s22, 1
    %s24 = scalar_select %p21, %s22, %s23
    %p27 = pneg %p21
    %p28 = scmp.eq.s32.totalorder %s12, 1
    %p29 = por %p27, %p28
    %p30 = scmp.ne.s32.totalorder %s22, %s25
    %p31 = scmp.eq.s32.totalorder %s12, 0
    %p32 = por %p30, %p31
    %p33 = scmp.ne.s32.totalorder %s22, %s25
    %p34 = scmp.eq.s32.totalorder %s17, 1
    %p35 = por %p33, %p34
    %p36 = scmp.ne.s32.totalorder %s25, %s26
    %p37 = scmp.eq.s32.totalorder %s17, 0
    %p38 = por %p36, %p37
    %p39 = scmp.ne.s32.totalorder %s25, %s26
    %p40 = scmp.eq.s32.totalorder %s18, 1
    %p41 = por %p39, %p40
    %p43 = scmp.ne.s32.totalorder %s26, %s42
    %p44 = scmp.eq.s32.totalorder %s18, 0
    %p45 = por %p43, %p44
    %s47 = sadd.s32 %s46, 1
    %p50 = scmp.eq.s32.totalorder %s12, 1
    %p51 = scmp.ne.s32.totalorder %s46, %s48
    %p52 = scmp.eq.s32.totalorder %s12, 0
    %p53 = por %p51, %p52
    %p54 = scmp.ne.s32.totalorder %s46, %s48
    %p55 = scmp.eq.s32.totalorder %s17, 1
    %p56 = por %p54, %p55
    %p57 = scmp.ne.s32.totalorder %s48, %s49
    %p58 = scmp.eq.s32.totalorder %s17, 0
    %p59 = por %p57, %p58
    %p60 = scmp.ne.s32.totalorder %s48, %s49
    %p61 = scmp.eq.s32.totalorder %s18, 1
    %p62 = por %p60, %p61
    %p64 = scmp.ne.s32.totalorder %s49, %s63
    %p65 = scmp.eq.s32.totalorder %s18, 0
    %p66 = por %p64, %p65
    %s68 = sadd.s32 %s67, 1
    %p71 = scmp.eq.s32.totalorder %s12, 1
    %p72 = scmp.ne.s32.totalorder %s67, %s69
    %p73 = scmp.eq.s32.totalorder %s12, 0
    %p74 = por %p72, %p73
    %p75 = scmp.ne.s32.totalorder %s67, %s69
    %p76 = scmp.eq.s32.totalorder %s17, 1
    %p77 = por %p75, %p76
    %p78 = scmp.ne.s32.totalorder %s69, %s70
    %p79 = scmp.eq.s32.totalorder %s17, 0
    %p80 = por %p78, %p79
    %p81 = scmp.ne.s32.totalorder %s69, %s70
    %p82 = scmp.eq.s32.totalorder %s18, 1
    %p83 = por %p81, %p82
    %p85 = scmp.ne.s32.totalorder %s70, %s84
    %p86 = scmp.eq.s32.totalorder %s18, 0
    %p87 = por %p85, %p86
    %s89 = sadd.s32 %s88, 1
    %p92 = scmp.eq.s32.totalorder %s12, 1
    %p93 = scmp.ne.s32.totalorder %s88, %s90
    %p94 = scmp.eq.s32.totalorder %s12, 0
    %p95 = por %p93, %p94
    %p96 = scmp.ne.s32.totalorder %s88, %s90
    %p97 = scmp.eq.s32.totalorder %s17, 1
    %p98 = por %p96, %p97
    %p99 = scmp.ne.s32.totalorder %s90, %s91
    %p100 = scmp.eq.s32.totalorder %s17, 0
    %p101 = por %p99, %p100
    %p102 = scmp.ne.s32.totalorder %s90, %s91
    %p103 = scmp.eq.s32.totalorder %s18, 1
    %p104 = por %p102, %p103
    %p106 = scmp.ne.s32.totalorder %s91, %s105
    %p107 = scmp.eq.s32.totalorder %s18, 0
    %p108 = por %p106, %p107
    %s109 = ssub.s32 %s12, %s19
    %p110 = scmp.eq.s32.totalorder %s109, 0
    %s112 = sadd.s32 %s111, 1
    %s113 = scalar_select %p110, %s111, %s112
    %p116 = pneg %p110
    %p117 = scmp.eq.s32.totalorder %s12, 1
    %p118 = por %p116, %p117
    %p119 = scmp.ne.s32.totalorder %s111, %s114
    %p120 = scmp.eq.s32.totalorder %s12, 0
    %p121 = por %p119, %p120
    %p122 = scmp.ne.s32.totalorder %s111, %s114
    %p123 = scmp.eq.s32.totalorder %s17, 1
    %p124 = por %p122, %p123
    %p125 = scmp.ne.s32.totalorder %s114, %s115
    %p126 = scmp.eq.s32.totalorder %s17, 0
    %p127 = por %p125, %p126
    %p128 = scmp.ne.s32.totalorder %s114, %s115
    %p129 = scmp.eq.s32.totalorder %s18, 1
    %p130 = por %p128, %p129
    %p132 = scmp.ne.s32.totalorder %s115, %s131
    %p133 = scmp.eq.s32.totalorder %s18, 0
    %p134 = por %p132, %p133
    %s135 = ssub.s32 %s12, %s19
    %p136 = scmp.eq.s32.totalorder %s135, 0
    %s138 = sadd.s32 %s137, 1
    %s139 = scalar_select %p136, %s137, %s138
    %p142 = pneg %p136
    %p143 = scmp.eq.s32.totalorder %s12, 1
    %p144 = por %p142, %p143
    %p145 = scmp.ne.s32.totalorder %s137, %s140
    %p146 = scmp.eq.s32.totalorder %s12, 0
    %p147 = por %p145, %p146
    %p148 = scmp.ne.s32.totalorder %s137, %s140
    %p149 = scmp.eq.s32.totalorder %s17, 1
    %p150 = por %p148, %p149
    %p151 = scmp.ne.s32.totalorder %s140, %s141
    %p152 = scmp.eq.s32.totalorder %s17, 0
    %p153 = por %p151, %p152
    %p154 = scmp.ne.s32.totalorder %s140, %s141
    %p155 = scmp.eq.s32.totalorder %s18, 1
    %p156 = por %p154, %p155
    %p158 = scmp.ne.s32.totalorder %s141, %s157
    %p159 = scmp.eq.s32.totalorder %s18, 0
    %p160 = por %p158, %p159
    %p161 = scmp.le.s32.totalorder 1, %s12
    %p162 = scmp.lt.s32.totalorder %s12, 3
    %p163 = pnand %p161, %p162
    %p164 = pneg %p163
    // Predicated region
    $region9: #{double_conv_pallas.4} parent=5 // pred_check
      _
    $region10: #{double_conv_pallas.4} parent=5 // pred_check_branch
      %166 = sbr.rel (%p163) target = $region12
    $region11: #{double_conv_pallas.4} parent=5 // pred_region
      %s167 = ssub.s32 %s12, 1
      // Predicated region
      $region13: #{double_conv_pallas.4} parent=11 // pred_check
        %p168 = pneg %p59
      $region14: #{double_conv_pallas.4} parent=11 // pred_check_branch
        %170 = sbr.rel (%p168) target = $region16
      $region15: #{double_conv_pallas.4} parent=11 // pred_region
        _
      $region16: #{double_conv_pallas.4} parent=11 // pred_fallthru
        _
      // Predicated region
      $region17: #{double_conv_pallas.4} parent=11 // pred_check
        %p171 = pneg %p80
      $region18: #{double_conv_pallas.4} parent=11 // pred_check_branch
        %173 = sbr.rel (%p171) target = $region20
      $region19: #{double_conv_pallas.4} parent=11 // pred_region
        _
      $region20: #{double_conv_pallas.4} parent=11 // pred_fallthru
        _
      // Predicated region
      $region21: #{double_conv_pallas.4} parent=11 // pred_check
        %p174 = pneg %p101
      $region22: #{double_conv_pallas.4} parent=11 // pred_check_branch
        %176 = sbr.rel (%p174) target = $region24
      $region23: #{double_conv_pallas.4} parent=11 // pred_region
        _
      $region24: #{double_conv_pallas.4} parent=11 // pred_fallthru
        _
    $region12: #{double_conv_pallas.4} parent=5 // pred_fallthru
      _
    %p177 = scmp.lt.s32.totalorder %s12, 2
    // Predicated region
    $region25: #{double_conv_pallas.4} parent=5 // pred_check
      %p178 = pneg %p177
    $region26: #{double_conv_pallas.4} parent=5 // pred_check_branch
      %180 = sbr.rel (%p178) target = $region28
    $region27: #{double_conv_pallas.4} parent=5 // pred_region
      // Predicated region
      $region29: #{double_conv_pallas.4} parent=27 // pred_check
        %p181 = pneg %p32
      $region30: #{double_conv_pallas.4} parent=27 // pred_check_branch
        %183 = sbr.rel (%p181) target = $region32
      $region31: #{double_conv_pallas.4} parent=27 // pred_region
        %p184 = scmp.lt.s32.totalorder %s12, 1
        %s185 = scalar_select %p184, %s12, 1
        %s186 = smul.addr %s185, 32
        %s187 = smul.addr %s186, 8
        %s188 = scalar_lea.vmem %s0, %s187
      $region32: #{double_conv_pallas.4} parent=27 // pred_fallthru
        _
    $region28: #{double_conv_pallas.4} parent=5 // pred_fallthru
      _
    %p189 = scmp.le.s32.totalorder 1, %s12
    %p190 = scmp.lt.s32.totalorder %s12, 3
    %p191 = pnand %p189, %p190
    %p192 = pneg %p191
    // Predicated region
    $region33: #{double_conv_pallas.4} parent=5 // pred_check
      _
    $region34: #{double_conv_pallas.4} parent=5 // pred_check_branch
      %194 = sbr.rel (%p191) target = $region36
    $region35: #{double_conv_pallas.4} parent=5 // pred_region
      %s195 = ssub.s32 %s12, 1
      %p196 = scmp.lt.s32.totalorder %s17, 1
      %s197 = scalar_select %p196, %s17, 1
      %s198 = smul.addr %s197, 32
      %s199 = smul.addr %s198, 8
      %s200 = scalar_lea.vmem %s0, %s199
      %p201 = pneg %p38
      %p202 = pneg %p35
      %p203 = pneg %p59
      %p204 = pneg %p56
      %p205 = pneg %p80
      %p206 = pneg %p77
      %p207 = pneg %p101
      %p208 = pneg %p98
      %p209 = pneg %p127
      %p210 = pneg %p124
      %p211 = scmp.lt.s32.totalorder %s17, 1
      %s212 = scalar_select %p211, %s17, 1
      %s213 = smul.addr %s212, 32
      %s214 = smul.addr %s213, 8
      %s215 = scalar_lea.vmem %s4, %s214
      %p216 = pneg %p153
      %p217 = pneg %p150
      %p218 = scmp.lt.s32.totalorder %s17, 1
      %s219 = scalar_select %p218, %s17, 1
      %s220 = smul.addr %s219, 2
      %s221 = scalar_lea.vmem %s5, %s220
      %p222 = scmp.lt.s32.totalorder %s17, 1
      %s223 = scalar_select %p222, %s17, 1
      %s224 = smul.addr %s223, 32
      %s225 = smul.addr %s224, 8
      %s226 = scalar_lea.vmem %s0, %s225
      %p227 = scmp.lt.s32.totalorder %s17, 1
      %s228 = scalar_select %p227, %s17, 1
      %s229 = smul.addr %s228, 32
      %s230 = smul.addr %s229, 8
      %s231 = scalar_lea.vmem %s4, %s230
      %p232 = scmp.lt.s32.totalorder %s17, 1
      %s233 = scalar_select %p232, %s17, 1
      %s234 = smul.addr %s233, 2
      %s235 = scalar_lea.vmem %s5, %s234
      %v236 = vld [vmem:[%s226] sm:$0xff]
      %v237 = vld [vmem:[%s226 + $0x8] sm:$0xff]
      %v238 = vld [vmem:[%s226 + $0x10] sm:$0xff]
      %v239 = vld [vmem:[%s226 + $0x18] sm:$0xff]
      %v240 = vld [vmem:[%s226 + $0x20] sm:$0xff]
      %v241 = vld [vmem:[%s226 + $0x28] sm:$0xff]
      %v242 = vld [vmem:[%s226 + $0x30] sm:$0xff]
      %v243 = vld [vmem:[%s226 + $0x38] sm:$0xff]
      %v244 = vld [vmem:[%s226 + $0x40] sm:$0xff]
      %v245 = vld [vmem:[%s226 + $0x48] sm:$0xff]
      %v246 = vld [vmem:[%s226 + $0x50] sm:$0xff]
      %v247 = vld [vmem:[%s226 + $0x58] sm:$0xff]
      %v248 = vld [vmem:[%s226 + $0x60] sm:$0xff]
      %v249 = vld [vmem:[%s226 + $0x68] sm:$0xff]
      %v250 = vld [vmem:[%s226 + $0x70] sm:$0xff]
      %v251 = vld [vmem:[%s226 + $0x78] sm:$0xff]
      %v252 = vld [vmem:[%s226 + $0x80] sm:$0xff]
      %v253 = vld [vmem:[%s226 + $0x88] sm:$0xff]
      %v254 = vld [vmem:[%s226 + $0x90] sm:$0xff]
      %v255 = vld [vmem:[%s226 + $0x98] sm:$0xff]
      %v256 = vld [vmem:[%s226 + $0xa0] sm:$0xff]
      %v257 = vld [vmem:[%s226 + $0xa8] sm:$0xff]
      %v258 = vld [vmem:[%s226 + $0xb0] sm:$0xff]
      %v259 = vld [vmem:[%s226 + $0xb8] sm:$0xff]
      %v260 = vld [vmem:[%s226 + $0xc0] sm:$0xff]
      %v261 = vld [vmem:[%s226 + $0xc8] sm:$0xff]
      %v262 = vld [vmem:[%s226 + $0xd0] sm:$0xff]
      %v263 = vld [vmem:[%s226 + $0xd8] sm:$0xff]
      %v264 = vld [vmem:[%s226 + $0xe0] sm:$0xff]
      %v265 = vld [vmem:[%s226 + $0xe8] sm:$0xff]
      %v266 = vld [vmem:[%s226 + $0xf0] sm:$0xff]
      %v267 = vld [vmem:[%s226 + $0xf8] sm:$0xff]
      %v268 = vld [vmem:[%s1] sm:$0x1]
      %v270 = vlaneseq
      %v271 = vshrl.u32 %v270, 7
      %v272 = vsub.s32 0, %v271
      %v273 = vrot.slane %v268, %v272
      %v275 = vmul.f32 %v236, %v273
      %v276 = vmul.f32 %v237, %v273
      %v277 = vmul.f32 %v238, %v273
      %v278 = vmul.f32 %v239, %v273
      %v279 = vmul.f32 %v240, %v273
      %v280 = vmul.f32 %v241, %v273
      %v281 = vmul.f32 %v242, %v273
      %v282 = vmul.f32 %v243, %v273
      %v283 = vmul.f32 %v244, %v273
      %v284 = vmul.f32 %v245, %v273
      %v285 = vmul.f32 %v246, %v273
      %v286 = vmul.f32 %v247, %v273
      %v287 = vmul.f32 %v248, %v273
      %v288 = vmul.f32 %v249, %v273
      %v289 = vmul.f32 %v250, %v273
      %v290 = vmul.f32 %v251, %v273
      %v291 = vmul.f32 %v252, %v273
      %v292 = vmul.f32 %v253, %v273
      %v293 = vmul.f32 %v254, %v273
      %v294 = vmul.f32 %v255, %v273
      %v295 = vmul.f32 %v256, %v273
      %v296 = vmul.f32 %v257, %v273
      %v297 = vmul.f32 %v258, %v273
      %v298 = vmul.f32 %v259, %v273
      %v299 = vmul.f32 %v260, %v273
      %v300 = vmul.f32 %v261, %v273
      %v301 = vmul.f32 %v262, %v273
      %v302 = vmul.f32 %v263, %v273
      %v303 = vmul.f32 %v264, %v273
      %v304 = vmul.f32 %v265, %v273
      %v305 = vmul.f32 %v266, %v273
      %v306 = vmul.f32 %v267, %v273
      %v307 = vld [vmem:[%s2] sm:$0x1]
      %v309 = vlaneseq
      %v310 = vshrl.u32 %v309, 7
      %v311 = vsub.s32 0, %v310
      %v312 = vrot.slane %v307, %v311
      %v314 = vadd.f32 %v275, %v312
      %v315 = vadd.f32 %v276, %v312
      %v316 = vadd.f32 %v277, %v312
      %v317 = vadd.f32 %v278, %v312
      %v318 = vadd.f32 %v279, %v312
      %v319 = vadd.f32 %v280, %v312
      %v320 = vadd.f32 %v281, %v312
      %v321 = vadd.f32 %v282, %v312
      %v322 = vadd.f32 %v283, %v312
      %v323 = vadd.f32 %v284, %v312
      %v324 = vadd.f32 %v285, %v312
      %v325 = vadd.f32 %v286, %v312
      %v326 = vadd.f32 %v287, %v312
      %v327 = vadd.f32 %v288, %v312
      %v328 = vadd.f32 %v289, %v312
      %v329 = vadd.f32 %v290, %v312
      %v330 = vadd.f32 %v291, %v312
      %v331 = vadd.f32 %v292, %v312
      %v332 = vadd.f32 %v293, %v312
      %v333 = vadd.f32 %v294, %v312
      %v334 = vadd.f32 %v295, %v312
      %v335 = vadd.f32 %v296, %v312
      %v336 = vadd.f32 %v297, %v312
      %v337 = vadd.f32 %v298, %v312
      %v338 = vadd.f32 %v299, %v312
      %v339 = vadd.f32 %v300, %v312
      %v340 = vadd.f32 %v301, %v312
      %v341 = vadd.f32 %v302, %v312
      %v342 = vadd.f32 %v303, %v312
      %v343 = vadd.f32 %v304, %v312
      %v344 = vadd.f32 %v305, %v312
      %v345 = vadd.f32 %v306, %v312
      %v346 = vmax.f32 %v314, 0.0
      %v347 = vmax.f32 %v315, 0.0
      %v348 = vmax.f32 %v316, 0.0
      %v349 = vmax.f32 %v317, 0.0
      %v350 = vmax.f32 %v318, 0.0
      %v351 = vmax.f32 %v319, 0.0
      %v352 = vmax.f32 %v320, 0.0
      %v353 = vmax.f32 %v321, 0.0
      %v354 = vmax.f32 %v322, 0.0
      %v355 = vmax.f32 %v323, 0.0
      %v356 = vmax.f32 %v324, 0.0
      %v357 = vmax.f32 %v325, 0.0
      %v358 = vmax.f32 %v326, 0.0
      %v359 = vmax.f32 %v327, 0.0
      %v360 = vmax.f32 %v328, 0.0
      %v361 = vmax.f32 %v329, 0.0
      %v362 = vmax.f32 %v330, 0.0
      %v363 = vmax.f32 %v331, 0.0
      %v364 = vmax.f32 %v332, 0.0
      %v365 = vmax.f32 %v333, 0.0
      %v366 = vmax.f32 %v334, 0.0
      %v367 = vmax.f32 %v335, 0.0
      %v368 = vmax.f32 %v336, 0.0
      %v369 = vmax.f32 %v337, 0.0
      %v370 = vmax.f32 %v338, 0.0
      %v371 = vmax.f32 %v339, 0.0
      %v372 = vmax.f32 %v340, 0.0
      %v373 = vmax.f32 %v341, 0.0
      %v374 = vmax.f32 %v342, 0.0
      %v375 = vmax.f32 %v343, 0.0
      %v376 = vmax.f32 %v344, 0.0
      %v377 = vmax.f32 %v345, 0.0
      %vm378 = vcmask 64512
      %379 = vst.msk [vmem:[#allocation2] sm:$0xff] %vm378, 0.0
      %380 = vst.msk [vmem:[#allocation2 + $0x8] sm:$0xff] %vm378, 0.0
      %vm381 = vcmask 58368
      %382 = vst.msk [vmem:[#allocation2 + $0x10] sm:$0x3] %vm381, 0.0
      %s383 = scalar_lea.vmem [#allocation2], 408
      %384 = vst.msk [vmem:[%s383] sm:$0xff] %vm378, 0.0
      %385 = vst.msk [vmem:[%s383 + $0x8] sm:$0xff] %vm378, 0.0
      %386 = vst.msk [vmem:[%s383 + $0x10] sm:$0x3] %vm381, 0.0
      %vm387 = vcmask 57344
      %388 = vst.msk [vmem:[#allocation2] sm:$0x1] %vm387, 0.0
      %389 = vst.msk [vmem:[#allocation2 + $0x18] sm:$0x1] %vm387, 0.0
      %390 = vst.msk [vmem:[#allocation2 + $0x30] sm:$0x1] %vm387, 0.0
      %391 = vst.msk [vmem:[#allocation2 + $0x48] sm:$0x1] %vm387, 0.0
      %392 = vst.msk [vmem:[#allocation2 + $0x60] sm:$0x1] %vm387, 0.0
      %393 = vst.msk [vmem:[#allocation2 + $0x78] sm:$0x1] %vm387, 0.0
      %394 = vst.msk [vmem:[#allocation2 + $0x90] sm:$0x1] %vm387, 0.0
      %395 = vst.msk [vmem:[#allocation2 + $0xa8] sm:$0x1] %vm387, 0.0
      %396 = vst.msk [vmem:[#allocation2 + $0xc0] sm:$0x1] %vm387, 0.0
      %397 = vst.msk [vmem:[#allocation2 + $0xd8] sm:$0x1] %vm387, 0.0
      %398 = vst.msk [vmem:[#allocation2 + $0xf0] sm:$0x1] %vm387, 0.0
      %399 = vst.msk [vmem:[#allocation2 + $0x108] sm:$0x1] %vm387, 0.0
      %400 = vst.msk [vmem:[#allocation2 + $0x120] sm:$0x1] %vm387, 0.0
      %401 = vst.msk [vmem:[#allocation2 + $0x138] sm:$0x1] %vm387, 0.0
      %402 = vst.msk [vmem:[#allocation2 + $0x150] sm:$0x1] %vm387, 0.0
      %403 = vst.msk [vmem:[#allocation2 + $0x168] sm:$0x1] %vm387, 0.0
      %404 = vst.msk [vmem:[#allocation2 + $0x180] sm:$0x1] %vm387, 0.0
      %405 = vst.msk [vmem:[#allocation2 + $0x198] sm:$0x1] %vm387, 0.0
      %406 = vst.msk [vmem:[#allocation2 + $0x11] sm:$0x1] %vm387, 0.0
      %407 = vst.msk [vmem:[#allocation2 + $0x29] sm:$0x1] %vm387, 0.0
      %408 = vst.msk [vmem:[#allocation2 + $0x41] sm:$0x1] %vm387, 0.0
      %409 = vst.msk [vmem:[#allocation2 + $0x59] sm:$0x1] %vm387, 0.0
      %410 = vst.msk [vmem:[#allocation2 + $0x71] sm:$0x1] %vm387, 0.0
      %411 = vst.msk [vmem:[#allocation2 + $0x89] sm:$0x1] %vm387, 0.0
      %412 = vst.msk [vmem:[#allocation2 + $0xa1] sm:$0x1] %vm387, 0.0
      %413 = vst.msk [vmem:[#allocation2 + $0xb9] sm:$0x1] %vm387, 0.0
      %414 = vst.msk [vmem:[#allocation2 + $0xd1] sm:$0x1] %vm387, 0.0
      %415 = vst.msk [vmem:[#allocation2 + $0xe9] sm:$0x1] %vm387, 0.0
      %416 = vst.msk [vmem:[#allocation2 + $0x101] sm:$0x1] %vm387, 0.0
      %417 = vst.msk [vmem:[#allocation2 + $0x119] sm:$0x1] %vm387, 0.0
      %418 = vst.msk [vmem:[#allocation2 + $0x131] sm:$0x1] %vm387, 0.0
      %419 = vst.msk [vmem:[#allocation2 + $0x149] sm:$0x1] %vm387, 0.0
      %420 = vst.msk [vmem:[#allocation2 + $0x161] sm:$0x1] %vm387, 0.0
      %421 = vst.msk [vmem:[#allocation2 + $0x179] sm:$0x1] %vm387, 0.0
      %422 = vst.msk [vmem:[#allocation2 + $0x191] sm:$0x1] %vm387, 0.0
      %423 = vst.msk [vmem:[#allocation2 + $0x1a9] sm:$0x1] %vm387, 0.0
      %s424 = scalar_lea.vmem [#allocation2], 24
      %425 = vst.msk [vmem:[%s424 + $0x1] sm:$0xff] %vm378, %v346
      %426 = vst.msk [vmem:[%s424 + $0x9] sm:$0xff] %vm378, %v347
      %427 = vst.msk [vmem:[%s424 + $0x19] sm:$0xff] %vm378, %v348
      %428 = vst.msk [vmem:[%s424 + $0x21] sm:$0xff] %vm378, %v349
      %429 = vst.msk [vmem:[%s424 + $0x31] sm:$0xff] %vm378, %v350
      %430 = vst.msk [vmem:[%s424 + $0x39] sm:$0xff] %vm378, %v351
      %431 = vst.msk [vmem:[%s424 + $0x49] sm:$0xff] %vm378, %v352
      %432 = vst.msk [vmem:[%s424 + $0x51] sm:$0xff] %vm378, %v353
      %433 = vst.msk [vmem:[%s424 + $0x61] sm:$0xff] %vm378, %v354
      %434 = vst.msk [vmem:[%s424 + $0x69] sm:$0xff] %vm378, %v355
      %435 = vst.msk [vmem:[%s424 + $0x79] sm:$0xff] %vm378, %v356
      %436 = vst.msk [vmem:[%s424 + $0x81] sm:$0xff] %vm378, %v357
      %437 = vst.msk [vmem:[%s424 + $0x91] sm:$0xff] %vm378, %v358
      %438 = vst.msk [vmem:[%s424 + $0x99] sm:$0xff] %vm378, %v359
      %439 = vst.msk [vmem:[%s424 + $0xa9] sm:$0xff] %vm378, %v360
      %440 = vst.msk [vmem:[%s424 + $0xb1] sm:$0xff] %vm378, %v361
      %441 = vst.msk [vmem:[%s424 + $0xc1] sm:$0xff] %vm378, %v362
      %442 = vst.msk [vmem:[%s424 + $0xc9] sm:$0xff] %vm378, %v363
      %443 = vst.msk [vmem:[%s424 + $0xd9] sm:$0xff] %vm378, %v364
      %444 = vst.msk [vmem:[%s424 + $0xe1] sm:$0xff] %vm378, %v365
      %445 = vst.msk [vmem:[%s424 + $0xf1] sm:$0xff] %vm378, %v366
      %446 = vst.msk [vmem:[%s424 + $0xf9] sm:$0xff] %vm378, %v367
      %447 = vst.msk [vmem:[%s424 + $0x109] sm:$0xff] %vm378, %v368
      %448 = vst.msk [vmem:[%s424 + $0x111] sm:$0xff] %vm378, %v369
      %449 = vst.msk [vmem:[%s424 + $0x121] sm:$0xff] %vm378, %v370
      %450 = vst.msk [vmem:[%s424 + $0x129] sm:$0xff] %vm378, %v371
      %451 = vst.msk [vmem:[%s424 + $0x139] sm:$0xff] %vm378, %v372
      %452 = vst.msk [vmem:[%s424 + $0x141] sm:$0xff] %vm378, %v373
      %453 = vst.msk [vmem:[%s424 + $0x151] sm:$0xff] %vm378, %v374
      %454 = vst.msk [vmem:[%s424 + $0x159] sm:$0xff] %vm378, %v375
      %455 = vst.msk [vmem:[%s424 + $0x169] sm:$0xff] %vm378, %v376
      %456 = vst.msk [vmem:[%s424 + $0x171] sm:$0xff] %vm378, %v377
      %v457 = vld [vmem:[#allocation2] sm:$0xff]
      %v458 = vld [vmem:[#allocation2 + $0x8] sm:$0xff]
      %v459 = vld [vmem:[#allocation2 + $0x18] sm:$0xff]
      %v460 = vld [vmem:[#allocation2 + $0x20] sm:$0xff]
      %v461 = vld [vmem:[#allocation2 + $0x30] sm:$0xff]
      %v462 = vld [vmem:[#allocation2 + $0x38] sm:$0xff]
      %v463 = vld [vmem:[#allocation2 + $0x48] sm:$0xff]
      %v464 = vld [vmem:[#allocation2 + $0x50] sm:$0xff]
      %v465 = vld [vmem:[#allocation2 + $0x60] sm:$0xff]
      %v466 = vld [vmem:[#allocation2 + $0x68] sm:$0xff]
      %v467 = vld [vmem:[#allocation2 + $0x78] sm:$0xff]
      %v468 = vld [vmem:[#allocation2 + $0x80] sm:$0xff]
      %v469 = vld [vmem:[#allocation2 + $0x90] sm:$0xff]
      %v470 = vld [vmem:[#allocation2 + $0x98] sm:$0xff]
      %v471 = vld [vmem:[#allocation2 + $0xa8] sm:$0xff]
      %v472 = vld [vmem:[#allocation2 + $0xb0] sm:$0xff]
      %v473 = vld [vmem:[#allocation2 + $0xc0] sm:$0xff]
      %v474 = vld [vmem:[#allocation2 + $0xc8] sm:$0xff]
      %v475 = vld [vmem:[#allocation2 + $0xd8] sm:$0xff]
      %v476 = vld [vmem:[#allocation2 + $0xe0] sm:$0xff]
      %v477 = vld [vmem:[#allocation2 + $0xf0] sm:$0xff]
      %v478 = vld [vmem:[#allocation2 + $0xf8] sm:$0xff]
      %v479 = vld [vmem:[#allocation2 + $0x108] sm:$0xff]
      %v480 = vld [vmem:[#allocation2 + $0x110] sm:$0xff]
      %v481 = vld [vmem:[#allocation2 + $0x120] sm:$0xff]
      %v482 = vld [vmem:[#allocation2 + $0x128] sm:$0xff]
      %v483 = vld [vmem:[#allocation2 + $0x138] sm:$0xff]
      %v484 = vld [vmem:[#allocation2 + $0x140] sm:$0xff]
      %v485 = vld [vmem:[#allocation2 + $0x150] sm:$0xff]
      %v486 = vld [vmem:[#allocation2 + $0x158] sm:$0xff]
      %v487 = vld [vmem:[#allocation2 + $0x168] sm:$0xff]
      %v488 = vld [vmem:[#allocation2 + $0x170] sm:$0xff]
      %v489 = vld [vmem:[#allocation2 + $0x1] sm:$0xff]
      %v490 = vld [vmem:[#allocation2 + $0x9] sm:$0xff]
      %v491 = vld [vmem:[#allocation2 + $0x19] sm:$0xff]
      %v492 = vld [vmem:[#allocation2 + $0x21] sm:$0xff]
      %v493 = vld [vmem:[#allocation2 + $0x31] sm:$0xff]
      %v494 = vld [vmem:[#allocation2 + $0x39] sm:$0xff]
      %v495 = vld [vmem:[#allocation2 + $0x49] sm:$0xff]
      %v496 = vld [vmem:[#allocation2 + $0x51] sm:$0xff]
      %v497 = vld [vmem:[#allocation2 + $0x61] sm:$0xff]
      %v498 = vld [vmem:[#allocation2 + $0x69] sm:$0xff]
      %v499 = vld [vmem:[#allocation2 + $0x79] sm:$0xff]
      %v500 = vld [vmem:[#allocation2 + $0x81] sm:$0xff]
      %v501 = vld [vmem:[#allocation2 + $0x91] sm:$0xff]
      %v502 = vld [vmem:[#allocation2 + $0x99] sm:$0xff]
      %v503 = vld [vmem:[#allocation2 + $0xa9] sm:$0xff]
      %v504 = vld [vmem:[#allocation2 + $0xb1] sm:$0xff]
      %v505 = vld [vmem:[#allocation2 + $0xc1] sm:$0xff]
      %v506 = vld [vmem:[#allocation2 + $0xc9] sm:$0xff]
      %v507 = vld [vmem:[#allocation2 + $0xd9] sm:$0xff]
      %v508 = vld [vmem:[#allocation2 + $0xe1] sm:$0xff]
      %v509 = vld [vmem:[#allocation2 + $0xf1] sm:$0xff]
      %v510 = vld [vmem:[#allocation2 + $0xf9] sm:$0xff]
      %v511 = vld [vmem:[#allocation2 + $0x109] sm:$0xff]
      %v512 = vld [vmem:[#allocation2 + $0x111] sm:$0xff]
      %v513 = vld [vmem:[#allocation2 + $0x121] sm:$0xff]
      %v514 = vld [vmem:[#allocation2 + $0x129] sm:$0xff]
      %v515 = vld [vmem:[#allocation2 + $0x139] sm:$0xff]
      %v516 = vld [vmem:[#allocation2 + $0x141] sm:$0xff]
      %v517 = vld [vmem:[#allocation2 + $0x151] sm:$0xff]
      %v518 = vld [vmem:[#allocation2 + $0x159] sm:$0xff]
      %v519 = vld [vmem:[#allocation2 + $0x169] sm:$0xff]
      %v520 = vld [vmem:[#allocation2 + $0x171] sm:$0xff]
      %v521 = vld [vmem:[#allocation2 + $0x2] sm:$0xff]
      %v522 = vld [vmem:[#allocation2 + $0xa] sm:$0xff]
      %v523 = vld [vmem:[#allocation2 + $0x1a] sm:$0xff]
      %v524 = vld [vmem:[#allocation2 + $0x22] sm:$0xff]
      %v525 = vld [vmem:[#allocation2 + $0x32] sm:$0xff]
      %v526 = vld [vmem:[#allocation2 + $0x3a] sm:$0xff]
      %v527 = vld [vmem:[#allocation2 + $0x4a] sm:$0xff]
      %v528 = vld [vmem:[#allocation2 + $0x52] sm:$0xff]
      %v529 = vld [vmem:[#allocation2 + $0x62] sm:$0xff]
      %v530 = vld [vmem:[#allocation2 + $0x6a] sm:$0xff]
      %v531 = vld [vmem:[#allocation2 + $0x7a] sm:$0xff]
      %v532 = vld [vmem:[#allocation2 + $0x82] sm:$0xff]
      %v533 = vld [vmem:[#allocation2 + $0x92] sm:$0xff]
      %v534 = vld [vmem:[#allocation2 + $0x9a] sm:$0xff]
      %v535 = vld [vmem:[#allocation2 + $0xaa] sm:$0xff]
      %v536 = vld [vmem:[#allocation2 + $0xb2] sm:$0xff]
      %v537 = vld [vmem:[#allocation2 + $0xc2] sm:$0xff]
      %v538 = vld [vmem:[#allocation2 + $0xca] sm:$0xff]
      %v539 = vld [vmem:[#allocation2 + $0xda] sm:$0xff]
      %v540 = vld [vmem:[#allocation2 + $0xe2] sm:$0xff]
      %v541 = vld [vmem:[#allocation2 + $0xf2] sm:$0xff]
      %v542 = vld [vmem:[#allocation2 + $0xfa] sm:$0xff]
      %v543 = vld [vmem:[#allocation2 + $0x10a] sm:$0xff]
      %v544 = vld [vmem:[#allocation2 + $0x112] sm:$0xff]
      %v545 = vld [vmem:[#allocation2 + $0x122] sm:$0xff]
      %v546 = vld [vmem:[#allocation2 + $0x12a] sm:$0xff]
      %v547 = vld [vmem:[#allocation2 + $0x13a] sm:$0xff]
      %v548 = vld [vmem:[#allocation2 + $0x142] sm:$0xff]
      %v549 = vld [vmem:[#allocation2 + $0x152] sm:$0xff]
      %v550 = vld [vmem:[#allocation2 + $0x15a] sm:$0xff]
      %v551 = vld [vmem:[#allocation2 + $0x16a] sm:$0xff]
      %v552 = vld [vmem:[#allocation2 + $0x172] sm:$0xff]
      %v553 = vld [vmem:[%s424] sm:$0xff]
      %v554 = vld [vmem:[%s424 + $0x8] sm:$0xff]
      %v555 = vld [vmem:[%s424 + $0x18] sm:$0xff]
      %v556 = vld [vmem:[%s424 + $0x20] sm:$0xff]
      %v557 = vld [vmem:[%s424 + $0x30] sm:$0xff]
      %v558 = vld [vmem:[%s424 + $0x38] sm:$0xff]
      %v559 = vld [vmem:[%s424 + $0x48] sm:$0xff]
      %v560 = vld [vmem:[%s424 + $0x50] sm:$0xff]
      %v561 = vld [vmem:[%s424 + $0x60] sm:$0xff]
      %v562 = vld [vmem:[%s424 + $0x68] sm:$0xff]
      %v563 = vld [vmem:[%s424 + $0x78] sm:$0xff]
      %v564 = vld [vmem:[%s424 + $0x80] sm:$0xff]
      %v565 = vld [vmem:[%s424 + $0x90] sm:$0xff]
      %v566 = vld [vmem:[%s424 + $0x98] sm:$0xff]
      %v567 = vld [vmem:[%s424 + $0xa8] sm:$0xff]
      %v568 = vld [vmem:[%s424 + $0xb0] sm:$0xff]
      %v569 = vld [vmem:[%s424 + $0xc0] sm:$0xff]
      %v570 = vld [vmem:[%s424 + $0xc8] sm:$0xff]
      %v571 = vld [vmem:[%s424 + $0xd8] sm:$0xff]
      %v572 = vld [vmem:[%s424 + $0xe0] sm:$0xff]
      %v573 = vld [vmem:[%s424 + $0xf0] sm:$0xff]
      %v574 = vld [vmem:[%s424 + $0xf8] sm:$0xff]
      %v575 = vld [vmem:[%s424 + $0x108] sm:$0xff]
      %v576 = vld [vmem:[%s424 + $0x110] sm:$0xff]
      %v577 = vld [vmem:[%s424 + $0x120] sm:$0xff]
      %v578 = vld [vmem:[%s424 + $0x128] sm:$0xff]
      %v579 = vld [vmem:[%s424 + $0x138] sm:$0xff]
      %v580 = vld [vmem:[%s424 + $0x140] sm:$0xff]
      %v581 = vld [vmem:[%s424 + $0x150] sm:$0xff]
      %v582 = vld [vmem:[%s424 + $0x158] sm:$0xff]
      %v583 = vld [vmem:[%s424 + $0x168] sm:$0xff]
      %v584 = vld [vmem:[%s424 + $0x170] sm:$0xff]
      %v585 = vld [vmem:[%s424 + $0x1] sm:$0xff]
      %v586 = vld [vmem:[%s424 + $0x9] sm:$0xff]
      %v587 = vld [vmem:[%s424 + $0x19] sm:$0xff]
      %v588 = vld [vmem:[%s424 + $0x21] sm:$0xff]
      %v589 = vld [vmem:[%s424 + $0x31] sm:$0xff]
      %v590 = vld [vmem:[%s424 + $0x39] sm:$0xff]
      %v591 = vld [vmem:[%s424 + $0x49] sm:$0xff]
      %v592 = vld [vmem:[%s424 + $0x51] sm:$0xff]
      %v593 = vld [vmem:[%s424 + $0x61] sm:$0xff]
      %v594 = vld [vmem:[%s424 + $0x69] sm:$0xff]
      %v595 = vld [vmem:[%s424 + $0x79] sm:$0xff]
      %v596 = vld [vmem:[%s424 + $0x81] sm:$0xff]
      %v597 = vld [vmem:[%s424 + $0x91] sm:$0xff]
      %v598 = vld [vmem:[%s424 + $0x99] sm:$0xff]
      %v599 = vld [vmem:[%s424 + $0xa9] sm:$0xff]
      %v600 = vld [vmem:[%s424 + $0xb1] sm:$0xff]
      %v601 = vld [vmem:[%s424 + $0xc1] sm:$0xff]
      %v602 = vld [vmem:[%s424 + $0xc9] sm:$0xff]
      %v603 = vld [vmem:[%s424 + $0xd9] sm:$0xff]
      %v604 = vld [vmem:[%s424 + $0xe1] sm:$0xff]
      %v605 = vld [vmem:[%s424 + $0xf1] sm:$0xff]
      %v606 = vld [vmem:[%s424 + $0xf9] sm:$0xff]
      %v607 = vld [vmem:[%s424 + $0x109] sm:$0xff]
      %v608 = vld [vmem:[%s424 + $0x111] sm:$0xff]
      %v609 = vld [vmem:[%s424 + $0x121] sm:$0xff]
      %v610 = vld [vmem:[%s424 + $0x129] sm:$0xff]
      %v611 = vld [vmem:[%s424 + $0x139] sm:$0xff]
      %v612 = vld [vmem:[%s424 + $0x141] sm:$0xff]
      %v613 = vld [vmem:[%s424 + $0x151] sm:$0xff]
      %v614 = vld [vmem:[%s424 + $0x159] sm:$0xff]
      %v615 = vld [vmem:[%s424 + $0x169] sm:$0xff]
      %v616 = vld [vmem:[%s424 + $0x171] sm:$0xff]
      %v617 = vld [vmem:[%s424 + $0x2] sm:$0xff]
      %v618 = vld [vmem:[%s424 + $0xa] sm:$0xff]
      %v619 = vld [vmem:[%s424 + $0x1a] sm:$0xff]
      %v620 = vld [vmem:[%s424 + $0x22] sm:$0xff]
      %v621 = vld [vmem:[%s424 + $0x32] sm:$0xff]
      %v622 = vld [vmem:[%s424 + $0x3a] sm:$0xff]
      %v623 = vld [vmem:[%s424 + $0x4a] sm:$0xff]
      %v624 = vld [vmem:[%s424 + $0x52] sm:$0xff]
      %v625 = vld [vmem:[%s424 + $0x62] sm:$0xff]
      %v626 = vld [vmem:[%s424 + $0x6a] sm:$0xff]
      %v627 = vld [vmem:[%s424 + $0x7a] sm:$0xff]
      %v628 = vld [vmem:[%s424 + $0x82] sm:$0xff]
      %v629 = vld [vmem:[%s424 + $0x92] sm:$0xff]
      %v630 = vld [vmem:[%s424 + $0x9a] sm:$0xff]
      %v631 = vld [vmem:[%s424 + $0xaa] sm:$0xff]
      %v632 = vld [vmem:[%s424 + $0xb2] sm:$0xff]
      %v633 = vld [vmem:[%s424 + $0xc2] sm:$0xff]
      %v634 = vld [vmem:[%s424 + $0xca] sm:$0xff]
      %v635 = vld [vmem:[%s424 + $0xda] sm:$0xff]
      %v636 = vld [vmem:[%s424 + $0xe2] sm:$0xff]
      %v637 = vld [vmem:[%s424 + $0xf2] sm:$0xff]
      %v638 = vld [vmem:[%s424 + $0xfa] sm:$0xff]
      %v639 = vld [vmem:[%s424 + $0x10a] sm:$0xff]
      %v640 = vld [vmem:[%s424 + $0x112] sm:$0xff]
      %v641 = vld [vmem:[%s424 + $0x122] sm:$0xff]
      %v642 = vld [vmem:[%s424 + $0x12a] sm:$0xff]
      %v643 = vld [vmem:[%s424 + $0x13a] sm:$0xff]
      %v644 = vld [vmem:[%s424 + $0x142] sm:$0xff]
      %v645 = vld [vmem:[%s424 + $0x152] sm:$0xff]
      %v646 = vld [vmem:[%s424 + $0x15a] sm:$0xff]
      %v647 = vld [vmem:[%s424 + $0x16a] sm:$0xff]
      %v648 = vld [vmem:[%s424 + $0x172] sm:$0xff]
      %s649 = scalar_lea.vmem [#allocation2], 48
      %v650 = vld [vmem:[%s649] sm:$0xff]
      %v651 = vld [vmem:[%s649 + $0x8] sm:$0xff]
      %v652 = vld [vmem:[%s649 + $0x18] sm:$0xff]
      %v653 = vld [vmem:[%s649 + $0x20] sm:$0xff]
      %v654 = vld [vmem:[%s649 + $0x30] sm:$0xff]
      %v655 = vld [vmem:[%s649 + $0x38] sm:$0xff]
      %v656 = vld [vmem:[%s649 + $0x48] sm:$0xff]
      %v657 = vld [vmem:[%s649 + $0x50] sm:$0xff]
      %v658 = vld [vmem:[%s649 + $0x60] sm:$0xff]
      %v659 = vld [vmem:[%s649 + $0x68] sm:$0xff]
      %v660 = vld [vmem:[%s649 + $0x78] sm:$0xff]
      %v661 = vld [vmem:[%s649 + $0x80] sm:$0xff]
      %v662 = vld [vmem:[%s649 + $0x90] sm:$0xff]
      %v663 = vld [vmem:[%s649 + $0x98] sm:$0xff]
      %v664 = vld [vmem:[%s649 + $0xa8] sm:$0xff]
      %v665 = vld [vmem:[%s649 + $0xb0] sm:$0xff]
      %v666 = vld [vmem:[%s649 + $0xc0] sm:$0xff]
      %v667 = vld [vmem:[%s649 + $0xc8] sm:$0xff]
      %v668 = vld [vmem:[%s649 + $0xd8] sm:$0xff]
      %v669 = vld [vmem:[%s649 + $0xe0] sm:$0xff]
      %v670 = vld [vmem:[%s649 + $0xf0] sm:$0xff]
      %v671 = vld [vmem:[%s649 + $0xf8] sm:$0xff]
      %v672 = vld [vmem:[%s649 + $0x108] sm:$0xff]
      %v673 = vld [vmem:[%s649 + $0x110] sm:$0xff]
      %v674 = vld [vmem:[%s649 + $0x120] sm:$0xff]
      %v675 = vld [vmem:[%s649 + $0x128] sm:$0xff]
      %v676 = vld [vmem:[%s649 + $0x138] sm:$0xff]
      %v677 = vld [vmem:[%s649 + $0x140] sm:$0xff]
      %v678 = vld [vmem:[%s649 + $0x150] sm:$0xff]
      %v679 = vld [vmem:[%s649 + $0x158] sm:$0xff]
      %v680 = vld [vmem:[%s649 + $0x168] sm:$0xff]
      %v681 = vld [vmem:[%s649 + $0x170] sm:$0xff]
      %v682 = vld [vmem:[%s649 + $0x1] sm:$0xff]
      %v683 = vld [vmem:[%s649 + $0x9] sm:$0xff]
      %v684 = vld [vmem:[%s649 + $0x19] sm:$0xff]
      %v685 = vld [vmem:[%s649 + $0x21] sm:$0xff]
      %v686 = vld [vmem:[%s649 + $0x31] sm:$0xff]
      %v687 = vld [vmem:[%s649 + $0x39] sm:$0xff]
      %v688 = vld [vmem:[%s649 + $0x49] sm:$0xff]
      %v689 = vld [vmem:[%s649 + $0x51] sm:$0xff]
      %v690 = vld [vmem:[%s649 + $0x61] sm:$0xff]
      %v691 = vld [vmem:[%s649 + $0x69] sm:$0xff]
      %v692 = vld [vmem:[%s649 + $0x79] sm:$0xff]
      %v693 = vld [vmem:[%s649 + $0x81] sm:$0xff]
      %v694 = vld [vmem:[%s649 + $0x91] sm:$0xff]
      %v695 = vld [vmem:[%s649 + $0x99] sm:$0xff]
      %v696 = vld [vmem:[%s649 + $0xa9] sm:$0xff]
      %v697 = vld [vmem:[%s649 + $0xb1] sm:$0xff]
      %v698 = vld [vmem:[%s649 + $0xc1] sm:$0xff]
      %v699 = vld [vmem:[%s649 + $0xc9] sm:$0xff]
      %v700 = vld [vmem:[%s649 + $0xd9] sm:$0xff]
      %v701 = vld [vmem:[%s649 + $0xe1] sm:$0xff]
      %v702 = vld [vmem:[%s649 + $0xf1] sm:$0xff]
      %v703 = vld [vmem:[%s649 + $0xf9] sm:$0xff]
      %v704 = vld [vmem:[%s649 + $0x109] sm:$0xff]
      %v705 = vld [vmem:[%s649 + $0x111] sm:$0xff]
      %v706 = vld [vmem:[%s649 + $0x121] sm:$0xff]
      %v707 = vld [vmem:[%s649 + $0x129] sm:$0xff]
      %v708 = vld [vmem:[%s649 + $0x139] sm:$0xff]
      %v709 = vld [vmem:[%s649 + $0x141] sm:$0xff]
      %v710 = vld [vmem:[%s649 + $0x151] sm:$0xff]
      %v711 = vld [vmem:[%s649 + $0x159] sm:$0xff]
      %v712 = vld [vmem:[%s649 + $0x169] sm:$0xff]
      %v713 = vld [vmem:[%s649 + $0x171] sm:$0xff]
      %v714 = vld [vmem:[%s649 + $0x2] sm:$0xff]
      %v715 = vld [vmem:[%s649 + $0xa] sm:$0xff]
      %v716 = vld [vmem:[%s649 + $0x1a] sm:$0xff]
      %v717 = vld [vmem:[%s649 + $0x22] sm:$0xff]
      %v718 = vld [vmem:[%s649 + $0x32] sm:$0xff]
      %v719 = vld [vmem:[%s649 + $0x3a] sm:$0xff]
      %v720 = vld [vmem:[%s649 + $0x4a] sm:$0xff]
      %v721 = vld [vmem:[%s649 + $0x52] sm:$0xff]
      %v722 = vld [vmem:[%s649 + $0x62] sm:$0xff]
      %v723 = vld [vmem:[%s649 + $0x6a] sm:$0xff]
      %v724 = vld [vmem:[%s649 + $0x7a] sm:$0xff]
      %v725 = vld [vmem:[%s649 + $0x82] sm:$0xff]
      %v726 = vld [vmem:[%s649 + $0x92] sm:$0xff]
      %v727 = vld [vmem:[%s649 + $0x9a] sm:$0xff]
      %v728 = vld [vmem:[%s649 + $0xaa] sm:$0xff]
      %v729 = vld [vmem:[%s649 + $0xb2] sm:$0xff]
      %v730 = vld [vmem:[%s649 + $0xc2] sm:$0xff]
      %v731 = vld [vmem:[%s649 + $0xca] sm:$0xff]
      %v732 = vld [vmem:[%s649 + $0xda] sm:$0xff]
      %v733 = vld [vmem:[%s649 + $0xe2] sm:$0xff]
      %v734 = vld [vmem:[%s649 + $0xf2] sm:$0xff]
      %v735 = vld [vmem:[%s649 + $0xfa] sm:$0xff]
      %v736 = vld [vmem:[%s649 + $0x10a] sm:$0xff]
      %v737 = vld [vmem:[%s649 + $0x112] sm:$0xff]
      %v738 = vld [vmem:[%s649 + $0x122] sm:$0xff]
      %v739 = vld [vmem:[%s649 + $0x12a] sm:$0xff]
      %v740 = vld [vmem:[%s649 + $0x13a] sm:$0xff]
      %v741 = vld [vmem:[%s649 + $0x142] sm:$0xff]
      %v742 = vld [vmem:[%s649 + $0x152] sm:$0xff]
      %v743 = vld [vmem:[%s649 + $0x15a] sm:$0xff]
      %v744 = vld [vmem:[%s649 + $0x16a] sm:$0xff]
      %v745 = vld [vmem:[%s649 + $0x172] sm:$0xff]
      %778 = vrot.lane.b32.xlu0 %v489, 8
      %v779 = vpop.permute.xlu0 %778
      %780 = vrot.lane.b32.xlu0 %v490, 8
      %v781 = vpop.permute.xlu0 %780
      %782 = vrot.lane.b32.xlu0 %v491, 8
      %v783 = vpop.permute.xlu0 %782
      %784 = vrot.lane.b32.xlu0 %v492, 8
      %v785 = vpop.permute.xlu0 %784
      %786 = vrot.lane.b32.xlu0 %v493, 8
      %v787 = vpop.permute.xlu0 %786
      %788 = vrot.lane.b32.xlu0 %v494, 8
      %v789 = vpop.permute.xlu0 %788
      %790 = vrot.lane.b32.xlu0 %v495, 8
      %v791 = vpop.permute.xlu0 %790
      %792 = vrot.lane.b32.xlu0 %v496, 8
      %v793 = vpop.permute.xlu0 %792
      %794 = vrot.lane.b32.xlu0 %v497, 8
      %v795 = vpop.permute.xlu0 %794
      %796 = vrot.lane.b32.xlu0 %v498, 8
      %v797 = vpop.permute.xlu0 %796
      %798 = vrot.lane.b32.xlu0 %v499, 8
      %v799 = vpop.permute.xlu0 %798
      %800 = vrot.lane.b32.xlu0 %v500, 8
      %v801 = vpop.permute.xlu0 %800
      %802 = vrot.lane.b32.xlu0 %v501, 8
      %v803 = vpop.permute.xlu0 %802
      %804 = vrot.lane.b32.xlu0 %v502, 8
      %v805 = vpop.permute.xlu0 %804
      %806 = vrot.lane.b32.xlu0 %v503, 8
      %v807 = vpop.permute.xlu0 %806
      %808 = vrot.lane.b32.xlu0 %v504, 8
      %v809 = vpop.permute.xlu0 %808
      %810 = vrot.lane.b32.xlu0 %v505, 8
      %v811 = vpop.permute.xlu0 %810
      %812 = vrot.lane.b32.xlu0 %v506, 8
      %v813 = vpop.permute.xlu0 %812
      %814 = vrot.lane.b32.xlu0 %v507, 8
      %v815 = vpop.permute.xlu0 %814
      %816 = vrot.lane.b32.xlu0 %v508, 8
      %v817 = vpop.permute.xlu0 %816
      %818 = vrot.lane.b32.xlu0 %v509, 8
      %v819 = vpop.permute.xlu0 %818
      %820 = vrot.lane.b32.xlu0 %v510, 8
      %v821 = vpop.permute.xlu0 %820
      %822 = vrot.lane.b32.xlu0 %v511, 8
      %v823 = vpop.permute.xlu0 %822
      %824 = vrot.lane.b32.xlu0 %v512, 8
      %v825 = vpop.permute.xlu0 %824
      %826 = vrot.lane.b32.xlu0 %v513, 8
      %v827 = vpop.permute.xlu0 %826
      %828 = vrot.lane.b32.xlu0 %v514, 8
      %v829 = vpop.permute.xlu0 %828
      %830 = vrot.lane.b32.xlu0 %v515, 8
      %v831 = vpop.permute.xlu0 %830
      %832 = vrot.lane.b32.xlu0 %v516, 8
      %v833 = vpop.permute.xlu0 %832
      %834 = vrot.lane.b32.xlu0 %v517, 8
      %v835 = vpop.permute.xlu0 %834
      %836 = vrot.lane.b32.xlu0 %v518, 8
      %v837 = vpop.permute.xlu0 %836
      %838 = vrot.lane.b32.xlu0 %v519, 8
      %v839 = vpop.permute.xlu0 %838
      %840 = vrot.lane.b32.xlu0 %v520, 8
      %v841 = vpop.permute.xlu0 %840
      %906 = vrot.lane.b32.xlu0 %v521, 16
      %v907 = vpop.permute.xlu0 %906
      %908 = vrot.lane.b32.xlu0 %v522, 16
      %v909 = vpop.permute.xlu0 %908
      %910 = vrot.lane.b32.xlu0 %v523, 16
      %v911 = vpop.permute.xlu0 %910
      %912 = vrot.lane.b32.xlu0 %v524, 16
      %v913 = vpop.permute.xlu0 %912
      %914 = vrot.lane.b32.xlu0 %v525, 16
      %v915 = vpop.permute.xlu0 %914
      %916 = vrot.lane.b32.xlu0 %v526, 16
      %v917 = vpop.permute.xlu0 %916
      %918 = vrot.lane.b32.xlu0 %v527, 16
      %v919 = vpop.permute.xlu0 %918
      %920 = vrot.lane.b32.xlu0 %v528, 16
      %v921 = vpop.permute.xlu0 %920
      %922 = vrot.lane.b32.xlu0 %v529, 16
      %v923 = vpop.permute.xlu0 %922
      %924 = vrot.lane.b32.xlu0 %v530, 16
      %v925 = vpop.permute.xlu0 %924
      %926 = vrot.lane.b32.xlu0 %v531, 16
      %v927 = vpop.permute.xlu0 %926
      %928 = vrot.lane.b32.xlu0 %v532, 16
      %v929 = vpop.permute.xlu0 %928
      %930 = vrot.lane.b32.xlu0 %v533, 16
      %v931 = vpop.permute.xlu0 %930
      %932 = vrot.lane.b32.xlu0 %v534, 16
      %v933 = vpop.permute.xlu0 %932
      %934 = vrot.lane.b32.xlu0 %v535, 16
      %v935 = vpop.permute.xlu0 %934
      %936 = vrot.lane.b32.xlu0 %v536, 16
      %v937 = vpop.permute.xlu0 %936
      %938 = vrot.lane.b32.xlu0 %v537, 16
      %v939 = vpop.permute.xlu0 %938
      %940 = vrot.lane.b32.xlu0 %v538, 16
      %v941 = vpop.permute.xlu0 %940
      %942 = vrot.lane.b32.xlu0 %v539, 16
      %v943 = vpop.permute.xlu0 %942
      %944 = vrot.lane.b32.xlu0 %v540, 16
      %v945 = vpop.permute.xlu0 %944
      %946 = vrot.lane.b32.xlu0 %v541, 16
      %v947 = vpop.permute.xlu0 %946
      %948 = vrot.lane.b32.xlu0 %v542, 16
      %v949 = vpop.permute.xlu0 %948
      %950 = vrot.lane.b32.xlu0 %v543, 16
      %v951 = vpop.permute.xlu0 %950
      %952 = vrot.lane.b32.xlu0 %v544, 16
      %v953 = vpop.permute.xlu0 %952
      %954 = vrot.lane.b32.xlu0 %v545, 16
      %v955 = vpop.permute.xlu0 %954
      %956 = vrot.lane.b32.xlu0 %v546, 16
      %v957 = vpop.permute.xlu0 %956
      %958 = vrot.lane.b32.xlu0 %v547, 16
      %v959 = vpop.permute.xlu0 %958
      %960 = vrot.lane.b32.xlu0 %v548, 16
      %v961 = vpop.permute.xlu0 %960
      %962 = vrot.lane.b32.xlu0 %v549, 16
      %v963 = vpop.permute.xlu0 %962
      %964 = vrot.lane.b32.xlu0 %v550, 16
      %v965 = vpop.permute.xlu0 %964
      %966 = vrot.lane.b32.xlu0 %v551, 16
      %v967 = vpop.permute.xlu0 %966
      %968 = vrot.lane.b32.xlu0 %v552, 16
      %v969 = vpop.permute.xlu0 %968
      %1034 = vrot.lane.b32.xlu0 %v553, 24
      %v1035 = vpop.permute.xlu0 %1034
      %1036 = vrot.lane.b32.xlu0 %v554, 24
      %v1037 = vpop.permute.xlu0 %1036
      %1038 = vrot.lane.b32.xlu0 %v555, 24
      %v1039 = vpop.permute.xlu0 %1038
      %1040 = vrot.lane.b32.xlu0 %v556, 24
      %v1041 = vpop.permute.xlu0 %1040
      %1042 = vrot.lane.b32.xlu0 %v557, 24
      %v1043 = vpop.permute.xlu0 %1042
      %1044 = vrot.lane.b32.xlu0 %v558, 24
      %v1045 = vpop.permute.xlu0 %1044
      %1046 = vrot.lane.b32.xlu0 %v559, 24
      %v1047 = vpop.permute.xlu0 %1046
      %1048 = vrot.lane.b32.xlu0 %v560, 24
      %v1049 = vpop.permute.xlu0 %1048
      %1050 = vrot.lane.b32.xlu0 %v561, 24
      %v1051 = vpop.permute.xlu0 %1050
      %1052 = vrot.lane.b32.xlu0 %v562, 24
      %v1053 = vpop.permute.xlu0 %1052
      %1054 = vrot.lane.b32.xlu0 %v563, 24
      %v1055 = vpop.permute.xlu0 %1054
      %1056 = vrot.lane.b32.xlu0 %v564, 24
      %v1057 = vpop.permute.xlu0 %1056
      %1058 = vrot.lane.b32.xlu0 %v565, 24
      %v1059 = vpop.permute.xlu0 %1058
      %1060 = vrot.lane.b32.xlu0 %v566, 24
      %v1061 = vpop.permute.xlu0 %1060
      %1062 = vrot.lane.b32.xlu0 %v567, 24
      %v1063 = vpop.permute.xlu0 %1062
      %1064 = vrot.lane.b32.xlu0 %v568, 24
      %v1065 = vpop.permute.xlu0 %1064
      %1066 = vrot.lane.b32.xlu0 %v569, 24
      %v1067 = vpop.permute.xlu0 %1066
      %1068 = vrot.lane.b32.xlu0 %v570, 24
      %v1069 = vpop.permute.xlu0 %1068
      %1070 = vrot.lane.b32.xlu0 %v571, 24
      %v1071 = vpop.permute.xlu0 %1070
      %1072 = vrot.lane.b32.xlu0 %v572, 24
      %v1073 = vpop.permute.xlu0 %1072
      %1074 = vrot.lane.b32.xlu0 %v573, 24
      %v1075 = vpop.permute.xlu0 %1074
      %1076 = vrot.lane.b32.xlu0 %v574, 24
      %v1077 = vpop.permute.xlu0 %1076
      %1078 = vrot.lane.b32.xlu0 %v575, 24
      %v1079 = vpop.permute.xlu0 %1078
      %1080 = vrot.lane.b32.xlu0 %v576, 24
      %v1081 = vpop.permute.xlu0 %1080
      %1082 = vrot.lane.b32.xlu0 %v577, 24
      %v1083 = vpop.permute.xlu0 %1082
      %1084 = vrot.lane.b32.xlu0 %v578, 24
      %v1085 = vpop.permute.xlu0 %1084
      %1086 = vrot.lane.b32.xlu0 %v579, 24
      %v1087 = vpop.permute.xlu0 %1086
      %1088 = vrot.lane.b32.xlu0 %v580, 24
      %v1089 = vpop.permute.xlu0 %1088
      %1090 = vrot.lane.b32.xlu0 %v581, 24
      %v1091 = vpop.permute.xlu0 %1090
      %1092 = vrot.lane.b32.xlu0 %v582, 24
      %v1093 = vpop.permute.xlu0 %1092
      %1094 = vrot.lane.b32.xlu0 %v583, 24
      %v1095 = vpop.permute.xlu0 %1094
      %1096 = vrot.lane.b32.xlu0 %v584, 24
      %v1097 = vpop.permute.xlu0 %1096
      %1162 = vrot.lane.b32.xlu0 %v585, 32
      %v1163 = vpop.permute.xlu0 %1162
      %1164 = vrot.lane.b32.xlu0 %v586, 32
      %v1165 = vpop.permute.xlu0 %1164
      %1166 = vrot.lane.b32.xlu0 %v587, 32
      %v1167 = vpop.permute.xlu0 %1166
      %1168 = vrot.lane.b32.xlu0 %v588, 32
      %v1169 = vpop.permute.xlu0 %1168
      %1170 = vrot.lane.b32.xlu0 %v589, 32
      %v1171 = vpop.permute.xlu0 %1170
      %1172 = vrot.lane.b32.xlu0 %v590, 32
      %v1173 = vpop.permute.xlu0 %1172
      %1174 = vrot.lane.b32.xlu0 %v591, 32
      %v1175 = vpop.permute.xlu0 %1174
      %1176 = vrot.lane.b32.xlu0 %v592, 32
      %v1177 = vpop.permute.xlu0 %1176
      %1178 = vrot.lane.b32.xlu0 %v593, 32
      %v1179 = vpop.permute.xlu0 %1178
      %1180 = vrot.lane.b32.xlu0 %v594, 32
      %v1181 = vpop.permute.xlu0 %1180
      %1182 = vrot.lane.b32.xlu0 %v595, 32
      %v1183 = vpop.permute.xlu0 %1182
      %1184 = vrot.lane.b32.xlu0 %v596, 32
      %v1185 = vpop.permute.xlu0 %1184
      %1186 = vrot.lane.b32.xlu0 %v597, 32
      %v1187 = vpop.permute.xlu0 %1186
      %1188 = vrot.lane.b32.xlu0 %v598, 32
      %v1189 = vpop.permute.xlu0 %1188
      %1190 = vrot.lane.b32.xlu0 %v599, 32
      %v1191 = vpop.permute.xlu0 %1190
      %1192 = vrot.lane.b32.xlu0 %v600, 32
      %v1193 = vpop.permute.xlu0 %1192
      %1194 = vrot.lane.b32.xlu0 %v601, 32
      %v1195 = vpop.permute.xlu0 %1194
      %1196 = vrot.lane.b32.xlu0 %v602, 32
      %v1197 = vpop.permute.xlu0 %1196
      %1198 = vrot.lane.b32.xlu0 %v603, 32
      %v1199 = vpop.permute.xlu0 %1198
      %1200 = vrot.lane.b32.xlu0 %v604, 32
      %v1201 = vpop.permute.xlu0 %1200
      %1202 = vrot.lane.b32.xlu0 %v605, 32
      %v1203 = vpop.permute.xlu0 %1202
      %1204 = vrot.lane.b32.xlu0 %v606, 32
      %v1205 = vpop.permute.xlu0 %1204
      %1206 = vrot.lane.b32.xlu0 %v607, 32
      %v1207 = vpop.permute.xlu0 %1206
      %1208 = vrot.lane.b32.xlu0 %v608, 32
      %v1209 = vpop.permute.xlu0 %1208
      %1210 = vrot.lane.b32.xlu0 %v609, 32
      %v1211 = vpop.permute.xlu0 %1210
      %1212 = vrot.lane.b32.xlu0 %v610, 32
      %v1213 = vpop.permute.xlu0 %1212
      %1214 = vrot.lane.b32.xlu0 %v611, 32
      %v1215 = vpop.permute.xlu0 %1214
      %1216 = vrot.lane.b32.xlu0 %v612, 32
      %v1217 = vpop.permute.xlu0 %1216
      %1218 = vrot.lane.b32.xlu0 %v613, 32
      %v1219 = vpop.permute.xlu0 %1218
      %1220 = vrot.lane.b32.xlu0 %v614, 32
      %v1221 = vpop.permute.xlu0 %1220
      %1222 = vrot.lane.b32.xlu0 %v615, 32
      %v1223 = vpop.permute.xlu0 %1222
      %1224 = vrot.lane.b32.xlu0 %v616, 32
      %v1225 = vpop.permute.xlu0 %1224
      %1290 = vrot.lane.b32.xlu0 %v617, 40
      %v1291 = vpop.permute.xlu0 %1290
      %1292 = vrot.lane.b32.xlu0 %v618, 40
      %v1293 = vpop.permute.xlu0 %1292
      %1294 = vrot.lane.b32.xlu0 %v619, 40
      %v1295 = vpop.permute.xlu0 %1294
      %1296 = vrot.lane.b32.xlu0 %v620, 40
      %v1297 = vpop.permute.xlu0 %1296
      %1298 = vrot.lane.b32.xlu0 %v621, 40
      %v1299 = vpop.permute.xlu0 %1298
      %1300 = vrot.lane.b32.xlu0 %v622, 40
      %v1301 = vpop.permute.xlu0 %1300
      %1302 = vrot.lane.b32.xlu0 %v623, 40
      %v1303 = vpop.permute.xlu0 %1302
      %1304 = vrot.lane.b32.xlu0 %v624, 40
      %v1305 = vpop.permute.xlu0 %1304
      %1306 = vrot.lane.b32.xlu0 %v625, 40
      %v1307 = vpop.permute.xlu0 %1306
      %1308 = vrot.lane.b32.xlu0 %v626, 40
      %v1309 = vpop.permute.xlu0 %1308
      %1310 = vrot.lane.b32.xlu0 %v627, 40
      %v1311 = vpop.permute.xlu0 %1310
      %1312 = vrot.lane.b32.xlu0 %v628, 40
      %v1313 = vpop.permute.xlu0 %1312
      %1314 = vrot.lane.b32.xlu0 %v629, 40
      %v1315 = vpop.permute.xlu0 %1314
      %1316 = vrot.lane.b32.xlu0 %v630, 40
      %v1317 = vpop.permute.xlu0 %1316
      %1318 = vrot.lane.b32.xlu0 %v631, 40
      %v1319 = vpop.permute.xlu0 %1318
      %1320 = vrot.lane.b32.xlu0 %v632, 40
      %v1321 = vpop.permute.xlu0 %1320
      %1322 = vrot.lane.b32.xlu0 %v633, 40
      %v1323 = vpop.permute.xlu0 %1322
      %1324 = vrot.lane.b32.xlu0 %v634, 40
      %v1325 = vpop.permute.xlu0 %1324
      %1326 = vrot.lane.b32.xlu0 %v635, 40
      %v1327 = vpop.permute.xlu0 %1326
      %1328 = vrot.lane.b32.xlu0 %v636, 40
      %v1329 = vpop.permute.xlu0 %1328
      %1330 = vrot.lane.b32.xlu0 %v637, 40
      %v1331 = vpop.permute.xlu0 %1330
      %1332 = vrot.lane.b32.xlu0 %v638, 40
      %v1333 = vpop.permute.xlu0 %1332
      %1334 = vrot.lane.b32.xlu0 %v639, 40
      %v1335 = vpop.permute.xlu0 %1334
      %1336 = vrot.lane.b32.xlu0 %v640, 40
      %v1337 = vpop.permute.xlu0 %1336
      %1338 = vrot.lane.b32.xlu0 %v641, 40
      %v1339 = vpop.permute.xlu0 %1338
      %1340 = vrot.lane.b32.xlu0 %v642, 40
      %v1341 = vpop.permute.xlu0 %1340
      %1342 = vrot.lane.b32.xlu0 %v643, 40
      %v1343 = vpop.permute.xlu0 %1342
      %1344 = vrot.lane.b32.xlu0 %v644, 40
      %v1345 = vpop.permute.xlu0 %1344
      %1346 = vrot.lane.b32.xlu0 %v645, 40
      %v1347 = vpop.permute.xlu0 %1346
      %1348 = vrot.lane.b32.xlu0 %v646, 40
      %v1349 = vpop.permute.xlu0 %1348
      %1350 = vrot.lane.b32.xlu0 %v647, 40
      %v1351 = vpop.permute.xlu0 %1350
      %1352 = vrot.lane.b32.xlu0 %v648, 40
      %v1353 = vpop.permute.xlu0 %1352
      %1418 = vrot.lane.b32.xlu0 %v650, 48
      %v1419 = vpop.permute.xlu0 %1418
      %1420 = vrot.lane.b32.xlu0 %v651, 48
      %v1421 = vpop.permute.xlu0 %1420
      %1422 = vrot.lane.b32.xlu0 %v652, 48
      %v1423 = vpop.permute.xlu0 %1422
      %1424 = vrot.lane.b32.xlu0 %v653, 48
      %v1425 = vpop.permute.xlu0 %1424
      %1426 = vrot.lane.b32.xlu0 %v654, 48
      %v1427 = vpop.permute.xlu0 %1426
      %1428 = vrot.lane.b32.xlu0 %v655, 48
      %v1429 = vpop.permute.xlu0 %1428
      %1430 = vrot.lane.b32.xlu0 %v656, 48
      %v1431 = vpop.permute.xlu0 %1430
      %1432 = vrot.lane.b32.xlu0 %v657, 48
      %v1433 = vpop.permute.xlu0 %1432
      %1434 = vrot.lane.b32.xlu0 %v658, 48
      %v1435 = vpop.permute.xlu0 %1434
      %1436 = vrot.lane.b32.xlu0 %v659, 48
      %v1437 = vpop.permute.xlu0 %1436
      %1438 = vrot.lane.b32.xlu0 %v660, 48
      %v1439 = vpop.permute.xlu0 %1438
      %1440 = vrot.lane.b32.xlu0 %v661, 48
      %v1441 = vpop.permute.xlu0 %1440
      %1442 = vrot.lane.b32.xlu0 %v662, 48
      %v1443 = vpop.permute.xlu0 %1442
      %1444 = vrot.lane.b32.xlu0 %v663, 48
      %v1445 = vpop.permute.xlu0 %1444
      %1446 = vrot.lane.b32.xlu0 %v664, 48
      %v1447 = vpop.permute.xlu0 %1446
      %1448 = vrot.lane.b32.xlu0 %v665, 48
      %v1449 = vpop.permute.xlu0 %1448
      %1450 = vrot.lane.b32.xlu0 %v666, 48
      %v1451 = vpop.permute.xlu0 %1450
      %1452 = vrot.lane.b32.xlu0 %v667, 48
      %v1453 = vpop.permute.xlu0 %1452
      %1454 = vrot.lane.b32.xlu0 %v668, 48
      %v1455 = vpop.permute.xlu0 %1454
      %1456 = vrot.lane.b32.xlu0 %v669, 48
      %v1457 = vpop.permute.xlu0 %1456
      %1458 = vrot.lane.b32.xlu0 %v670, 48
      %v1459 = vpop.permute.xlu0 %1458
      %1460 = vrot.lane.b32.xlu0 %v671, 48
      %v1461 = vpop.permute.xlu0 %1460
      %1462 = vrot.lane.b32.xlu0 %v672, 48
      %v1463 = vpop.permute.xlu0 %1462
      %1464 = vrot.lane.b32.xlu0 %v673, 48
      %v1465 = vpop.permute.xlu0 %1464
      %1466 = vrot.lane.b32.xlu0 %v674, 48
      %v1467 = vpop.permute.xlu0 %1466
      %1468 = vrot.lane.b32.xlu0 %v675, 48
      %v1469 = vpop.permute.xlu0 %1468
      %1470 = vrot.lane.b32.xlu0 %v676, 48
      %v1471 = vpop.permute.xlu0 %1470
      %1472 = vrot.lane.b32.xlu0 %v677, 48
      %v1473 = vpop.permute.xlu0 %1472
      %1474 = vrot.lane.b32.xlu0 %v678, 48
      %v1475 = vpop.permute.xlu0 %1474
      %1476 = vrot.lane.b32.xlu0 %v679, 48
      %v1477 = vpop.permute.xlu0 %1476
      %1478 = vrot.lane.b32.xlu0 %v680, 48
      %v1479 = vpop.permute.xlu0 %1478
      %1480 = vrot.lane.b32.xlu0 %v681, 48
      %v1481 = vpop.permute.xlu0 %1480
      %1546 = vrot.lane.b32.xlu0 %v682, 56
      %v1547 = vpop.permute.xlu0 %1546
      %1548 = vrot.lane.b32.xlu0 %v683, 56
      %v1549 = vpop.permute.xlu0 %1548
      %1550 = vrot.lane.b32.xlu0 %v684, 56
      %v1551 = vpop.permute.xlu0 %1550
      %1552 = vrot.lane.b32.xlu0 %v685, 56
      %v1553 = vpop.permute.xlu0 %1552
      %1554 = vrot.lane.b32.xlu0 %v686, 56
      %v1555 = vpop.permute.xlu0 %1554
      %1556 = vrot.lane.b32.xlu0 %v687, 56
      %v1557 = vpop.permute.xlu0 %1556
      %1558 = vrot.lane.b32.xlu0 %v688, 56
      %v1559 = vpop.permute.xlu0 %1558
      %1560 = vrot.lane.b32.xlu0 %v689, 56
      %v1561 = vpop.permute.xlu0 %1560
      %1562 = vrot.lane.b32.xlu0 %v690, 56
      %v1563 = vpop.permute.xlu0 %1562
      %1564 = vrot.lane.b32.xlu0 %v691, 56
      %v1565 = vpop.permute.xlu0 %1564
      %1566 = vrot.lane.b32.xlu0 %v692, 56
      %v1567 = vpop.permute.xlu0 %1566
      %1568 = vrot.lane.b32.xlu0 %v693, 56
      %v1569 = vpop.permute.xlu0 %1568
      %1570 = vrot.lane.b32.xlu0 %v694, 56
      %v1571 = vpop.permute.xlu0 %1570
      %1572 = vrot.lane.b32.xlu0 %v695, 56
      %v1573 = vpop.permute.xlu0 %1572
      %1574 = vrot.lane.b32.xlu0 %v696, 56
      %v1575 = vpop.permute.xlu0 %1574
      %1576 = vrot.lane.b32.xlu0 %v697, 56
      %v1577 = vpop.permute.xlu0 %1576
      %1578 = vrot.lane.b32.xlu0 %v698, 56
      %v1579 = vpop.permute.xlu0 %1578
      %1580 = vrot.lane.b32.xlu0 %v699, 56
      %v1581 = vpop.permute.xlu0 %1580
      %1582 = vrot.lane.b32.xlu0 %v700, 56
      %v1583 = vpop.permute.xlu0 %1582
      %1584 = vrot.lane.b32.xlu0 %v701, 56
      %v1585 = vpop.permute.xlu0 %1584
      %1586 = vrot.lane.b32.xlu0 %v702, 56
      %v1587 = vpop.permute.xlu0 %1586
      %1588 = vrot.lane.b32.xlu0 %v703, 56
      %v1589 = vpop.permute.xlu0 %1588
      %1590 = vrot.lane.b32.xlu0 %v704, 56
      %v1591 = vpop.permute.xlu0 %1590
      %1592 = vrot.lane.b32.xlu0 %v705, 56
      %v1593 = vpop.permute.xlu0 %1592
      %1594 = vrot.lane.b32.xlu0 %v706, 56
      %v1595 = vpop.permute.xlu0 %1594
      %1596 = vrot.lane.b32.xlu0 %v707, 56
      %v1597 = vpop.permute.xlu0 %1596
      %1598 = vrot.lane.b32.xlu0 %v708, 56
      %v1599 = vpop.permute.xlu0 %1598
      %1600 = vrot.lane.b32.xlu0 %v709, 56
      %v1601 = vpop.permute.xlu0 %1600
      %1602 = vrot.lane.b32.xlu0 %v710, 56
      %v1603 = vpop.permute.xlu0 %1602
      %1604 = vrot.lane.b32.xlu0 %v711, 56
      %v1605 = vpop.permute.xlu0 %1604
      %1606 = vrot.lane.b32.xlu0 %v712, 56
      %v1607 = vpop.permute.xlu0 %1606
      %1608 = vrot.lane.b32.xlu0 %v713, 56
      %v1609 = vpop.permute.xlu0 %1608
      %1674 = vrot.lane.b32.xlu0 %v714, 64
      %v1675 = vpop.permute.xlu0 %1674
      %1676 = vrot.lane.b32.xlu0 %v715, 64
      %v1677 = vpop.permute.xlu0 %1676
      %1678 = vrot.lane.b32.xlu0 %v716, 64
      %v1679 = vpop.permute.xlu0 %1678
      %1680 = vrot.lane.b32.xlu0 %v717, 64
      %v1681 = vpop.permute.xlu0 %1680
      %1682 = vrot.lane.b32.xlu0 %v718, 64
      %v1683 = vpop.permute.xlu0 %1682
      %1684 = vrot.lane.b32.xlu0 %v719, 64
      %v1685 = vpop.permute.xlu0 %1684
      %1686 = vrot.lane.b32.xlu0 %v720, 64
      %v1687 = vpop.permute.xlu0 %1686
      %1688 = vrot.lane.b32.xlu0 %v721, 64
      %v1689 = vpop.permute.xlu0 %1688
      %1690 = vrot.lane.b32.xlu0 %v722, 64
      %v1691 = vpop.permute.xlu0 %1690
      %1692 = vrot.lane.b32.xlu0 %v723, 64
      %v1693 = vpop.permute.xlu0 %1692
      %1694 = vrot.lane.b32.xlu0 %v724, 64
      %v1695 = vpop.permute.xlu0 %1694
      %1696 = vrot.lane.b32.xlu0 %v725, 64
      %v1697 = vpop.permute.xlu0 %1696
      %1698 = vrot.lane.b32.xlu0 %v726, 64
      %v1699 = vpop.permute.xlu0 %1698
      %1700 = vrot.lane.b32.xlu0 %v727, 64
      %v1701 = vpop.permute.xlu0 %1700
      %1702 = vrot.lane.b32.xlu0 %v728, 64
      %v1703 = vpop.permute.xlu0 %1702
      %1704 = vrot.lane.b32.xlu0 %v729, 64
      %v1705 = vpop.permute.xlu0 %1704
      %1706 = vrot.lane.b32.xlu0 %v730, 64
      %v1707 = vpop.permute.xlu0 %1706
      %1708 = vrot.lane.b32.xlu0 %v731, 64
      %v1709 = vpop.permute.xlu0 %1708
      %1710 = vrot.lane.b32.xlu0 %v732, 64
      %v1711 = vpop.permute.xlu0 %1710
      %1712 = vrot.lane.b32.xlu0 %v733, 64
      %v1713 = vpop.permute.xlu0 %1712
      %1714 = vrot.lane.b32.xlu0 %v734, 64
      %v1715 = vpop.permute.xlu0 %1714
      %1716 = vrot.lane.b32.xlu0 %v735, 64
      %v1717 = vpop.permute.xlu0 %1716
      %1718 = vrot.lane.b32.xlu0 %v736, 64
      %v1719 = vpop.permute.xlu0 %1718
      %1720 = vrot.lane.b32.xlu0 %v737, 64
      %v1721 = vpop.permute.xlu0 %1720
      %1722 = vrot.lane.b32.xlu0 %v738, 64
      %v1723 = vpop.permute.xlu0 %1722
      %1724 = vrot.lane.b32.xlu0 %v739, 64
      %v1725 = vpop.permute.xlu0 %1724
      %1726 = vrot.lane.b32.xlu0 %v740, 64
      %v1727 = vpop.permute.xlu0 %1726
      %1728 = vrot.lane.b32.xlu0 %v741, 64
      %v1729 = vpop.permute.xlu0 %1728
      %1730 = vrot.lane.b32.xlu0 %v742, 64
      %v1731 = vpop.permute.xlu0 %1730
      %1732 = vrot.lane.b32.xlu0 %v743, 64
      %v1733 = vpop.permute.xlu0 %1732
      %1734 = vrot.lane.b32.xlu0 %v744, 64
      %v1735 = vpop.permute.xlu0 %1734
      %1736 = vrot.lane.b32.xlu0 %v745, 64
      %v1737 = vpop.permute.xlu0 %1736
      %v1770 = vsel %vm378, %v457, %v779
      %v1771 = vsel %vm378, %v458, %v781
      %v1772 = vsel %vm378, %v459, %v783
      %v1773 = vsel %vm378, %v460, %v785
      %v1774 = vsel %vm378, %v461, %v787
      %v1775 = vsel %vm378, %v462, %v789
      %v1776 = vsel %vm378, %v463, %v791
      %v1777 = vsel %vm378, %v464, %v793
      %v1778 = vsel %vm378, %v465, %v795
      %v1779 = vsel %vm378, %v466, %v797
      %v1780 = vsel %vm378, %v467, %v799
      %v1781 = vsel %vm378, %v468, %v801
      %v1782 = vsel %vm378, %v469, %v803
      %v1783 = vsel %vm378, %v470, %v805
      %v1784 = vsel %vm378, %v471, %v807
      %v1785 = vsel %vm378, %v472, %v809
      %v1786 = vsel %vm378, %v473, %v811
      %v1787 = vsel %vm378, %v474, %v813
      %v1788 = vsel %vm378, %v475, %v815
      %v1789 = vsel %vm378, %v476, %v817
      %v1790 = vsel %vm378, %v477, %v819
      %v1791 = vsel %vm378, %v478, %v821
      %v1792 = vsel %vm378, %v479, %v823
      %v1793 = vsel %vm378, %v480, %v825
      %v1794 = vsel %vm378, %v481, %v827
      %v1795 = vsel %vm378, %v482, %v829
      %v1796 = vsel %vm378, %v483, %v831
      %v1797 = vsel %vm378, %v484, %v833
      %v1798 = vsel %vm378, %v485, %v835
      %v1799 = vsel %vm378, %v486, %v837
      %v1800 = vsel %vm378, %v487, %v839
      %v1801 = vsel %vm378, %v488, %v841
      %vm1802 = vcmask 130048
      %v1803 = vsel %vm1802, %v1770, %v907
      %v1804 = vsel %vm1802, %v1771, %v909
      %v1805 = vsel %vm1802, %v1772, %v911
      %v1806 = vsel %vm1802, %v1773, %v913
      %v1807 = vsel %vm1802, %v1774, %v915
      %v1808 = vsel %vm1802, %v1775, %v917
      %v1809 = vsel %vm1802, %v1776, %v919
      %v1810 = vsel %vm1802, %v1777, %v921
      %v1811 = vsel %vm1802, %v1778, %v923
      %v1812 = vsel %vm1802, %v1779, %v925
      %v1813 = vsel %vm1802, %v1780, %v927
      %v1814 = vsel %vm1802, %v1781, %v929
      %v1815 = vsel %vm1802, %v1782, %v931
      %v1816 = vsel %vm1802, %v1783, %v933
      %v1817 = vsel %vm1802, %v1784, %v935
      %v1818 = vsel %vm1802, %v1785, %v937
      %v1819 = vsel %vm1802, %v1786, %v939
      %v1820 = vsel %vm1802, %v1787, %v941
      %v1821 = vsel %vm1802, %v1788, %v943
      %v1822 = vsel %vm1802, %v1789, %v945
      %v1823 = vsel %vm1802, %v1790, %v947
      %v1824 = vsel %vm1802, %v1791, %v949
      %v1825 = vsel %vm1802, %v1792, %v951
      %v1826 = vsel %vm1802, %v1793, %v953
      %v1827 = vsel %vm1802, %v1794, %v955
      %v1828 = vsel %vm1802, %v1795, %v957
      %v1829 = vsel %vm1802, %v1796, %v959
      %v1830 = vsel %vm1802, %v1797, %v961
      %v1831 = vsel %vm1802, %v1798, %v963
      %v1832 = vsel %vm1802, %v1799, %v965
      %v1833 = vsel %vm1802, %v1800, %v967
      %v1834 = vsel %vm1802, %v1801, %v969
      %vm1835 = vcmask 195584
      %v1836 = vsel %vm1835, %v1803, %v1035
      %v1837 = vsel %vm1835, %v1804, %v1037
      %v1838 = vsel %vm1835, %v1805, %v1039
      %v1839 = vsel %vm1835, %v1806, %v1041
      %v1840 = vsel %vm1835, %v1807, %v1043
      %v1841 = vsel %vm1835, %v1808, %v1045
      %v1842 = vsel %vm1835, %v1809, %v1047
      %v1843 = vsel %vm1835, %v1810, %v1049
      %v1844 = vsel %vm1835, %v1811, %v1051
      %v1845 = vsel %vm1835, %v1812, %v1053
      %v1846 = vsel %vm1835, %v1813, %v1055
      %v1847 = vsel %vm1835, %v1814, %v1057
      %v1848 = vsel %vm1835, %v1815, %v1059
      %v1849 = vsel %vm1835, %v1816, %v1061
      %v1850 = vsel %vm1835, %v1817, %v1063
      %v1851 = vsel %vm1835, %v1818, %v1065
      %v1852 = vsel %vm1835, %v1819, %v1067
      %v1853 = vsel %vm1835, %v1820, %v1069
      %v1854 = vsel %vm1835, %v1821, %v1071
      %v1855 = vsel %vm1835, %v1822, %v1073
      %v1856 = vsel %vm1835, %v1823, %v1075
      %v1857 = vsel %vm1835, %v1824, %v1077
      %v1858 = vsel %vm1835, %v1825, %v1079
      %v1859 = vsel %vm1835, %v1826, %v1081
      %v1860 = vsel %vm1835, %v1827, %v1083
      %v1861 = vsel %vm1835, %v1828, %v1085
      %v1862 = vsel %vm1835, %v1829, %v1087
      %v1863 = vsel %vm1835, %v1830, %v1089
      %v1864 = vsel %vm1835, %v1831, %v1091
      %v1865 = vsel %vm1835, %v1832, %v1093
      %v1866 = vsel %vm1835, %v1833, %v1095
      %v1867 = vsel %vm1835, %v1834, %v1097
      %vm1868 = vcmask 261120
      %v1869 = vsel %vm1868, %v1836, %v1163
      %v1870 = vsel %vm1868, %v1837, %v1165
      %v1871 = vsel %vm1868, %v1838, %v1167
      %v1872 = vsel %vm1868, %v1839, %v1169
      %v1873 = vsel %vm1868, %v1840, %v1171
      %v1874 = vsel %vm1868, %v1841, %v1173
      %v1875 = vsel %vm1868, %v1842, %v1175
      %v1876 = vsel %vm1868, %v1843, %v1177
      %v1877 = vsel %vm1868, %v1844, %v1179
      %v1878 = vsel %vm1868, %v1845, %v1181
      %v1879 = vsel %vm1868, %v1846, %v1183
      %v1880 = vsel %vm1868, %v1847, %v1185
      %v1881 = vsel %vm1868, %v1848, %v1187
      %v1882 = vsel %vm1868, %v1849, %v1189
      %v1883 = vsel %vm1868, %v1850, %v1191
      %v1884 = vsel %vm1868, %v1851, %v1193
      %v1885 = vsel %vm1868, %v1852, %v1195
      %v1886 = vsel %vm1868, %v1853, %v1197
      %v1887 = vsel %vm1868, %v1854, %v1199
      %v1888 = vsel %vm1868, %v1855, %v1201
      %v1889 = vsel %vm1868, %v1856, %v1203
      %v1890 = vsel %vm1868, %v1857, %v1205
      %v1891 = vsel %vm1868, %v1858, %v1207
      %v1892 = vsel %vm1868, %v1859, %v1209
      %v1893 = vsel %vm1868, %v1860, %v1211
      %v1894 = vsel %vm1868, %v1861, %v1213
      %v1895 = vsel %vm1868, %v1862, %v1215
      %v1896 = vsel %vm1868, %v1863, %v1217
      %v1897 = vsel %vm1868, %v1864, %v1219
      %v1898 = vsel %vm1868, %v1865, %v1221
      %v1899 = vsel %vm1868, %v1866, %v1223
      %v1900 = vsel %vm1868, %v1867, %v1225
      %vm1901 = vcmask 326656
      %v1902 = vsel %vm1901, %v1869, %v1291
      %v1903 = vsel %vm1901, %v1870, %v1293
      %v1904 = vsel %vm1901, %v1871, %v1295
      %v1905 = vsel %vm1901, %v1872, %v1297
      %v1906 = vsel %vm1901, %v1873, %v1299
      %v1907 = vsel %vm1901, %v1874, %v1301
      %v1908 = vsel %vm1901, %v1875, %v1303
      %v1909 = vsel %vm1901, %v1876, %v1305
      %v1910 = vsel %vm1901, %v1877, %v1307
      %v1911 = vsel %vm1901, %v1878, %v1309
      %v1912 = vsel %vm1901, %v1879, %v1311
      %v1913 = vsel %vm1901, %v1880, %v1313
      %v1914 = vsel %vm1901, %v1881, %v1315
      %v1915 = vsel %vm1901, %v1882, %v1317
      %v1916 = vsel %vm1901, %v1883, %v1319
      %v1917 = vsel %vm1901, %v1884, %v1321
      %v1918 = vsel %vm1901, %v1885, %v1323
      %v1919 = vsel %vm1901, %v1886, %v1325
      %v1920 = vsel %vm1901, %v1887, %v1327
      %v1921 = vsel %vm1901, %v1888, %v1329
      %v1922 = vsel %vm1901, %v1889, %v1331
      %v1923 = vsel %vm1901, %v1890, %v1333
      %v1924 = vsel %vm1901, %v1891, %v1335
      %v1925 = vsel %vm1901, %v1892, %v1337
      %v1926 = vsel %vm1901, %v1893, %v1339
      %v1927 = vsel %vm1901, %v1894, %v1341
      %v1928 = vsel %vm1901, %v1895, %v1343
      %v1929 = vsel %vm1901, %v1896, %v1345
      %v1930 = vsel %vm1901, %v1897, %v1347
      %v1931 = vsel %vm1901, %v1898, %v1349
      %v1932 = vsel %vm1901, %v1899, %v1351
      %v1933 = vsel %vm1901, %v1900, %v1353
      %vm1934 = vcmask 392192
      %v1935 = vsel %vm1934, %v1902, %v1419
      %v1936 = vsel %vm1934, %v1903, %v1421
      %v1937 = vsel %vm1934, %v1904, %v1423
      %v1938 = vsel %vm1934, %v1905, %v1425
      %v1939 = vsel %vm1934, %v1906, %v1427
      %v1940 = vsel %vm1934, %v1907, %v1429
      %v1941 = vsel %vm1934, %v1908, %v1431
      %v1942 = vsel %vm1934, %v1909, %v1433
      %v1943 = vsel %vm1934, %v1910, %v1435
      %v1944 = vsel %vm1934, %v1911, %v1437
      %v1945 = vsel %vm1934, %v1912, %v1439
      %v1946 = vsel %vm1934, %v1913, %v1441
      %v1947 = vsel %vm1934, %v1914, %v1443
      %v1948 = vsel %vm1934, %v1915, %v1445
      %v1949 = vsel %vm1934, %v1916, %v1447
      %v1950 = vsel %vm1934, %v1917, %v1449
      %v1951 = vsel %vm1934, %v1918, %v1451
      %v1952 = vsel %vm1934, %v1919, %v1453
      %v1953 = vsel %vm1934, %v1920, %v1455
      %v1954 = vsel %vm1934, %v1921, %v1457
      %v1955 = vsel %vm1934, %v1922, %v1459
      %v1956 = vsel %vm1934, %v1923, %v1461
      %v1957 = vsel %vm1934, %v1924, %v1463
      %v1958 = vsel %vm1934, %v1925, %v1465
      %v1959 = vsel %vm1934, %v1926, %v1467
      %v1960 = vsel %vm1934, %v1927, %v1469
      %v1961 = vsel %vm1934, %v1928, %v1471
      %v1962 = vsel %vm1934, %v1929, %v1473
      %v1963 = vsel %vm1934, %v1930, %v1475
      %v1964 = vsel %vm1934, %v1931, %v1477
      %v1965 = vsel %vm1934, %v1932, %v1479
      %v1966 = vsel %vm1934, %v1933, %v1481
      %vm1967 = vcmask 457728
      %v1968 = vsel %vm1967, %v1935, %v1547
      %v1969 = vsel %vm1967, %v1936, %v1549
      %v1970 = vsel %vm1967, %v1937, %v1551
      %v1971 = vsel %vm1967, %v1938, %v1553
      %v1972 = vsel %vm1967, %v1939, %v1555
      %v1973 = vsel %vm1967, %v1940, %v1557
      %v1974 = vsel %vm1967, %v1941, %v1559
      %v1975 = vsel %vm1967, %v1942, %v1561
      %v1976 = vsel %vm1967, %v1943, %v1563
      %v1977 = vsel %vm1967, %v1944, %v1565
      %v1978 = vsel %vm1967, %v1945, %v1567
      %v1979 = vsel %vm1967, %v1946, %v1569
      %v1980 = vsel %vm1967, %v1947, %v1571
      %v1981 = vsel %vm1967, %v1948, %v1573
      %v1982 = vsel %vm1967, %v1949, %v1575
      %v1983 = vsel %vm1967, %v1950, %v1577
      %v1984 = vsel %vm1967, %v1951, %v1579
      %v1985 = vsel %vm1967, %v1952, %v1581
      %v1986 = vsel %vm1967, %v1953, %v1583
      %v1987 = vsel %vm1967, %v1954, %v1585
      %v1988 = vsel %vm1967, %v1955, %v1587
      %v1989 = vsel %vm1967, %v1956, %v1589
      %v1990 = vsel %vm1967, %v1957, %v1591
      %v1991 = vsel %vm1967, %v1958, %v1593
      %v1992 = vsel %vm1967, %v1959, %v1595
      %v1993 = vsel %vm1967, %v1960, %v1597
      %v1994 = vsel %vm1967, %v1961, %v1599
      %v1995 = vsel %vm1967, %v1962, %v1601
      %v1996 = vsel %vm1967, %v1963, %v1603
      %v1997 = vsel %vm1967, %v1964, %v1605
      %v1998 = vsel %vm1967, %v1965, %v1607
      %v1999 = vsel %vm1967, %v1966, %v1609
      %vm2000 = vcmask 523264
      %v2001 = vsel %vm2000, %v1968, %v1675
      %v2002 = vsel %vm2000, %v1969, %v1677
      %v2003 = vsel %vm2000, %v1970, %v1679
      %v2004 = vsel %vm2000, %v1971, %v1681
      %v2005 = vsel %vm2000, %v1972, %v1683
      %v2006 = vsel %vm2000, %v1973, %v1685
      %v2007 = vsel %vm2000, %v1974, %v1687
      %v2008 = vsel %vm2000, %v1975, %v1689
      %v2009 = vsel %vm2000, %v1976, %v1691
      %v2010 = vsel %vm2000, %v1977, %v1693
      %v2011 = vsel %vm2000, %v1978, %v1695
      %v2012 = vsel %vm2000, %v1979, %v1697
      %v2013 = vsel %vm2000, %v1980, %v1699
      %v2014 = vsel %vm2000, %v1981, %v1701
      %v2015 = vsel %vm2000, %v1982, %v1703
      %v2016 = vsel %vm2000, %v1983, %v1705
      %v2017 = vsel %vm2000, %v1984, %v1707
      %v2018 = vsel %vm2000, %v1985, %v1709
      %v2019 = vsel %vm2000, %v1986, %v1711
      %v2020 = vsel %vm2000, %v1987, %v1713
      %v2021 = vsel %vm2000, %v1988, %v1715
      %v2022 = vsel %vm2000, %v1989, %v1717
      %v2023 = vsel %vm2000, %v1990, %v1719
      %v2024 = vsel %vm2000, %v1991, %v1721
      %v2025 = vsel %vm2000, %v1992, %v1723
      %v2026 = vsel %vm2000, %v1993, %v1725
      %v2027 = vsel %vm2000, %v1994, %v1727
      %v2028 = vsel %vm2000, %v1995, %v1729
      %v2029 = vsel %vm2000, %v1996, %v1731
      %v2030 = vsel %vm2000, %v1997, %v1733
      %v2031 = vsel %vm2000, %v1998, %v1735
      %v2032 = vsel %vm2000, %v1999, %v1737
      %v2033 = vld [vmem:[%s3] sm:$0xff]
      %v2034 = vld [vmem:[%s3 + $0x8] sm:$0xff]
      %v2035 = vld [vmem:[%s3 + $0x10] sm:$0xff]
      %v2036 = vld [vmem:[%s3 + $0x18] sm:$0xff]
      %v2037 = vld [vmem:[%s3 + $0x20] sm:$0xff]
      %v2038 = vld [vmem:[%s3 + $0x28] sm:$0xff]
      %v2039 = vld [vmem:[%s3 + $0x30] sm:$0xff]
      %v2040 = vld [vmem:[%s3 + $0x38] sm:$0xff]
      %v2041 = vld [vmem:[%s3 + $0x40] sm:$0xff]
      %vm2042 = vcmask 588800
      %v2044 = vsel %vm2042, %v2001, 0
      %v2047 = vsel %vm2042, %v2002, 0
      %v2050 = vsel %vm2042, %v2003, 0
      %v2053 = vsel %vm2042, %v2004, 0
      %v2056 = vsel %vm2042, %v2005, 0
      %v2059 = vsel %vm2042, %v2006, 0
      %v2062 = vsel %vm2042, %v2007, 0
      %v2065 = vsel %vm2042, %v2008, 0
      %v2068 = vsel %vm2042, %v2009, 0
      %v2071 = vsel %vm2042, %v2010, 0
      %v2074 = vsel %vm2042, %v2011, 0
      %v2077 = vsel %vm2042, %v2012, 0
      %v2080 = vsel %vm2042, %v2013, 0
      %v2083 = vsel %vm2042, %v2014, 0
      %v2086 = vsel %vm2042, %v2015, 0
      %v2089 = vsel %vm2042, %v2016, 0
      %v2092 = vsel %vm2042, %v2017, 0
      %v2095 = vsel %vm2042, %v2018, 0
      %v2098 = vsel %vm2042, %v2019, 0
      %v2101 = vsel %vm2042, %v2020, 0
      %v2104 = vsel %vm2042, %v2021, 0
      %v2107 = vsel %vm2042, %v2022, 0
      %v2110 = vsel %vm2042, %v2023, 0
      %v2113 = vsel %vm2042, %v2024, 0
      %v2116 = vsel %vm2042, %v2025, 0
      %v2119 = vsel %vm2042, %v2026, 0
      %v2122 = vsel %vm2042, %v2027, 0
      %v2125 = vsel %vm2042, %v2028, 0
      %v2128 = vsel %vm2042, %v2029, 0
      %v2131 = vsel %vm2042, %v2030, 0
      %v2134 = vsel %vm2042, %v2031, 0
      %v2137 = vsel %vm2042, %v2032, 0
      %2139 = vmatprep.subr.mxu0 0.0
      %2140 = vmatpush1.msra.mxu0 0.0
      %2141 = vmatprep.subr.mxu0 0.0
      %2142 = vmatpush1.msra.mxu0 0.0
      %2143 = vmatprep.subr.mxu0 0.0
      %2144 = vmatpush1.msra.mxu0 0.0
      %2145 = vmatprep.subr.mxu0 0.0
      %2146 = vmatpush1.msra.mxu0 0.0
      %2147 = vmatprep.subr.mxu0 0.0
      %2148 = vmatpush1.msra.mxu0 0.0
      %2149 = vmatprep.subr.mxu0 0.0
      %2150 = vmatpush1.msra.mxu0 0.0
      %2151 = vmatprep.subr.mxu0 0.0
      %2152 = vmatpush1.msra.mxu0 0.0
      %2153 = vmatprep.subr.mxu0 0.0
      %2154 = vmatpush1.msra.mxu0 %v2041
      %2155 = vmatprep.subr.mxu0 0.0
      %2156 = vmatpush1.msra.mxu0 %v2040
      %2157 = vmatprep.subr.mxu0 0.0
      %2158 = vmatpush1.msra.mxu0 %v2039
      %2159 = vmatprep.subr.mxu0 0.0
      %2160 = vmatpush1.msra.mxu0 %v2038
      %2161 = vmatprep.subr.mxu0 0.0
      %2162 = vmatpush1.msra.mxu0 %v2037
      %2163 = vmatprep.subr.mxu0 0.0
      %2164 = vmatpush1.msra.mxu0 %v2036
      %2165 = vmatprep.subr.mxu0 0.0
      %2166 = vmatpush1.msra.mxu0 %v2035
      %2167 = vmatprep.subr.mxu0 0.0
      %2168 = vmatpush1.msra.mxu0 %v2034
      %2169 = vmatprep.subr.mxu0 0.0
      %2170 = vmatpush1.msra.mxu0 %v2033
      %2171 = vmatprep.subr.mxu0 0.0
      %2172 = vmatpush2.msra.mxu0 0.0
      %2173 = vmatprep.subr.mxu0 0.0
      %2174 = vmatpush2.msra.mxu0 0.0
      %2175 = vmatprep.subr.mxu0 0.0
      %2176 = vmatpush2.msra.mxu0 0.0
      %2177 = vmatprep.subr.mxu0 0.0
      %2178 = vmatpush2.msra.mxu0 0.0
      %2179 = vmatprep.subr.mxu0 0.0
      %2180 = vmatpush2.msra.mxu0 0.0
      %2181 = vmatprep.subr.mxu0 0.0
      %2182 = vmatpush2.msra.mxu0 0.0
      %2183 = vmatprep.subr.mxu0 0.0
      %2184 = vmatpush2.msra.mxu0 0.0
      %2185 = vmatprep.subr.mxu0 0.0
      %2186 = vmatpush2.msra.mxu0 0.0
      %2187 = vmatprep.subr.mxu0 0.0
      %2188 = vmatpush2.msra.mxu0 0.0
      %2189 = vmatprep.subr.mxu0 0.0
      %2190 = vmatpush2.msra.mxu0 0.0
      %2191 = vmatprep.subr.mxu0 0.0
      %2192 = vmatpush2.msra.mxu0 0.0
      %2193 = vmatprep.subr.mxu0 0.0
      %2194 = vmatpush2.msra.mxu0 0.0
      %2195 = vmatprep.subr.mxu0 0.0
      %2196 = vmatpush2.msra.mxu0 0.0
      %2197 = vmatprep.subr.mxu0 0.0
      %2198 = vmatpush2.msra.mxu0 0.0
      %2199 = vmatprep.subr.mxu0 0.0
      %2200 = vmatpush2.msra.mxu0 0.0
      %2201 = vmatprep.subr.mxu0 0.0
      %2202 = vmatpush2.msra.mxu0 0.0
      %2203 = vmatprep.mubr.f32.mxu0 0.0
      %2204 = vmatmul.mubr.f32.gmra.mxu0 %v2044
      %v2205 = vpop.f32.mrf.mxu0
      %v2206 = vadd.f32 0.0, %v2205
      %v2207 = vpop.f32.mrf.mxu0
      %2208 = vmatprep.mubr.f32.mxu0 0.0
      %2209 = vmatmul.mubr.f32.gmra.mxu0 %v2047
      %v2210 = vpop.f32.mrf.mxu0
      %v2211 = vadd.f32 0.0, %v2210
      %v2212 = vpop.f32.mrf.mxu0
      %2213 = vmatprep.mubr.f32.mxu0 0.0
      %2214 = vmatmul.mubr.f32.gmra.mxu0 %v2050
      %v2215 = vpop.f32.mrf.mxu0
      %v2216 = vadd.f32 0.0, %v2215
      %v2217 = vpop.f32.mrf.mxu0
      %2218 = vmatprep.mubr.f32.mxu0 0.0
      %2219 = vmatmul.mubr.f32.gmra.mxu0 %v2053
      %v2220 = vpop.f32.mrf.mxu0
      %v2221 = vadd.f32 0.0, %v2220
      %v2222 = vpop.f32.mrf.mxu0
      %2223 = vmatprep.mubr.f32.mxu0 0.0
      %2224 = vmatmul.mubr.f32.gmra.mxu0 %v2056
      %v2225 = vpop.f32.mrf.mxu0
      %v2226 = vadd.f32 0.0, %v2225
      %v2227 = vpop.f32.mrf.mxu0
      %2228 = vmatprep.mubr.f32.mxu0 0.0
      %2229 = vmatmul.mubr.f32.gmra.mxu0 %v2059
      %v2230 = vpop.f32.mrf.mxu0
      %v2231 = vadd.f32 0.0, %v2230
      %v2232 = vpop.f32.mrf.mxu0
      %2233 = vmatprep.mubr.f32.mxu0 0.0
      %2234 = vmatmul.mubr.f32.gmra.mxu0 %v2062
      %v2235 = vpop.f32.mrf.mxu0
      %v2236 = vadd.f32 0.0, %v2235
      %v2237 = vpop.f32.mrf.mxu0
      %2238 = vmatprep.mubr.f32.mxu0 0.0
      %2239 = vmatmul.mubr.f32.gmra.mxu0 %v2065
      %v2240 = vpop.f32.mrf.mxu0
      %v2241 = vadd.f32 0.0, %v2240
      %v2242 = vpop.f32.mrf.mxu0
      %2243 = vmatprep.mubr.f32.mxu0 0.0
      %2244 = vmatmul.mubr.f32.gmra.mxu0 %v2068
      %v2245 = vpop.f32.mrf.mxu0
      %v2246 = vadd.f32 0.0, %v2245
      %v2247 = vpop.f32.mrf.mxu0
      %2248 = vmatprep.mubr.f32.mxu0 0.0
      %2249 = vmatmul.mubr.f32.gmra.mxu0 %v2071
      %v2250 = vpop.f32.mrf.mxu0
      %v2251 = vadd.f32 0.0, %v2250
      %v2252 = vpop.f32.mrf.mxu0
      %2253 = vmatprep.mubr.f32.mxu0 0.0
      %2254 = vmatmul.mubr.f32.gmra.mxu0 %v2074
      %v2255 = vpop.f32.mrf.mxu0
      %v2256 = vadd.f32 0.0, %v2255
      %v2257 = vpop.f32.mrf.mxu0
      %2258 = vmatprep.mubr.f32.mxu0 0.0
      %2259 = vmatmul.mubr.f32.gmra.mxu0 %v2077
      %v2260 = vpop.f32.mrf.mxu0
      %v2261 = vadd.f32 0.0, %v2260
      %v2262 = vpop.f32.mrf.mxu0
      %2263 = vmatprep.mubr.f32.mxu0 0.0
      %2264 = vmatmul.mubr.f32.gmra.mxu0 %v2080
      %v2265 = vpop.f32.mrf.mxu0
      %v2266 = vadd.f32 0.0, %v2265
      %v2267 = vpop.f32.mrf.mxu0
      %2268 = vmatprep.mubr.f32.mxu0 0.0
      %2269 = vmatmul.mubr.f32.gmra.mxu0 %v2083
      %v2270 = vpop.f32.mrf.mxu0
      %v2271 = vadd.f32 0.0, %v2270
      %v2272 = vpop.f32.mrf.mxu0
      %2273 = vmatprep.mubr.f32.mxu0 0.0
      %2274 = vmatmul.mubr.f32.gmra.mxu0 %v2086
      %v2275 = vpop.f32.mrf.mxu0
      %v2276 = vadd.f32 0.0, %v2275
      %v2277 = vpop.f32.mrf.mxu0
      %2278 = vmatprep.mubr.f32.mxu0 0.0
      %2279 = vmatmul.mubr.f32.gmra.mxu0 %v2089
      %v2280 = vpop.f32.mrf.mxu0
      %v2281 = vadd.f32 0.0, %v2280
      %v2282 = vpop.f32.mrf.mxu0
      %2283 = vmatprep.mubr.f32.mxu0 0.0
      %2284 = vmatmul.mubr.f32.gmra.mxu0 %v2092
      %v2285 = vpop.f32.mrf.mxu0
      %v2286 = vadd.f32 0.0, %v2285
      %v2287 = vpop.f32.mrf.mxu0
      %2288 = vmatprep.mubr.f32.mxu0 0.0
      %2289 = vmatmul.mubr.f32.gmra.mxu0 %v2095
      %v2290 = vpop.f32.mrf.mxu0
      %v2291 = vadd.f32 0.0, %v2290
      %v2292 = vpop.f32.mrf.mxu0
      %2293 = vmatprep.mubr.f32.mxu0 0.0
      %2294 = vmatmul.mubr.f32.gmra.mxu0 %v2098
      %v2295 = vpop.f32.mrf.mxu0
      %v2296 = vadd.f32 0.0, %v2295
      %v2297 = vpop.f32.mrf.mxu0
      %2298 = vmatprep.mubr.f32.mxu0 0.0
      %2299 = vmatmul.mubr.f32.gmra.mxu0 %v2101
      %v2300 = vpop.f32.mrf.mxu0
      %v2301 = vadd.f32 0.0, %v2300
      %v2302 = vpop.f32.mrf.mxu0
      %2303 = vmatprep.mubr.f32.mxu0 0.0
      %2304 = vmatmul.mubr.f32.gmra.mxu0 %v2104
      %v2305 = vpop.f32.mrf.mxu0
      %v2306 = vadd.f32 0.0, %v2305
      %v2307 = vpop.f32.mrf.mxu0
      %2308 = vmatprep.mubr.f32.mxu0 0.0
      %2309 = vmatmul.mubr.f32.gmra.mxu0 %v2107
      %v2310 = vpop.f32.mrf.mxu0
      %v2311 = vadd.f32 0.0, %v2310
      %v2312 = vpop.f32.mrf.mxu0
      %2313 = vmatprep.mubr.f32.mxu0 0.0
      %2314 = vmatmul.mubr.f32.gmra.mxu0 %v2110
      %v2315 = vpop.f32.mrf.mxu0
      %v2316 = vadd.f32 0.0, %v2315
      %v2317 = vpop.f32.mrf.mxu0
      %2318 = vmatprep.mubr.f32.mxu0 0.0
      %2319 = vmatmul.mubr.f32.gmra.mxu0 %v2113
      %v2320 = vpop.f32.mrf.mxu0
      %v2321 = vadd.f32 0.0, %v2320
      %v2322 = vpop.f32.mrf.mxu0
      %2323 = vmatprep.mubr.f32.mxu0 0.0
      %2324 = vmatmul.mubr.f32.gmra.mxu0 %v2116
      %v2325 = vpop.f32.mrf.mxu0
      %v2326 = vadd.f32 0.0, %v2325
      %v2327 = vpop.f32.mrf.mxu0
      %2328 = vmatprep.mubr.f32.mxu0 0.0
      %2329 = vmatmul.mubr.f32.gmra.mxu0 %v2119
      %v2330 = vpop.f32.mrf.mxu0
      %v2331 = vadd.f32 0.0, %v2330
      %v2332 = vpop.f32.mrf.mxu0
      %2333 = vmatprep.mubr.f32.mxu0 0.0
      %2334 = vmatmul.mubr.f32.gmra.mxu0 %v2122
      %v2335 = vpop.f32.mrf.mxu0
      %v2336 = vadd.f32 0.0, %v2335
      %v2337 = vpop.f32.mrf.mxu0
      %2338 = vmatprep.mubr.f32.mxu0 0.0
      %2339 = vmatmul.mubr.f32.gmra.mxu0 %v2125
      %v2340 = vpop.f32.mrf.mxu0
      %v2341 = vadd.f32 0.0, %v2340
      %v2342 = vpop.f32.mrf.mxu0
      %2343 = vmatprep.mubr.f32.mxu0 0.0
      %2344 = vmatmul.mubr.f32.gmra.mxu0 %v2128
      %v2345 = vpop.f32.mrf.mxu0
      %v2346 = vadd.f32 0.0, %v2345
      %v2347 = vpop.f32.mrf.mxu0
      %2348 = vmatprep.mubr.f32.mxu0 0.0
      %2349 = vmatmul.mubr.f32.gmra.mxu0 %v2131
      %v2350 = vpop.f32.mrf.mxu0
      %v2351 = vadd.f32 0.0, %v2350
      %v2352 = vpop.f32.mrf.mxu0
      %2353 = vmatprep.mubr.f32.mxu0 0.0
      %2354 = vmatmul.mubr.f32.gmra.mxu0 %v2134
      %v2355 = vpop.f32.mrf.mxu0
      %v2356 = vadd.f32 0.0, %v2355
      %v2357 = vpop.f32.mrf.mxu0
      %2358 = vmatprep.mubr.f32.mxu0 0.0
      %2359 = vmatmul.mubr.f32.gmra.mxu0 %v2137
      %v2360 = vpop.f32.mrf.mxu0
      %v2361 = vadd.f32 0.0, %v2360
      %v2362 = vpop.f32.mrf.mxu0
      %2363 = vdwg.mxu0
      %v2364 = vsel %vm378, %v2206, 0.0
      %v2365 = vsel %vm378, %v2211, 0.0
      %v2366 = vadd.f32 %v2364, %v2365
      %v2367 = vsel %vm378, %v2216, 0.0
      %v2368 = vadd.f32 %v2366, %v2367
      %v2369 = vsel %vm378, %v2221, 0.0
      %v2370 = vadd.f32 %v2368, %v2369
      %v2371 = vsel %vm378, %v2226, 0.0
      %v2372 = vadd.f32 %v2370, %v2371
      %v2373 = vsel %vm378, %v2231, 0.0
      %v2374 = vadd.f32 %v2372, %v2373
      %v2375 = vsel %vm378, %v2236, 0.0
      %v2376 = vadd.f32 %v2374, %v2375
      %v2377 = vsel %vm378, %v2241, 0.0
      %v2378 = vadd.f32 %v2376, %v2377
      %v2379 = vsel %vm378, %v2246, 0.0
      %v2380 = vadd.f32 %v2378, %v2379
      %v2381 = vsel %vm378, %v2251, 0.0
      %v2382 = vadd.f32 %v2380, %v2381
      %v2383 = vsel %vm378, %v2256, 0.0
      %v2384 = vadd.f32 %v2382, %v2383
      %v2385 = vsel %vm378, %v2261, 0.0
      %v2386 = vadd.f32 %v2384, %v2385
      %v2387 = vsel %vm378, %v2266, 0.0
      %v2388 = vadd.f32 %v2386, %v2387
      %v2389 = vsel %vm378, %v2271, 0.0
      %v2390 = vadd.f32 %v2388, %v2389
      %v2391 = vsel %vm378, %v2276, 0.0
      %v2392 = vadd.f32 %v2390, %v2391
      %v2393 = vsel %vm378, %v2281, 0.0
      %v2394 = vadd.f32 %v2392, %v2393
      %v2395 = vsel %vm378, %v2286, 0.0
      %v2396 = vadd.f32 %v2394, %v2395
      %v2397 = vsel %vm378, %v2291, 0.0
      %v2398 = vadd.f32 %v2396, %v2397
      %v2399 = vsel %vm378, %v2296, 0.0
      %v2400 = vadd.f32 %v2398, %v2399
      %v2401 = vsel %vm378, %v2301, 0.0
      %v2402 = vadd.f32 %v2400, %v2401
      %v2403 = vsel %vm378, %v2306, 0.0
      %v2404 = vadd.f32 %v2402, %v2403
      %v2405 = vsel %vm378, %v2311, 0.0
      %v2406 = vadd.f32 %v2404, %v2405
      %v2407 = vsel %vm378, %v2316, 0.0
      %v2408 = vadd.f32 %v2406, %v2407
      %v2409 = vsel %vm378, %v2321, 0.0
      %v2410 = vadd.f32 %v2408, %v2409
      %v2411 = vsel %vm378, %v2326, 0.0
      %v2412 = vadd.f32 %v2410, %v2411
      %v2413 = vsel %vm378, %v2331, 0.0
      %v2414 = vadd.f32 %v2412, %v2413
      %v2415 = vsel %vm378, %v2336, 0.0
      %v2416 = vadd.f32 %v2414, %v2415
      %v2417 = vsel %vm378, %v2341, 0.0
      %v2418 = vadd.f32 %v2416, %v2417
      %v2419 = vsel %vm378, %v2346, 0.0
      %v2420 = vadd.f32 %v2418, %v2419
      %v2421 = vsel %vm378, %v2351, 0.0
      %v2422 = vadd.f32 %v2420, %v2421
      %v2423 = vsel %vm378, %v2356, 0.0
      %v2424 = vadd.f32 %v2422, %v2423
      %v2425 = vsel %vm378, %v2361, 0.0
      %v2426 = vadd.f32 %v2424, %v2425
      %v2427 = vrot.slane %v2426, 4
      %v2428 = vadd.f32 %v2426, %v2427
      %v2429 = vrot.slane %v2428, 2
      %v2430 = vadd.f32 %v2428, %v2429
      %v2431 = vrot.slane %v2430, 1
      %v2432 = vadd.f32 %v2430, %v2431
      %v2433 = vmul.f32 %v2206, %v2206
      %v2434 = vmul.f32 %v2211, %v2211
      %v2435 = vmul.f32 %v2216, %v2216
      %v2436 = vmul.f32 %v2221, %v2221
      %v2437 = vmul.f32 %v2226, %v2226
      %v2438 = vmul.f32 %v2231, %v2231
      %v2439 = vmul.f32 %v2236, %v2236
      %v2440 = vmul.f32 %v2241, %v2241
      %v2441 = vmul.f32 %v2246, %v2246
      %v2442 = vmul.f32 %v2251, %v2251
      %v2443 = vmul.f32 %v2256, %v2256
      %v2444 = vmul.f32 %v2261, %v2261
      %v2445 = vmul.f32 %v2266, %v2266
      %v2446 = vmul.f32 %v2271, %v2271
      %v2447 = vmul.f32 %v2276, %v2276
      %v2448 = vmul.f32 %v2281, %v2281
      %v2449 = vmul.f32 %v2286, %v2286
      %v2450 = vmul.f32 %v2291, %v2291
      %v2451 = vmul.f32 %v2296, %v2296
      %v2452 = vmul.f32 %v2301, %v2301
      %v2453 = vmul.f32 %v2306, %v2306
      %v2454 = vmul.f32 %v2311, %v2311
      %v2455 = vmul.f32 %v2316, %v2316
      %v2456 = vmul.f32 %v2321, %v2321
      %v2457 = vmul.f32 %v2326, %v2326
      %v2458 = vmul.f32 %v2331, %v2331
      %v2459 = vmul.f32 %v2336, %v2336
      %v2460 = vmul.f32 %v2341, %v2341
      %v2461 = vmul.f32 %v2346, %v2346
      %v2462 = vmul.f32 %v2351, %v2351
      %v2463 = vmul.f32 %v2356, %v2356
      %v2464 = vmul.f32 %v2361, %v2361
      %v2465 = vsel %vm378, %v2433, 0.0
      %v2466 = vsel %vm378, %v2434, 0.0
      %v2467 = vadd.f32 %v2465, %v2466
      %v2468 = vsel %vm378, %v2435, 0.0
      %v2469 = vadd.f32 %v2467, %v2468
      %v2470 = vsel %vm378, %v2436, 0.0
      %v2471 = vadd.f32 %v2469, %v2470
      %v2472 = vsel %vm378, %v2437, 0.0
      %v2473 = vadd.f32 %v2471, %v2472
      %v2474 = vsel %vm378, %v2438, 0.0
      %v2475 = vadd.f32 %v2473, %v2474
      %v2476 = vsel %vm378, %v2439, 0.0
      %v2477 = vadd.f32 %v2475, %v2476
      %v2478 = vsel %vm378, %v2440, 0.0
      %v2479 = vadd.f32 %v2477, %v2478
      %v2480 = vsel %vm378, %v2441, 0.0
      %v2481 = vadd.f32 %v2479, %v2480
      %v2482 = vsel %vm378, %v2442, 0.0
      %v2483 = vadd.f32 %v2481, %v2482
      %v2484 = vsel %vm378, %v2443, 0.0
      %v2485 = vadd.f32 %v2483, %v2484
      %v2486 = vsel %vm378, %v2444, 0.0
      %v2487 = vadd.f32 %v2485, %v2486
      %v2488 = vsel %vm378, %v2445, 0.0
      %v2489 = vadd.f32 %v2487, %v2488
      %v2490 = vsel %vm378, %v2446, 0.0
      %v2491 = vadd.f32 %v2489, %v2490
      %v2492 = vsel %vm378, %v2447, 0.0
      %v2493 = vadd.f32 %v2491, %v2492
      %v2494 = vsel %vm378, %v2448, 0.0
      %v2495 = vadd.f32 %v2493, %v2494
      %v2496 = vsel %vm378, %v2449, 0.0
      %v2497 = vadd.f32 %v2495, %v2496
      %v2498 = vsel %vm378, %v2450, 0.0
      %v2499 = vadd.f32 %v2497, %v2498
      %v2500 = vsel %vm378, %v2451, 0.0
      %v2501 = vadd.f32 %v2499, %v2500
      %v2502 = vsel %vm378, %v2452, 0.0
      %v2503 = vadd.f32 %v2501, %v2502
      %v2504 = vsel %vm378, %v2453, 0.0
      %v2505 = vadd.f32 %v2503, %v2504
      %v2506 = vsel %vm378, %v2454, 0.0
      %v2507 = vadd.f32 %v2505, %v2506
      %v2508 = vsel %vm378, %v2455, 0.0
      %v2509 = vadd.f32 %v2507, %v2508
      %v2510 = vsel %vm378, %v2456, 0.0
      %v2511 = vadd.f32 %v2509, %v2510
      %v2512 = vsel %vm378, %v2457, 0.0
      %v2513 = vadd.f32 %v2511, %v2512
      %v2514 = vsel %vm378, %v2458, 0.0
      %v2515 = vadd.f32 %v2513, %v2514
      %v2516 = vsel %vm378, %v2459, 0.0
      %v2517 = vadd.f32 %v2515, %v2516
      %v2518 = vsel %vm378, %v2460, 0.0
      %v2519 = vadd.f32 %v2517, %v2518
      %v2520 = vsel %vm378, %v2461, 0.0
      %v2521 = vadd.f32 %v2519, %v2520
      %v2522 = vsel %vm378, %v2462, 0.0
      %v2523 = vadd.f32 %v2521, %v2522
      %v2524 = vsel %vm378, %v2463, 0.0
      %v2525 = vadd.f32 %v2523, %v2524
      %v2526 = vsel %vm378, %v2464, 0.0
      %v2527 = vadd.f32 %v2525, %v2526
      %v2528 = vrot.slane %v2527, 4
      %v2529 = vadd.f32 %v2527, %v2528
      %v2530 = vrot.slane %v2529, 2
      %v2531 = vadd.f32 %v2529, %v2530
      %v2532 = vrot.slane %v2531, 1
      %v2533 = vadd.f32 %v2531, %v2532
      %2534 = vst.msk [vmem:[%s235] sm:$0x1] %vm387, %v2432
      %2535 = vst.msk [vmem:[%s235 + $0x1] sm:$0x1] %vm387, %v2533
      %2536 = vst.msk [vmem:[%s231] sm:$0xff] %vm378, %v2206
      %2537 = vst.msk [vmem:[%s231 + $0x8] sm:$0xff] %vm378, %v2211
      %2538 = vst.msk [vmem:[%s231 + $0x10] sm:$0xff] %vm378, %v2216
      %2539 = vst.msk [vmem:[%s231 + $0x18] sm:$0xff] %vm378, %v2221
      %2540 = vst.msk [vmem:[%s231 + $0x20] sm:$0xff] %vm378, %v2226
      %2541 = vst.msk [vmem:[%s231 + $0x28] sm:$0xff] %vm378, %v2231
      %2542 = vst.msk [vmem:[%s231 + $0x30] sm:$0xff] %vm378, %v2236
      %2543 = vst.msk [vmem:[%s231 + $0x38] sm:$0xff] %vm378, %v2241
      %2544 = vst.msk [vmem:[%s231 + $0x40] sm:$0xff] %vm378, %v2246
      %2545 = vst.msk [vmem:[%s231 + $0x48] sm:$0xff] %vm378, %v2251
      %2546 = vst.msk [vmem:[%s231 + $0x50] sm:$0xff] %vm378, %v2256
      %2547 = vst.msk [vmem:[%s231 + $0x58] sm:$0xff] %vm378, %v2261
      %2548 = vst.msk [vmem:[%s231 + $0x60] sm:$0xff] %vm378, %v2266
      %2549 = vst.msk [vmem:[%s231 + $0x68] sm:$0xff] %vm378, %v2271
      %2550 = vst.msk [vmem:[%s231 + $0x70] sm:$0xff] %vm378, %v2276
      %2551 = vst.msk [vmem:[%s231 + $0x78] sm:$0xff] %vm378, %v2281
      %2552 = vst.msk [vmem:[%s231 + $0x80] sm:$0xff] %vm378, %v2286
      %2553 = vst.msk [vmem:[%s231 + $0x88] sm:$0xff] %vm378, %v2291
      %2554 = vst.msk [vmem:[%s231 + $0x90] sm:$0xff] %vm378, %v2296
      %2555 = vst.msk [vmem:[%s231 + $0x98] sm:$0xff] %vm378, %v2301
      %2556 = vst.msk [vmem:[%s231 + $0xa0] sm:$0xff] %vm378, %v2306
      %2557 = vst.msk [vmem:[%s231 + $0xa8] sm:$0xff] %vm378, %v2311
      %2558 = vst.msk [vmem:[%s231 + $0xb0] sm:$0xff] %vm378, %v2316
      %2559 = vst.msk [vmem:[%s231 + $0xb8] sm:$0xff] %vm378, %v2321
      %2560 = vst.msk [vmem:[%s231 + $0xc0] sm:$0xff] %vm378, %v2326
      %2561 = vst.msk [vmem:[%s231 + $0xc8] sm:$0xff] %vm378, %v2331
      %2562 = vst.msk [vmem:[%s231 + $0xd0] sm:$0xff] %vm378, %v2336
      %2563 = vst.msk [vmem:[%s231 + $0xd8] sm:$0xff] %vm378, %v2341
      %2564 = vst.msk [vmem:[%s231 + $0xe0] sm:$0xff] %vm378, %v2346
      %2565 = vst.msk [vmem:[%s231 + $0xe8] sm:$0xff] %vm378, %v2351
      %2566 = vst.msk [vmem:[%s231 + $0xf0] sm:$0xff] %vm378, %v2356
      %2567 = vst.msk [vmem:[%s231 + $0xf8] sm:$0xff] %vm378, %v2361
      %p2568 = scmp.lt.s32.totalorder %s17, 1
      %s2569 = scalar_select %p2568, %s17, 1
      %s2570 = smul.addr %s2569, 32
      %s2571 = smul.addr %s2570, 8
      %s2572 = scalar_lea.vmem %s4, %s2571
      %p2573 = scmp.lt.s32.totalorder %s17, 1
      %s2574 = scalar_select %p2573, %s17, 1
      %s2575 = smul.addr %s2574, 2
      %s2576 = scalar_lea.vmem %s5, %s2575
      // Predicated region
      $region37: #{double_conv_pallas.4} parent=35 // pred_check
        %p2577 = pneg %p124
      $region38: #{double_conv_pallas.4} parent=35 // pred_check_branch
        %2579 = sbr.rel (%p2577) target = $region40
      $region39: #{double_conv_pallas.4} parent=35 // pred_region
        _
      $region40: #{double_conv_pallas.4} parent=35 // pred_fallthru
        _
      // Predicated region
      $region41: #{double_conv_pallas.4} parent=35 // pred_check
        %p2580 = pneg %p150
      $region42: #{double_conv_pallas.4} parent=35 // pred_check_branch
        %2582 = sbr.rel (%p2580) target = $region44
      $region43: #{double_conv_pallas.4} parent=35 // pred_region
        _
      $region44: #{double_conv_pallas.4} parent=35 // pred_fallthru
        _
    $region36: #{double_conv_pallas.4} parent=5 // pred_fallthru
      _
    %p2583 = scmp.le.s32.totalorder 2, %s12
    // Predicated region
    $region45: #{double_conv_pallas.4} parent=5 // pred_check
      %p2584 = pneg %p2583
    $region46: #{double_conv_pallas.4} parent=5 // pred_check_branch
      %2586 = sbr.rel (%p2584) target = $region48
    $region47: #{double_conv_pallas.4} parent=5 // pred_region
      %s2587 = ssub.s32 %s12, 2
      // Predicated region
      $region49: #{double_conv_pallas.4} parent=47 // pred_check
        %p2588 = pneg %p130
      $region50: #{double_conv_pallas.4} parent=47 // pred_check_branch
        %2590 = sbr.rel (%p2588) target = $region52
      $region51: #{double_conv_pallas.4} parent=47 // pred_region
        %p2591 = scmp.lt.s32.totalorder %s18, 1
        %s2592 = scalar_select %p2591, %s18, 1
        %s2593 = smul.addr %s2592, 32
        %s2594 = smul.addr %s2593, 8
        %s2595 = scalar_lea.vmem %s4, %s2594
      $region52: #{double_conv_pallas.4} parent=47 // pred_fallthru
        _
      // Predicated region
      $region53: #{double_conv_pallas.4} parent=47 // pred_check
        %p2596 = pneg %p156
      $region54: #{double_conv_pallas.4} parent=47 // pred_check_branch
        %2598 = sbr.rel (%p2596) target = $region56
      $region55: #{double_conv_pallas.4} parent=47 // pred_region
        %p2599 = scmp.lt.s32.totalorder %s18, 1
        %s2600 = scalar_select %p2599, %s18, 1
        %s2601 = smul.addr %s2600, 2
        %s2602 = scalar_lea.vmem %s5, %s2601
      $region56: #{double_conv_pallas.4} parent=47 // pred_fallthru
        _
    $region48: #{double_conv_pallas.4} parent=5 // pred_fallthru
      _
  $region6: #{double_conv_pallas.4} parent=0 // loop_footer
    %s16 = sadd.s32 1, %s12
  $region7: #{double_conv_pallas.4} parent=0 // loop_footer_branch
    %11 = sbr.rel target = $region3
  $region8: #{double_conv_pallas.4} parent=0 // loop_exit
    _

</llo_original>
